<compile_context>
chip_gen: v6e
topology: v6e:2x2x1
jax: 0.10.0
libtpu: 0.0.40
codegen_flags: <defaults>
</compile_context>

<pallas_src>
import jax
import jax.numpy as jnp
from jax import lax
from jax.experimental import pallas as pl
from jax.experimental.pallas import tpu as pltpu


def _round_up(n, m):
    return ((n + m - 1) // m) * m


def _device_kind():
    try:
        return jax.devices()[0].device_kind.lower()
    except Exception:
        return ""


def mlp_kernel(x_ref, w0_ref, b0_ref, w1_ref, b1_ref, o_ref):
    # x_ref : (TB, in_dim)      bf16/f32   streamed per grid step
    # w0_ref: (hidden, in_dim)  bf16/f32   resident in VMEM
    # b0_ref: (hidden, 1)       f32        resident in VMEM
    # w1_ref: (1, hidden)       f32        resident in VMEM (PyTorch lin1.weight layout)
    # b1_ref: (1,)              f32        SMEM scalar
    # o_ref : (1, TB)           f32        lane-dense output row

    # lin0 on the MXU, contracting in_dim of both operands (NT matmul):
    #   hT[hidden, TB] = w0[hidden, in_dim] . x[TB, in_dim]^T, f32 accumulation.
    # Any implicit transpose of the x tile lands on the XLU, which has slack here;
    # this is still preferable to a wrapper-side jnp.transpose (extra full HBM pass).
    hT = lax.dot_general(
        w0_ref[...], x_ref[...],
        dimension_numbers=(((1,), (1,)), ((), ())),
        preferred_element_type=jnp.float32,
    )
    # Bias + ReLU in f32 on the VPU (b0 column broadcasts along lanes).
    hT = jnp.maximum(hT + b0_ref[...], 0.0)

    # lin1 (out_features == 1) as a second tiny MXU matmul instead of a VPU
    # multiply + sublane reduce: (1, hidden) @ (hidden, TB) -> (1, TB), lane-dense.
    y = jnp.dot(w1_ref[...], hT, preferred_element_type=jnp.float32)
    o_ref[...] = (y + b1_ref[0]).astype(o_ref.dtype)


def my_neural_net_forward(x, w0, b0, w1, b1, *, block_b=None):
    """Forward pass of MyNeuralNet: lin1(relu(lin0(x))).squeeze(-1).

    x : (B, in_dim)        activations (bf16 recommended on v6e/v7x)
    w0: (hidden, in_dim)   lin0.weight (PyTorch layout)
    b0: (hidden,)          lin0.bias
    w1: (1, hidden)        lin1.weight (PyTorch layout)
    b1: (1,)               lin1.bias
    Returns (B,) float32.
    """
    B, in_dim = x.shape
    hidden = w0.shape[0]

    kind = _device_kind()
    is_v7 = "v7" in kind

    # Batch tile: big enough to bury the ~0.35us/step fixed overhead.  Per batch row
    # the tile costs ~704 B of VMEM (x double-buffered with 16->128 lane padding =
    # 512 B, f32 hT temp = 128 B, double-buffered out row = 64 B):
    #   TB=16384 ~ 11 MB  -> fits v7x's 32 MiB scoped default per TensorCore,
    #   TB=32768 ~ 23 MB  -> v5e/v6e only, with the scoped limit raised below.
    if block_b is None:
        block_b = 16384 if is_v7 else 32768
    TB = min(block_b, _round_up(B, 128))   # multiple of 128 -> lane-dense out block
    num_blocks = pl.cdiv(B, TB)            # partial last block; no jnp.pad of x

    # One-time, tiny parameter re-layouts (column bias, scalar b1); all f32.
    b0c = b0.reshape(hidden, 1).astype(jnp.float32)
    w1r = w1.reshape(1, hidden).astype(jnp.float32)
    b1c = b1.reshape(1).astype(jnp.float32)

    if num_blocks == 1:
        dim_sem = ("arbitrary",)
    elif is_v7:
        # Split independent batch tiles across v7x's two TensorCores.
        dim_sem = (getattr(pltpu, "CORE_PARALLEL", "parallel"),)
    else:
        dim_sem = ("parallel",)

    # Raise the scoped VMEM limit only where needed (v5e/v6e at TB > 16K; both have
    # 128 MiB physical VMEM).  v7x is capped at TB=16K and stays within the default.
    vmem_limit = (64 << 20) if (not is_v7 and TB > 16384) else None

    out = pl.pallas_call(
        mlp_kernel,
        out_shape=jax.ShapeDtypeStruct((1, B), jnp.float32),
        grid_spec=pltpu.PrefetchScalarGridSpec(
            num_scalar_prefetch=0,
            grid=(num_blocks,),
            in_specs=[
                pl.BlockSpec((TB, in_dim), lambda i: (i, 0)),       # x: streamed
                pl.BlockSpec((hidden, in_dim), lambda i: (0, 0)),   # w0: resident
                pl.BlockSpec((hidden, 1), lambda i: (0, 0)),        # b0: resident
                pl.BlockSpec((1, hidden), lambda i: (0, 0)),        # w1: resident
                pl.BlockSpec(memory_space=pltpu.MemorySpace.SMEM),  # b1: scalar
            ],
            out_specs=pl.BlockSpec((1, TB), lambda i: (0, i)),      # lane-dense row
        ),
        compiler_params=pltpu.CompilerParams(
            dimension_semantics=dim_sem,
            vmem_limit_bytes=vmem_limit,
        ),
    )(x, w0, b0c, w1r, b1c)

    return out.reshape(B)   # (1, B) -> (B,): metadata-only reshape, no slice needed


def _reference(x, w0, b0, w1, b1):
    x32, w032 = x.astype(jnp.float32), w0.astype(jnp.float32)
    h = jnp.maximum(x32 @ w032.T + b0[None, :], 0.0)
    return (h @ w1.astype(jnp.float32).T + b1[None, :])[:, 0]


if __name__ == "__main__":
    in_dim, hidden_dim = 16, 32

    key = jax.random.PRNGKey(0)
    kx, kw0, kb0, kw1, kb1 = jax.random.split(key, 5)

    # PyTorch-like uniform init bounds; x / w0 in bf16 (the dominant HBM stream and
    # full-rate MXU inputs), biases and w1 in f32 so all elementwise math is f32.
    bound0 = 1.0 / (in_dim ** 0.5)
    w0 = jax.random.uniform(kw0, (hidden_dim, in_dim), jnp.float32,
                            -bound0, bound0).astype(jnp.bfloat16)
    b0 = jax.random.uniform(kb0, (hidden_dim,), jnp.float32, -bound0, bound0)
    bound1 = 1.0 / (hidden_dim ** 0.5)
    w1 = jax.random.uniform(kw1, (1, hidden_dim), jnp.float32, -bound1, bound1)
    b1 = jax.random.uniform(kb1, (1,), jnp.float32, -bound1, bound1)

    # Main check: B=4096 now runs as a single grid step (TB == B).
    B = 4096
    x = jax.random.normal(kx, (B, in_dim), dtype=jnp.float32).astype(jnp.bfloat16)
    out = jax.block_until_ready(my_neural_net_forward(x, w0, b0, w1, b1))
    ref = _reference(x, w0, b0, w1, b1)
    assert out.shape == (B,)
    err = float(jnp.max(jnp.abs(out - ref)))
    assert jnp.allclose(out, ref, atol=2e-3, rtol=2e-3), err

    # Second check: B not a multiple of 128 exercises the no-pad partial-block path
    # (out-of-bounds rows only affect output lanes that the masked write discards).
    B2 = 1000
    x2 = jax.random.normal(kx, (B2, in_dim), dtype=jnp.float32).astype(jnp.bfloat16)
    out2 = jax.block_until_ready(my_neural_net_forward(x2, w0, b0, w1, b1))
    ref2 = _reference(x2, w0, b0, w1, b1)
    assert out2.shape == (B2,)
    err2 = float(jnp.max(jnp.abs(out2 - ref2)))
    assert jnp.allclose(out2, ref2, atol=2e-3, rtol=2e-3), err2

    print("KERNEL_OK")
</pallas_src>

<mosaic_0001>
module attributes {stable_mosaic.version = 11 : i64} {
  func.func @mlp_kernel(%arg0: i32, %arg1: memref<4096x16xbf16, #tpu.memory_space<vmem>>, %arg2: memref<32x16xbf16, #tpu.memory_space<vmem>>, %arg3: memref<32x1xf32, #tpu.memory_space<vmem>>, %arg4: memref<1x32xf32, #tpu.memory_space<vmem>>, %arg5: memref<1xf32, #tpu.memory_space<smem>>, %arg6: memref<1x4096xf32, #tpu.memory_space<vmem>>) attributes {dimension_semantics = [#tpu.dimension_semantics<arbitrary>], iteration_bounds = array<i64: 1>, scalar_prefetch = 0 : i64, scratch_operands = 0 : i64, tpu.core_type = #tpu.core_type<tc>, window_params = [{transform_indices = @transform_0, window_bounds = array<i64: 4096, 16>}, {pipeline_mode = #tpu.pipeline_mode<synchronous>, transform_indices = @transform_1, window_bounds = array<i64: 32, 16>}, {pipeline_mode = #tpu.pipeline_mode<synchronous>, transform_indices = @transform_2, window_bounds = array<i64: 32, 1>}, {pipeline_mode = #tpu.pipeline_mode<synchronous>, transform_indices = @transform_3, window_bounds = array<i64: 1, 32>}, {transform_indices = @transform_4, window_bounds = array<i64: 1>}, {transform_indices = @transform_5, window_bounds = array<i64: 1, 4096>}]} {
    %c0 = arith.constant 0 : index
    %c0_0 = arith.constant 0 : index
    %0 = vector.load %arg2[%c0, %c0_0] : memref<32x16xbf16, #tpu.memory_space<vmem>>, vector<32x16xbf16>
    %c0_1 = arith.constant 0 : index
    %c0_2 = arith.constant 0 : index
    %1 = vector.load %arg1[%c0_1, %c0_2] : memref<4096x16xbf16, #tpu.memory_space<vmem>>, vector<4096x16xbf16>
    %cst = arith.constant dense<0.000000e+00> : vector<32x4096xf32>
    %2 = tpu.matmul %0, %1, %cst {dimension_numbers = #tpu.dot_dimension_numbers<[1], [1], [0], [0], [0, 0, 1, 0], [], []>} : vector<32x16xbf16>, vector<4096x16xbf16>, vector<32x4096xf32> -> vector<32x4096xf32>
    %c0_3 = arith.constant 0 : index
    %c0_4 = arith.constant 0 : index
    %3 = vector.load %arg3[%c0_3, %c0_4] : memref<32x1xf32, #tpu.memory_space<vmem>>, vector<32x1xf32>
    %4 = vector.broadcast %3 : vector<32x1xf32> to vector<32x4096xf32>
    %5 = arith.addf %2, %4 : vector<32x4096xf32>
    %cst_5 = arith.constant 0.000000e+00 : f32
    %6 = vector.broadcast %cst_5 : f32 to vector<32x4096xf32>
    %7 = arith.maximumf %5, %6 : vector<32x4096xf32>
    %c0_6 = arith.constant 0 : index
    %c0_7 = arith.constant 0 : index
    %8 = vector.load %arg4[%c0_6, %c0_7] : memref<1x32xf32, #tpu.memory_space<vmem>>, vector<1x32xf32>
    %cst_8 = arith.constant dense<0.000000e+00> : vector<1x4096xf32>
    %9 = tpu.matmul %8, %7, %cst_8 {dimension_numbers = #tpu.dot_dimension_numbers<[1], [0], [0], [1], [0, 0, 1, 1], [], []>} : vector<1x32xf32>, vector<32x4096xf32>, vector<1x4096xf32> -> vector<1x4096xf32>
    %c0_9 = arith.constant 0 : index
    %10 = memref.load %arg5[%c0_9] : memref<1xf32, #tpu.memory_space<smem>>
    %11 = vector.broadcast %10 : f32 to vector<1x4096xf32>
    %12 = arith.addf %9, %11 : vector<1x4096xf32>
    %c0_10 = arith.constant 0 : index
    %c0_11 = arith.constant 0 : index
    %13 = vector.load %arg6[%c0_10, %c0_11] : memref<1x4096xf32, #tpu.memory_space<vmem>>, vector<1x4096xf32>
    tpu.vector_store %arg6[%c0_10, %c0_11], %12 {strides = array<i32>} : memref<1x4096xf32, #tpu.memory_space<vmem>>, vector<1x4096xf32>,
    return
  }
  func.func @transform_0(%arg0: i32) -> (i32, i32) {
    %c0_i32 = arith.constant 0 : i32
    %c0_i32_0 = arith.constant 0 : i32
    return %arg0, %c0_i32 : i32, i32
  }
  func.func @transform_1(%arg0: i32) -> (i32, i32) {
    %c0_i32 = arith.constant 0 : i32
    %c0_i32_0 = arith.constant 0 : i32
    %c0_i32_1 = arith.constant 0 : i32
    return %c0_i32, %c0_i32_0 : i32, i32
  }
  func.func @transform_2(%arg0: i32) -> (i32, i32) {
    %c0_i32 = arith.constant 0 : i32
    %c0_i32_0 = arith.constant 0 : i32
    %c0_i32_1 = arith.constant 0 : i32
    return %c0_i32, %c0_i32_0 : i32, i32
  }
  func.func @transform_3(%arg0: i32) -> (i32, i32) {
    %c0_i32 = arith.constant 0 : i32
    %c0_i32_0 = arith.constant 0 : i32
    %c0_i32_1 = arith.constant 0 : i32
    return %c0_i32, %c0_i32_0 : i32, i32
  }
  func.func @transform_4(%arg0: i32) -> i32 {
    %c0_i32 = arith.constant 0 : i32
    %c0_i32_0 = arith.constant 0 : i32
    return %c0_i32 : i32
  }
  func.func @transform_5(%arg0: i32) -> (i32, i32) {
    %c0_i32 = arith.constant 0 : i32
    %c0_i32_0 = arith.constant 0 : i32
    return %c0_i32, %arg0 : i32, i32
  }
}

</mosaic_0001>

<llo_original>
// kernel: tpu_custom_call.1
$region0: #{tpu_custom_call.1}
  #allocation0 [shape = 'u32[]', space=smem, size = 0x4, offset = 0x4, fixed_abs, tag = 'smem constant byte address 0x4 - core index']
  #allocation1 [shape = 'u32[144,128]{1,0:T(1,128)}', space=vmem, size = 0x12000, scoped, tag = 'internal scratch']
  #allocation2 [shape = 'f32[1]{0:T(128)S(6)}', space=smem, size = 0x200, scoped, tag = 'scoped memory for tpu_custom_call.1']
  %s0 = inlined_call_operand.vmem [shape: bf16[4096,16], index: 0, kind: input, shape index: {}]
  %s1 = inlined_call_operand.vmem [shape: bf16[32,16], index: 1, kind: input, shape index: {}]
  %s2 = inlined_call_operand.vmem [shape: f32[32,1], index: 2, kind: input, shape index: {}]
  %s3 = inlined_call_operand.vmem [shape: f32[1,32], index: 3, kind: input, shape index: {}]
  %s4 = inlined_call_operand.<no memory space> [shape: f32[1], index: 4, kind: input, shape index: {}]
  %s5 = inlined_call_operand.hbm [shape: f32[1,4096], index: 5, kind: output, shape index: {}]
  %s6 = sld [smem:[#allocation0]]
  $region30: #{tpu_custom_call.1} parent=0
    _
  %s8 = ssub.s32 1, %s6
  %s9 = scalar_select 0, %s8, %s6
  %10 = sst [smem:[#allocation2]] %s4
  $region1: #{tpu_custom_call.1} parent=0
    #allocation3 [shape = 'u8[16384]{0}', space=vmem, size = 0x4000, scoped, tag = 'output window, operand 0, single buffered']
    #allocation4 [shape = 's32[1]{0}', space=sflag, size = 0x4, scoped, tag = 'scoped memory for tpu_custom_call.1']
    %11 = vsyncpa [#allocation4], 0
    // Predicated region
    $region2: #{tpu_custom_call.1} parent=1 // pred_check
      _
    $region3: #{tpu_custom_call.1} parent=1 // pred_check_branch
      %13 = sbr.rel (0) target = $region5
    $region4: #{tpu_custom_call.1} parent=1 // pred_region
      _
    $region5: #{tpu_custom_call.1} parent=1 // pred_fallthru
      _
    // Predicated region
    $region6: #{tpu_custom_call.1} parent=1 // pred_check
      _
    $region7: #{tpu_custom_call.1} parent=1 // pred_check_branch
      %15 = sbr.rel (0) target = $region9
    $region8: #{tpu_custom_call.1} parent=1 // pred_region
      _
    $region9: #{tpu_custom_call.1} parent=1 // pred_fallthru
      _
    // Predicated region
    $region10: #{tpu_custom_call.1} parent=1 // pred_check
      _
    $region11: #{tpu_custom_call.1} parent=1 // pred_check_branch
      %17 = sbr.rel (0) target = $region13
    $region12: #{tpu_custom_call.1} parent=1 // pred_region
      _
    $region13: #{tpu_custom_call.1} parent=1 // pred_fallthru
      _
    // Predicated region
    $region14: #{tpu_custom_call.1} parent=1 // pred_check
      _
    $region15: #{tpu_custom_call.1} parent=1 // pred_check_branch
      %19 = sbr.rel (0) target = $region17
    $region16: #{tpu_custom_call.1} parent=1 // pred_region
      _
    $region17: #{tpu_custom_call.1} parent=1 // pred_fallthru
      _
    // Predicated region
    $region18: #{tpu_custom_call.1} parent=1 // pred_check
      _
    $region19: #{tpu_custom_call.1} parent=1 // pred_check_branch
      %21 = sbr.rel (0) target = $region21
    $region20: #{tpu_custom_call.1} parent=1 // pred_region
      _
    $region21: #{tpu_custom_call.1} parent=1 // pred_fallthru
      _
    %v23 = vld [vmem:[%s1] sm:$0xf]
    %v24 = vld [vmem:[%s1 + $0x4] sm:$0xf]
    %v25 = vld [vmem:[%s1 + $0x8] sm:$0xf]
    %v26 = vld [vmem:[%s1 + $0xc] sm:$0xf]
    %v27 = vld [vmem:[%s0] sm:$0xf]
    %v28 = vld [vmem:[%s0 + $0x4] sm:$0xf]
    %v29 = vld [vmem:[%s0 + $0x8] sm:$0xf]
    %v30 = vld [vmem:[%s0 + $0xc] sm:$0xf]
    %v31 = vld [vmem:[%s0 + $0x10] sm:$0xf]
    %v32 = vld [vmem:[%s0 + $0x14] sm:$0xf]
    %v33 = vld [vmem:[%s0 + $0x18] sm:$0xf]
    %v34 = vld [vmem:[%s0 + $0x1c] sm:$0xf]
    %v35 = vld [vmem:[%s0 + $0x20] sm:$0xf]
    %v36 = vld [vmem:[%s0 + $0x24] sm:$0xf]
    %v37 = vld [vmem:[%s0 + $0x28] sm:$0xf]
    %v38 = vld [vmem:[%s0 + $0x2c] sm:$0xf]
    %v39 = vld [vmem:[%s0 + $0x30] sm:$0xf]
    %v40 = vld [vmem:[%s0 + $0x34] sm:$0xf]
    %v41 = vld [vmem:[%s0 + $0x38] sm:$0xf]
    %v42 = vld [vmem:[%s0 + $0x3c] sm:$0xf]
    %v43 = vld [vmem:[%s0 + $0x40] sm:$0xf]
    %v44 = vld [vmem:[%s0 + $0x44] sm:$0xf]
    %v45 = vld [vmem:[%s0 + $0x48] sm:$0xf]
    %v46 = vld [vmem:[%s0 + $0x4c] sm:$0xf]
    %v47 = vld [vmem:[%s0 + $0x50] sm:$0xf]
    %v48 = vld [vmem:[%s0 + $0x54] sm:$0xf]
    %v49 = vld [vmem:[%s0 + $0x58] sm:$0xf]
    %v50 = vld [vmem:[%s0 + $0x5c] sm:$0xf]
    %v51 = vld [vmem:[%s0 + $0x60] sm:$0xf]
    %v52 = vld [vmem:[%s0 + $0x64] sm:$0xf]
    %v53 = vld [vmem:[%s0 + $0x68] sm:$0xf]
    %v54 = vld [vmem:[%s0 + $0x6c] sm:$0xf]
    %v55 = vld [vmem:[%s0 + $0x70] sm:$0xf]
    %v56 = vld [vmem:[%s0 + $0x74] sm:$0xf]
    %v57 = vld [vmem:[%s0 + $0x78] sm:$0xf]
    %v58 = vld [vmem:[%s0 + $0x7c] sm:$0xf]
    %v59 = vld [vmem:[%s0 + $0x80] sm:$0xf]
    %v60 = vld [vmem:[%s0 + $0x84] sm:$0xf]
    %v61 = vld [vmem:[%s0 + $0x88] sm:$0xf]
    %v62 = vld [vmem:[%s0 + $0x8c] sm:$0xf]
    %v63 = vld [vmem:[%s0 + $0x90] sm:$0xf]
    %v64 = vld [vmem:[%s0 + $0x94] sm:$0xf]
    %v65 = vld [vmem:[%s0 + $0x98] sm:$0xf]
    %v66 = vld [vmem:[%s0 + $0x9c] sm:$0xf]
    %v67 = vld [vmem:[%s0 + $0xa0] sm:$0xf]
    %v68 = vld [vmem:[%s0 + $0xa4] sm:$0xf]
    %v69 = vld [vmem:[%s0 + $0xa8] sm:$0xf]
    %v70 = vld [vmem:[%s0 + $0xac] sm:$0xf]
    %v71 = vld [vmem:[%s0 + $0xb0] sm:$0xf]
    %v72 = vld [vmem:[%s0 + $0xb4] sm:$0xf]
    %v73 = vld [vmem:[%s0 + $0xb8] sm:$0xf]
    %v74 = vld [vmem:[%s0 + $0xbc] sm:$0xf]
    %v75 = vld [vmem:[%s0 + $0xc0] sm:$0xf]
    %v76 = vld [vmem:[%s0 + $0xc4] sm:$0xf]
    %v77 = vld [vmem:[%s0 + $0xc8] sm:$0xf]
    %v78 = vld [vmem:[%s0 + $0xcc] sm:$0xf]
    %v79 = vld [vmem:[%s0 + $0xd0] sm:$0xf]
    %v80 = vld [vmem:[%s0 + $0xd4] sm:$0xf]
    %v81 = vld [vmem:[%s0 + $0xd8] sm:$0xf]
    %v82 = vld [vmem:[%s0 + $0xdc] sm:$0xf]
    %v83 = vld [vmem:[%s0 + $0xe0] sm:$0xf]
    %v84 = vld [vmem:[%s0 + $0xe4] sm:$0xf]
    %v85 = vld [vmem:[%s0 + $0xe8] sm:$0xf]
    %v86 = vld [vmem:[%s0 + $0xec] sm:$0xf]
    %v87 = vld [vmem:[%s0 + $0xf0] sm:$0xf]
    %v88 = vld [vmem:[%s0 + $0xf4] sm:$0xf]
    %v89 = vld [vmem:[%s0 + $0xf8] sm:$0xf]
    %v90 = vld [vmem:[%s0 + $0xfc] sm:$0xf]
    %v91 = vld [vmem:[%s0 + $0x100] sm:$0xf]
    %v92 = vld [vmem:[%s0 + $0x104] sm:$0xf]
    %v93 = vld [vmem:[%s0 + $0x108] sm:$0xf]
    %v94 = vld [vmem:[%s0 + $0x10c] sm:$0xf]
    %v95 = vld [vmem:[%s0 + $0x110] sm:$0xf]
    %v96 = vld [vmem:[%s0 + $0x114] sm:$0xf]
    %v97 = vld [vmem:[%s0 + $0x118] sm:$0xf]
    %v98 = vld [vmem:[%s0 + $0x11c] sm:$0xf]
    %v99 = vld [vmem:[%s0 + $0x120] sm:$0xf]
    %v100 = vld [vmem:[%s0 + $0x124] sm:$0xf]
    %v101 = vld [vmem:[%s0 + $0x128] sm:$0xf]
    %v102 = vld [vmem:[%s0 + $0x12c] sm:$0xf]
    %v103 = vld [vmem:[%s0 + $0x130] sm:$0xf]
    %v104 = vld [vmem:[%s0 + $0x134] sm:$0xf]
    %v105 = vld [vmem:[%s0 + $0x138] sm:$0xf]
    %v106 = vld [vmem:[%s0 + $0x13c] sm:$0xf]
    %v107 = vld [vmem:[%s0 + $0x140] sm:$0xf]
    %v108 = vld [vmem:[%s0 + $0x144] sm:$0xf]
    %v109 = vld [vmem:[%s0 + $0x148] sm:$0xf]
    %v110 = vld [vmem:[%s0 + $0x14c] sm:$0xf]
    %v111 = vld [vmem:[%s0 + $0x150] sm:$0xf]
    %v112 = vld [vmem:[%s0 + $0x154] sm:$0xf]
    %v113 = vld [vmem:[%s0 + $0x158] sm:$0xf]
    %v114 = vld [vmem:[%s0 + $0x15c] sm:$0xf]
    %v115 = vld [vmem:[%s0 + $0x160] sm:$0xf]
    %v116 = vld [vmem:[%s0 + $0x164] sm:$0xf]
    %v117 = vld [vmem:[%s0 + $0x168] sm:$0xf]
    %v118 = vld [vmem:[%s0 + $0x16c] sm:$0xf]
    %v119 = vld [vmem:[%s0 + $0x170] sm:$0xf]
    %v120 = vld [vmem:[%s0 + $0x174] sm:$0xf]
    %v121 = vld [vmem:[%s0 + $0x178] sm:$0xf]
    %v122 = vld [vmem:[%s0 + $0x17c] sm:$0xf]
    %v123 = vld [vmem:[%s0 + $0x180] sm:$0xf]
    %v124 = vld [vmem:[%s0 + $0x184] sm:$0xf]
    %v125 = vld [vmem:[%s0 + $0x188] sm:$0xf]
    %v126 = vld [vmem:[%s0 + $0x18c] sm:$0xf]
    %v127 = vld [vmem:[%s0 + $0x190] sm:$0xf]
    %v128 = vld [vmem:[%s0 + $0x194] sm:$0xf]
    %v129 = vld [vmem:[%s0 + $0x198] sm:$0xf]
    %v130 = vld [vmem:[%s0 + $0x19c] sm:$0xf]
    %v131 = vld [vmem:[%s0 + $0x1a0] sm:$0xf]
    %v132 = vld [vmem:[%s0 + $0x1a4] sm:$0xf]
    %v133 = vld [vmem:[%s0 + $0x1a8] sm:$0xf]
    %v134 = vld [vmem:[%s0 + $0x1ac] sm:$0xf]
    %v135 = vld [vmem:[%s0 + $0x1b0] sm:$0xf]
    %v136 = vld [vmem:[%s0 + $0x1b4] sm:$0xf]
    %v137 = vld [vmem:[%s0 + $0x1b8] sm:$0xf]
    %v138 = vld [vmem:[%s0 + $0x1bc] sm:$0xf]
    %v139 = vld [vmem:[%s0 + $0x1c0] sm:$0xf]
    %v140 = vld [vmem:[%s0 + $0x1c4] sm:$0xf]
    %v141 = vld [vmem:[%s0 + $0x1c8] sm:$0xf]
    %v142 = vld [vmem:[%s0 + $0x1cc] sm:$0xf]
    %v143 = vld [vmem:[%s0 + $0x1d0] sm:$0xf]
    %v144 = vld [vmem:[%s0 + $0x1d4] sm:$0xf]
    %v145 = vld [vmem:[%s0 + $0x1d8] sm:$0xf]
    %v146 = vld [vmem:[%s0 + $0x1dc] sm:$0xf]
    %v147 = vld [vmem:[%s0 + $0x1e0] sm:$0xf]
    %v148 = vld [vmem:[%s0 + $0x1e4] sm:$0xf]
    %v149 = vld [vmem:[%s0 + $0x1e8] sm:$0xf]
    %v150 = vld [vmem:[%s0 + $0x1ec] sm:$0xf]
    %v151 = vld [vmem:[%s0 + $0x1f0] sm:$0xf]
    %v152 = vld [vmem:[%s0 + $0x1f4] sm:$0xf]
    %v153 = vld [vmem:[%s0 + $0x1f8] sm:$0xf]
    %v154 = vld [vmem:[%s0 + $0x1fc] sm:$0xf]
    %v155 = vld [vmem:[%s0 + $0x200] sm:$0xf]
    %v156 = vld [vmem:[%s0 + $0x204] sm:$0xf]
    %v157 = vld [vmem:[%s0 + $0x208] sm:$0xf]
    %v158 = vld [vmem:[%s0 + $0x20c] sm:$0xf]
    %v159 = vld [vmem:[%s0 + $0x210] sm:$0xf]
    %v160 = vld [vmem:[%s0 + $0x214] sm:$0xf]
    %v161 = vld [vmem:[%s0 + $0x218] sm:$0xf]
    %v162 = vld [vmem:[%s0 + $0x21c] sm:$0xf]
    %v163 = vld [vmem:[%s0 + $0x220] sm:$0xf]
    %v164 = vld [vmem:[%s0 + $0x224] sm:$0xf]
    %v165 = vld [vmem:[%s0 + $0x228] sm:$0xf]
    %v166 = vld [vmem:[%s0 + $0x22c] sm:$0xf]
    %v167 = vld [vmem:[%s0 + $0x230] sm:$0xf]
    %v168 = vld [vmem:[%s0 + $0x234] sm:$0xf]
    %v169 = vld [vmem:[%s0 + $0x238] sm:$0xf]
    %v170 = vld [vmem:[%s0 + $0x23c] sm:$0xf]
    %v171 = vld [vmem:[%s0 + $0x240] sm:$0xf]
    %v172 = vld [vmem:[%s0 + $0x244] sm:$0xf]
    %v173 = vld [vmem:[%s0 + $0x248] sm:$0xf]
    %v174 = vld [vmem:[%s0 + $0x24c] sm:$0xf]
    %v175 = vld [vmem:[%s0 + $0x250] sm:$0xf]
    %v176 = vld [vmem:[%s0 + $0x254] sm:$0xf]
    %v177 = vld [vmem:[%s0 + $0x258] sm:$0xf]
    %v178 = vld [vmem:[%s0 + $0x25c] sm:$0xf]
    %v179 = vld [vmem:[%s0 + $0x260] sm:$0xf]
    %v180 = vld [vmem:[%s0 + $0x264] sm:$0xf]
    %v181 = vld [vmem:[%s0 + $0x268] sm:$0xf]
    %v182 = vld [vmem:[%s0 + $0x26c] sm:$0xf]
    %v183 = vld [vmem:[%s0 + $0x270] sm:$0xf]
    %v184 = vld [vmem:[%s0 + $0x274] sm:$0xf]
    %v185 = vld [vmem:[%s0 + $0x278] sm:$0xf]
    %v186 = vld [vmem:[%s0 + $0x27c] sm:$0xf]
    %v187 = vld [vmem:[%s0 + $0x280] sm:$0xf]
    %v188 = vld [vmem:[%s0 + $0x284] sm:$0xf]
    %v189 = vld [vmem:[%s0 + $0x288] sm:$0xf]
    %v190 = vld [vmem:[%s0 + $0x28c] sm:$0xf]
    %v191 = vld [vmem:[%s0 + $0x290] sm:$0xf]
    %v192 = vld [vmem:[%s0 + $0x294] sm:$0xf]
    %v193 = vld [vmem:[%s0 + $0x298] sm:$0xf]
    %v194 = vld [vmem:[%s0 + $0x29c] sm:$0xf]
    %v195 = vld [vmem:[%s0 + $0x2a0] sm:$0xf]
    %v196 = vld [vmem:[%s0 + $0x2a4] sm:$0xf]
    %v197 = vld [vmem:[%s0 + $0x2a8] sm:$0xf]
    %v198 = vld [vmem:[%s0 + $0x2ac] sm:$0xf]
    %v199 = vld [vmem:[%s0 + $0x2b0] sm:$0xf]
    %v200 = vld [vmem:[%s0 + $0x2b4] sm:$0xf]
    %v201 = vld [vmem:[%s0 + $0x2b8] sm:$0xf]
    %v202 = vld [vmem:[%s0 + $0x2bc] sm:$0xf]
    %v203 = vld [vmem:[%s0 + $0x2c0] sm:$0xf]
    %v204 = vld [vmem:[%s0 + $0x2c4] sm:$0xf]
    %v205 = vld [vmem:[%s0 + $0x2c8] sm:$0xf]
    %v206 = vld [vmem:[%s0 + $0x2cc] sm:$0xf]
    %v207 = vld [vmem:[%s0 + $0x2d0] sm:$0xf]
    %v208 = vld [vmem:[%s0 + $0x2d4] sm:$0xf]
    %v209 = vld [vmem:[%s0 + $0x2d8] sm:$0xf]
    %v210 = vld [vmem:[%s0 + $0x2dc] sm:$0xf]
    %v211 = vld [vmem:[%s0 + $0x2e0] sm:$0xf]
    %v212 = vld [vmem:[%s0 + $0x2e4] sm:$0xf]
    %v213 = vld [vmem:[%s0 + $0x2e8] sm:$0xf]
    %v214 = vld [vmem:[%s0 + $0x2ec] sm:$0xf]
    %v215 = vld [vmem:[%s0 + $0x2f0] sm:$0xf]
    %v216 = vld [vmem:[%s0 + $0x2f4] sm:$0xf]
    %v217 = vld [vmem:[%s0 + $0x2f8] sm:$0xf]
    %v218 = vld [vmem:[%s0 + $0x2fc] sm:$0xf]
    %v219 = vld [vmem:[%s0 + $0x300] sm:$0xf]
    %v220 = vld [vmem:[%s0 + $0x304] sm:$0xf]
    %v221 = vld [vmem:[%s0 + $0x308] sm:$0xf]
    %v222 = vld [vmem:[%s0 + $0x30c] sm:$0xf]
    %v223 = vld [vmem:[%s0 + $0x310] sm:$0xf]
    %v224 = vld [vmem:[%s0 + $0x314] sm:$0xf]
    %v225 = vld [vmem:[%s0 + $0x318] sm:$0xf]
    %v226 = vld [vmem:[%s0 + $0x31c] sm:$0xf]
    %v227 = vld [vmem:[%s0 + $0x320] sm:$0xf]
    %v228 = vld [vmem:[%s0 + $0x324] sm:$0xf]
    %v229 = vld [vmem:[%s0 + $0x328] sm:$0xf]
    %v230 = vld [vmem:[%s0 + $0x32c] sm:$0xf]
    %v231 = vld [vmem:[%s0 + $0x330] sm:$0xf]
    %v232 = vld [vmem:[%s0 + $0x334] sm:$0xf]
    %v233 = vld [vmem:[%s0 + $0x338] sm:$0xf]
    %v234 = vld [vmem:[%s0 + $0x33c] sm:$0xf]
    %v235 = vld [vmem:[%s0 + $0x340] sm:$0xf]
    %v236 = vld [vmem:[%s0 + $0x344] sm:$0xf]
    %v237 = vld [vmem:[%s0 + $0x348] sm:$0xf]
    %v238 = vld [vmem:[%s0 + $0x34c] sm:$0xf]
    %v239 = vld [vmem:[%s0 + $0x350] sm:$0xf]
    %v240 = vld [vmem:[%s0 + $0x354] sm:$0xf]
    %v241 = vld [vmem:[%s0 + $0x358] sm:$0xf]
    %v242 = vld [vmem:[%s0 + $0x35c] sm:$0xf]
    %v243 = vld [vmem:[%s0 + $0x360] sm:$0xf]
    %v244 = vld [vmem:[%s0 + $0x364] sm:$0xf]
    %v245 = vld [vmem:[%s0 + $0x368] sm:$0xf]
    %v246 = vld [vmem:[%s0 + $0x36c] sm:$0xf]
    %v247 = vld [vmem:[%s0 + $0x370] sm:$0xf]
    %v248 = vld [vmem:[%s0 + $0x374] sm:$0xf]
    %v249 = vld [vmem:[%s0 + $0x378] sm:$0xf]
    %v250 = vld [vmem:[%s0 + $0x37c] sm:$0xf]
    %v251 = vld [vmem:[%s0 + $0x380] sm:$0xf]
    %v252 = vld [vmem:[%s0 + $0x384] sm:$0xf]
    %v253 = vld [vmem:[%s0 + $0x388] sm:$0xf]
    %v254 = vld [vmem:[%s0 + $0x38c] sm:$0xf]
    %v255 = vld [vmem:[%s0 + $0x390] sm:$0xf]
    %v256 = vld [vmem:[%s0 + $0x394] sm:$0xf]
    %v257 = vld [vmem:[%s0 + $0x398] sm:$0xf]
    %v258 = vld [vmem:[%s0 + $0x39c] sm:$0xf]
    %v259 = vld [vmem:[%s0 + $0x3a0] sm:$0xf]
    %v260 = vld [vmem:[%s0 + $0x3a4] sm:$0xf]
    %v261 = vld [vmem:[%s0 + $0x3a8] sm:$0xf]
    %v262 = vld [vmem:[%s0 + $0x3ac] sm:$0xf]
    %v263 = vld [vmem:[%s0 + $0x3b0] sm:$0xf]
    %v264 = vld [vmem:[%s0 + $0x3b4] sm:$0xf]
    %v265 = vld [vmem:[%s0 + $0x3b8] sm:$0xf]
    %v266 = vld [vmem:[%s0 + $0x3bc] sm:$0xf]
    %v267 = vld [vmem:[%s0 + $0x3c0] sm:$0xf]
    %v268 = vld [vmem:[%s0 + $0x3c4] sm:$0xf]
    %v269 = vld [vmem:[%s0 + $0x3c8] sm:$0xf]
    %v270 = vld [vmem:[%s0 + $0x3cc] sm:$0xf]
    %v271 = vld [vmem:[%s0 + $0x3d0] sm:$0xf]
    %v272 = vld [vmem:[%s0 + $0x3d4] sm:$0xf]
    %v273 = vld [vmem:[%s0 + $0x3d8] sm:$0xf]
    %v274 = vld [vmem:[%s0 + $0x3dc] sm:$0xf]
    %v275 = vld [vmem:[%s0 + $0x3e0] sm:$0xf]
    %v276 = vld [vmem:[%s0 + $0x3e4] sm:$0xf]
    %v277 = vld [vmem:[%s0 + $0x3e8] sm:$0xf]
    %v278 = vld [vmem:[%s0 + $0x3ec] sm:$0xf]
    %v279 = vld [vmem:[%s0 + $0x3f0] sm:$0xf]
    %v280 = vld [vmem:[%s0 + $0x3f4] sm:$0xf]
    %v281 = vld [vmem:[%s0 + $0x3f8] sm:$0xf]
    %v282 = vld [vmem:[%s0 + $0x3fc] sm:$0xf]
    %v283 = vld [vmem:[%s0 + $0x400] sm:$0xf]
    %v284 = vld [vmem:[%s0 + $0x404] sm:$0xf]
    %v285 = vld [vmem:[%s0 + $0x408] sm:$0xf]
    %v286 = vld [vmem:[%s0 + $0x40c] sm:$0xf]
    %v287 = vld [vmem:[%s0 + $0x410] sm:$0xf]
    %v288 = vld [vmem:[%s0 + $0x414] sm:$0xf]
    %v289 = vld [vmem:[%s0 + $0x418] sm:$0xf]
    %v290 = vld [vmem:[%s0 + $0x41c] sm:$0xf]
    %v291 = vld [vmem:[%s0 + $0x420] sm:$0xf]
    %v292 = vld [vmem:[%s0 + $0x424] sm:$0xf]
    %v293 = vld [vmem:[%s0 + $0x428] sm:$0xf]
    %v294 = vld [vmem:[%s0 + $0x42c] sm:$0xf]
    %v295 = vld [vmem:[%s0 + $0x430] sm:$0xf]
    %v296 = vld [vmem:[%s0 + $0x434] sm:$0xf]
    %v297 = vld [vmem:[%s0 + $0x438] sm:$0xf]
    %v298 = vld [vmem:[%s0 + $0x43c] sm:$0xf]
    %v299 = vld [vmem:[%s0 + $0x440] sm:$0xf]
    %v300 = vld [vmem:[%s0 + $0x444] sm:$0xf]
    %v301 = vld [vmem:[%s0 + $0x448] sm:$0xf]
    %v302 = vld [vmem:[%s0 + $0x44c] sm:$0xf]
    %v303 = vld [vmem:[%s0 + $0x450] sm:$0xf]
    %v304 = vld [vmem:[%s0 + $0x454] sm:$0xf]
    %v305 = vld [vmem:[%s0 + $0x458] sm:$0xf]
    %v306 = vld [vmem:[%s0 + $0x45c] sm:$0xf]
    %v307 = vld [vmem:[%s0 + $0x460] sm:$0xf]
    %v308 = vld [vmem:[%s0 + $0x464] sm:$0xf]
    %v309 = vld [vmem:[%s0 + $0x468] sm:$0xf]
    %v310 = vld [vmem:[%s0 + $0x46c] sm:$0xf]
    %v311 = vld [vmem:[%s0 + $0x470] sm:$0xf]
    %v312 = vld [vmem:[%s0 + $0x474] sm:$0xf]
    %v313 = vld [vmem:[%s0 + $0x478] sm:$0xf]
    %v314 = vld [vmem:[%s0 + $0x47c] sm:$0xf]
    %v315 = vld [vmem:[%s0 + $0x480] sm:$0xf]
    %v316 = vld [vmem:[%s0 + $0x484] sm:$0xf]
    %v317 = vld [vmem:[%s0 + $0x488] sm:$0xf]
    %v318 = vld [vmem:[%s0 + $0x48c] sm:$0xf]
    %v319 = vld [vmem:[%s0 + $0x490] sm:$0xf]
    %v320 = vld [vmem:[%s0 + $0x494] sm:$0xf]
    %v321 = vld [vmem:[%s0 + $0x498] sm:$0xf]
    %v322 = vld [vmem:[%s0 + $0x49c] sm:$0xf]
    %v323 = vld [vmem:[%s0 + $0x4a0] sm:$0xf]
    %v324 = vld [vmem:[%s0 + $0x4a4] sm:$0xf]
    %v325 = vld [vmem:[%s0 + $0x4a8] sm:$0xf]
    %v326 = vld [vmem:[%s0 + $0x4ac] sm:$0xf]
    %v327 = vld [vmem:[%s0 + $0x4b0] sm:$0xf]
    %v328 = vld [vmem:[%s0 + $0x4b4] sm:$0xf]
    %v329 = vld [vmem:[%s0 + $0x4b8] sm:$0xf]
    %v330 = vld [vmem:[%s0 + $0x4bc] sm:$0xf]
    %v331 = vld [vmem:[%s0 + $0x4c0] sm:$0xf]
    %v332 = vld [vmem:[%s0 + $0x4c4] sm:$0xf]
    %v333 = vld [vmem:[%s0 + $0x4c8] sm:$0xf]
    %v334 = vld [vmem:[%s0 + $0x4cc] sm:$0xf]
    %v335 = vld [vmem:[%s0 + $0x4d0] sm:$0xf]
    %v336 = vld [vmem:[%s0 + $0x4d4] sm:$0xf]
    %v337 = vld [vmem:[%s0 + $0x4d8] sm:$0xf]
    %v338 = vld [vmem:[%s0 + $0x4dc] sm:$0xf]
    %v339 = vld [vmem:[%s0 + $0x4e0] sm:$0xf]
    %v340 = vld [vmem:[%s0 + $0x4e4] sm:$0xf]
    %v341 = vld [vmem:[%s0 + $0x4e8] sm:$0xf]
    %v342 = vld [vmem:[%s0 + $0x4ec] sm:$0xf]
    %v343 = vld [vmem:[%s0 + $0x4f0] sm:$0xf]
    %v344 = vld [vmem:[%s0 + $0x4f4] sm:$0xf]
    %v345 = vld [vmem:[%s0 + $0x4f8] sm:$0xf]
    %v346 = vld [vmem:[%s0 + $0x4fc] sm:$0xf]
    %v347 = vld [vmem:[%s0 + $0x500] sm:$0xf]
    %v348 = vld [vmem:[%s0 + $0x504] sm:$0xf]
    %v349 = vld [vmem:[%s0 + $0x508] sm:$0xf]
    %v350 = vld [vmem:[%s0 + $0x50c] sm:$0xf]
    %v351 = vld [vmem:[%s0 + $0x510] sm:$0xf]
    %v352 = vld [vmem:[%s0 + $0x514] sm:$0xf]
    %v353 = vld [vmem:[%s0 + $0x518] sm:$0xf]
    %v354 = vld [vmem:[%s0 + $0x51c] sm:$0xf]
    %v355 = vld [vmem:[%s0 + $0x520] sm:$0xf]
    %v356 = vld [vmem:[%s0 + $0x524] sm:$0xf]
    %v357 = vld [vmem:[%s0 + $0x528] sm:$0xf]
    %v358 = vld [vmem:[%s0 + $0x52c] sm:$0xf]
    %v359 = vld [vmem:[%s0 + $0x530] sm:$0xf]
    %v360 = vld [vmem:[%s0 + $0x534] sm:$0xf]
    %v361 = vld [vmem:[%s0 + $0x538] sm:$0xf]
    %v362 = vld [vmem:[%s0 + $0x53c] sm:$0xf]
    %v363 = vld [vmem:[%s0 + $0x540] sm:$0xf]
    %v364 = vld [vmem:[%s0 + $0x544] sm:$0xf]
    %v365 = vld [vmem:[%s0 + $0x548] sm:$0xf]
    %v366 = vld [vmem:[%s0 + $0x54c] sm:$0xf]
    %v367 = vld [vmem:[%s0 + $0x550] sm:$0xf]
    %v368 = vld [vmem:[%s0 + $0x554] sm:$0xf]
    %v369 = vld [vmem:[%s0 + $0x558] sm:$0xf]
    %v370 = vld [vmem:[%s0 + $0x55c] sm:$0xf]
    %v371 = vld [vmem:[%s0 + $0x560] sm:$0xf]
    %v372 = vld [vmem:[%s0 + $0x564] sm:$0xf]
    %v373 = vld [vmem:[%s0 + $0x568] sm:$0xf]
    %v374 = vld [vmem:[%s0 + $0x56c] sm:$0xf]
    %v375 = vld [vmem:[%s0 + $0x570] sm:$0xf]
    %v376 = vld [vmem:[%s0 + $0x574] sm:$0xf]
    %v377 = vld [vmem:[%s0 + $0x578] sm:$0xf]
    %v378 = vld [vmem:[%s0 + $0x57c] sm:$0xf]
    %v379 = vld [vmem:[%s0 + $0x580] sm:$0xf]
    %v380 = vld [vmem:[%s0 + $0x584] sm:$0xf]
    %v381 = vld [vmem:[%s0 + $0x588] sm:$0xf]
    %v382 = vld [vmem:[%s0 + $0x58c] sm:$0xf]
    %v383 = vld [vmem:[%s0 + $0x590] sm:$0xf]
    %v384 = vld [vmem:[%s0 + $0x594] sm:$0xf]
    %v385 = vld [vmem:[%s0 + $0x598] sm:$0xf]
    %v386 = vld [vmem:[%s0 + $0x59c] sm:$0xf]
    %v387 = vld [vmem:[%s0 + $0x5a0] sm:$0xf]
    %v388 = vld [vmem:[%s0 + $0x5a4] sm:$0xf]
    %v389 = vld [vmem:[%s0 + $0x5a8] sm:$0xf]
    %v390 = vld [vmem:[%s0 + $0x5ac] sm:$0xf]
    %v391 = vld [vmem:[%s0 + $0x5b0] sm:$0xf]
    %v392 = vld [vmem:[%s0 + $0x5b4] sm:$0xf]
    %v393 = vld [vmem:[%s0 + $0x5b8] sm:$0xf]
    %v394 = vld [vmem:[%s0 + $0x5bc] sm:$0xf]
    %v395 = vld [vmem:[%s0 + $0x5c0] sm:$0xf]
    %v396 = vld [vmem:[%s0 + $0x5c4] sm:$0xf]
    %v397 = vld [vmem:[%s0 + $0x5c8] sm:$0xf]
    %v398 = vld [vmem:[%s0 + $0x5cc] sm:$0xf]
    %v399 = vld [vmem:[%s0 + $0x5d0] sm:$0xf]
    %v400 = vld [vmem:[%s0 + $0x5d4] sm:$0xf]
    %v401 = vld [vmem:[%s0 + $0x5d8] sm:$0xf]
    %v402 = vld [vmem:[%s0 + $0x5dc] sm:$0xf]
    %v403 = vld [vmem:[%s0 + $0x5e0] sm:$0xf]
    %v404 = vld [vmem:[%s0 + $0x5e4] sm:$0xf]
    %v405 = vld [vmem:[%s0 + $0x5e8] sm:$0xf]
    %v406 = vld [vmem:[%s0 + $0x5ec] sm:$0xf]
    %v407 = vld [vmem:[%s0 + $0x5f0] sm:$0xf]
    %v408 = vld [vmem:[%s0 + $0x5f4] sm:$0xf]
    %v409 = vld [vmem:[%s0 + $0x5f8] sm:$0xf]
    %v410 = vld [vmem:[%s0 + $0x5fc] sm:$0xf]
    %v411 = vld [vmem:[%s0 + $0x600] sm:$0xf]
    %v412 = vld [vmem:[%s0 + $0x604] sm:$0xf]
    %v413 = vld [vmem:[%s0 + $0x608] sm:$0xf]
    %v414 = vld [vmem:[%s0 + $0x60c] sm:$0xf]
    %v415 = vld [vmem:[%s0 + $0x610] sm:$0xf]
    %v416 = vld [vmem:[%s0 + $0x614] sm:$0xf]
    %v417 = vld [vmem:[%s0 + $0x618] sm:$0xf]
    %v418 = vld [vmem:[%s0 + $0x61c] sm:$0xf]
    %v419 = vld [vmem:[%s0 + $0x620] sm:$0xf]
    %v420 = vld [vmem:[%s0 + $0x624] sm:$0xf]
    %v421 = vld [vmem:[%s0 + $0x628] sm:$0xf]
    %v422 = vld [vmem:[%s0 + $0x62c] sm:$0xf]
    %v423 = vld [vmem:[%s0 + $0x630] sm:$0xf]
    %v424 = vld [vmem:[%s0 + $0x634] sm:$0xf]
    %v425 = vld [vmem:[%s0 + $0x638] sm:$0xf]
    %v426 = vld [vmem:[%s0 + $0x63c] sm:$0xf]
    %v427 = vld [vmem:[%s0 + $0x640] sm:$0xf]
    %v428 = vld [vmem:[%s0 + $0x644] sm:$0xf]
    %v429 = vld [vmem:[%s0 + $0x648] sm:$0xf]
    %v430 = vld [vmem:[%s0 + $0x64c] sm:$0xf]
    %v431 = vld [vmem:[%s0 + $0x650] sm:$0xf]
    %v432 = vld [vmem:[%s0 + $0x654] sm:$0xf]
    %v433 = vld [vmem:[%s0 + $0x658] sm:$0xf]
    %v434 = vld [vmem:[%s0 + $0x65c] sm:$0xf]
    %v435 = vld [vmem:[%s0 + $0x660] sm:$0xf]
    %v436 = vld [vmem:[%s0 + $0x664] sm:$0xf]
    %v437 = vld [vmem:[%s0 + $0x668] sm:$0xf]
    %v438 = vld [vmem:[%s0 + $0x66c] sm:$0xf]
    %v439 = vld [vmem:[%s0 + $0x670] sm:$0xf]
    %v440 = vld [vmem:[%s0 + $0x674] sm:$0xf]
    %v441 = vld [vmem:[%s0 + $0x678] sm:$0xf]
    %v442 = vld [vmem:[%s0 + $0x67c] sm:$0xf]
    %v443 = vld [vmem:[%s0 + $0x680] sm:$0xf]
    %v444 = vld [vmem:[%s0 + $0x684] sm:$0xf]
    %v445 = vld [vmem:[%s0 + $0x688] sm:$0xf]
    %v446 = vld [vmem:[%s0 + $0x68c] sm:$0xf]
    %v447 = vld [vmem:[%s0 + $0x690] sm:$0xf]
    %v448 = vld [vmem:[%s0 + $0x694] sm:$0xf]
    %v449 = vld [vmem:[%s0 + $0x698] sm:$0xf]
    %v450 = vld [vmem:[%s0 + $0x69c] sm:$0xf]
    %v451 = vld [vmem:[%s0 + $0x6a0] sm:$0xf]
    %v452 = vld [vmem:[%s0 + $0x6a4] sm:$0xf]
    %v453 = vld [vmem:[%s0 + $0x6a8] sm:$0xf]
    %v454 = vld [vmem:[%s0 + $0x6ac] sm:$0xf]
    %v455 = vld [vmem:[%s0 + $0x6b0] sm:$0xf]
    %v456 = vld [vmem:[%s0 + $0x6b4] sm:$0xf]
    %v457 = vld [vmem:[%s0 + $0x6b8] sm:$0xf]
    %v458 = vld [vmem:[%s0 + $0x6bc] sm:$0xf]
    %v459 = vld [vmem:[%s0 + $0x6c0] sm:$0xf]
    %v460 = vld [vmem:[%s0 + $0x6c4] sm:$0xf]
    %v461 = vld [vmem:[%s0 + $0x6c8] sm:$0xf]
    %v462 = vld [vmem:[%s0 + $0x6cc] sm:$0xf]
    %v463 = vld [vmem:[%s0 + $0x6d0] sm:$0xf]
    %v464 = vld [vmem:[%s0 + $0x6d4] sm:$0xf]
    %v465 = vld [vmem:[%s0 + $0x6d8] sm:$0xf]
    %v466 = vld [vmem:[%s0 + $0x6dc] sm:$0xf]
    %v467 = vld [vmem:[%s0 + $0x6e0] sm:$0xf]
    %v468 = vld [vmem:[%s0 + $0x6e4] sm:$0xf]
    %v469 = vld [vmem:[%s0 + $0x6e8] sm:$0xf]
    %v470 = vld [vmem:[%s0 + $0x6ec] sm:$0xf]
    %v471 = vld [vmem:[%s0 + $0x6f0] sm:$0xf]
    %v472 = vld [vmem:[%s0 + $0x6f4] sm:$0xf]
    %v473 = vld [vmem:[%s0 + $0x6f8] sm:$0xf]
    %v474 = vld [vmem:[%s0 + $0x6fc] sm:$0xf]
    %v475 = vld [vmem:[%s0 + $0x700] sm:$0xf]
    %v476 = vld [vmem:[%s0 + $0x704] sm:$0xf]
    %v477 = vld [vmem:[%s0 + $0x708] sm:$0xf]
    %v478 = vld [vmem:[%s0 + $0x70c] sm:$0xf]
    %v479 = vld [vmem:[%s0 + $0x710] sm:$0xf]
    %v480 = vld [vmem:[%s0 + $0x714] sm:$0xf]
    %v481 = vld [vmem:[%s0 + $0x718] sm:$0xf]
    %v482 = vld [vmem:[%s0 + $0x71c] sm:$0xf]
    %v483 = vld [vmem:[%s0 + $0x720] sm:$0xf]
    %v484 = vld [vmem:[%s0 + $0x724] sm:$0xf]
    %v485 = vld [vmem:[%s0 + $0x728] sm:$0xf]
    %v486 = vld [vmem:[%s0 + $0x72c] sm:$0xf]
    %v487 = vld [vmem:[%s0 + $0x730] sm:$0xf]
    %v488 = vld [vmem:[%s0 + $0x734] sm:$0xf]
    %v489 = vld [vmem:[%s0 + $0x738] sm:$0xf]
    %v490 = vld [vmem:[%s0 + $0x73c] sm:$0xf]
    %v491 = vld [vmem:[%s0 + $0x740] sm:$0xf]
    %v492 = vld [vmem:[%s0 + $0x744] sm:$0xf]
    %v493 = vld [vmem:[%s0 + $0x748] sm:$0xf]
    %v494 = vld [vmem:[%s0 + $0x74c] sm:$0xf]
    %v495 = vld [vmem:[%s0 + $0x750] sm:$0xf]
    %v496 = vld [vmem:[%s0 + $0x754] sm:$0xf]
    %v497 = vld [vmem:[%s0 + $0x758] sm:$0xf]
    %v498 = vld [vmem:[%s0 + $0x75c] sm:$0xf]
    %v499 = vld [vmem:[%s0 + $0x760] sm:$0xf]
    %v500 = vld [vmem:[%s0 + $0x764] sm:$0xf]
    %v501 = vld [vmem:[%s0 + $0x768] sm:$0xf]
    %v502 = vld [vmem:[%s0 + $0x76c] sm:$0xf]
    %v503 = vld [vmem:[%s0 + $0x770] sm:$0xf]
    %v504 = vld [vmem:[%s0 + $0x774] sm:$0xf]
    %v505 = vld [vmem:[%s0 + $0x778] sm:$0xf]
    %v506 = vld [vmem:[%s0 + $0x77c] sm:$0xf]
    %v507 = vld [vmem:[%s0 + $0x780] sm:$0xf]
    %v508 = vld [vmem:[%s0 + $0x784] sm:$0xf]
    %v509 = vld [vmem:[%s0 + $0x788] sm:$0xf]
    %v510 = vld [vmem:[%s0 + $0x78c] sm:$0xf]
    %v511 = vld [vmem:[%s0 + $0x790] sm:$0xf]
    %v512 = vld [vmem:[%s0 + $0x794] sm:$0xf]
    %v513 = vld [vmem:[%s0 + $0x798] sm:$0xf]
    %v514 = vld [vmem:[%s0 + $0x79c] sm:$0xf]
    %v515 = vld [vmem:[%s0 + $0x7a0] sm:$0xf]
    %v516 = vld [vmem:[%s0 + $0x7a4] sm:$0xf]
    %v517 = vld [vmem:[%s0 + $0x7a8] sm:$0xf]
    %v518 = vld [vmem:[%s0 + $0x7ac] sm:$0xf]
    %v519 = vld [vmem:[%s0 + $0x7b0] sm:$0xf]
    %v520 = vld [vmem:[%s0 + $0x7b4] sm:$0xf]
    %v521 = vld [vmem:[%s0 + $0x7b8] sm:$0xf]
    %v522 = vld [vmem:[%s0 + $0x7bc] sm:$0xf]
    %v523 = vld [vmem:[%s0 + $0x7c0] sm:$0xf]
    %v524 = vld [vmem:[%s0 + $0x7c4] sm:$0xf]
    %v525 = vld [vmem:[%s0 + $0x7c8] sm:$0xf]
    %v526 = vld [vmem:[%s0 + $0x7cc] sm:$0xf]
    %v527 = vld [vmem:[%s0 + $0x7d0] sm:$0xf]
    %v528 = vld [vmem:[%s0 + $0x7d4] sm:$0xf]
    %v529 = vld [vmem:[%s0 + $0x7d8] sm:$0xf]
    %v530 = vld [vmem:[%s0 + $0x7dc] sm:$0xf]
    %v531 = vld [vmem:[%s0 + $0x7e0] sm:$0xf]
    %v532 = vld [vmem:[%s0 + $0x7e4] sm:$0xf]
    %v533 = vld [vmem:[%s0 + $0x7e8] sm:$0xf]
    %v534 = vld [vmem:[%s0 + $0x7ec] sm:$0xf]
    %v535 = vld [vmem:[%s0 + $0x7f0] sm:$0xf]
    %v536 = vld [vmem:[%s0 + $0x7f4] sm:$0xf]
    %v537 = vld [vmem:[%s0 + $0x7f8] sm:$0xf]
    %v538 = vld [vmem:[%s0 + $0x7fc] sm:$0xf]
    %v539 = vld [vmem:[%s2] sm:$0xff]
    %v540 = vld [vmem:[%s2 + $0x8] sm:$0xff]
    %v541 = vld [vmem:[%s2 + $0x10] sm:$0xff]
    %v542 = vld [vmem:[%s2 + $0x18] sm:$0xff]
    %544 = vset.pattern.permute.xlu0 0
    %545 = vperm.xlu0 %544, %v539
    %v546 = vpop.permute.xlu0 %545
    %549 = vset.pattern.permute.xlu0 0
    %550 = vperm.xlu0 %549, %v540
    %v551 = vpop.permute.xlu0 %550
    %554 = vset.pattern.permute.xlu0 0
    %555 = vperm.xlu0 %554, %v541
    %v556 = vpop.permute.xlu0 %555
    %559 = vset.pattern.permute.xlu0 0
    %560 = vperm.xlu0 %559, %v542
    %v561 = vpop.permute.xlu0 %560
    %v567 = vunpack.c.l.b16 %v23
    %v568 = vunpack.c.l.b16 %v24
    %v569 = vunpack.c.l.b16 %v25
    %v570 = vunpack.c.l.b16 %v26
    %v571 = vpack.c.b16 %v568, %v567
    %v572 = vpack.c.b16 %v570, %v569
    %v1085 = vunpack.c.l.b16 %v27
    %v1086 = vunpack.c.l.b16 %v28
    %v1087 = vunpack.c.l.b16 %v29
    %v1088 = vunpack.c.l.b16 %v30
    %v1089 = vunpack.c.l.b16 %v31
    %v1090 = vunpack.c.l.b16 %v32
    %v1091 = vunpack.c.l.b16 %v33
    %v1092 = vunpack.c.l.b16 %v34
    %v1093 = vunpack.c.l.b16 %v35
    %v1094 = vunpack.c.l.b16 %v36
    %v1095 = vunpack.c.l.b16 %v37
    %v1096 = vunpack.c.l.b16 %v38
    %v1097 = vunpack.c.l.b16 %v39
    %v1098 = vunpack.c.l.b16 %v40
    %v1099 = vunpack.c.l.b16 %v41
    %v1100 = vunpack.c.l.b16 %v42
    %v1101 = vunpack.c.l.b16 %v43
    %v1102 = vunpack.c.l.b16 %v44
    %v1103 = vunpack.c.l.b16 %v45
    %v1104 = vunpack.c.l.b16 %v46
    %v1105 = vunpack.c.l.b16 %v47
    %v1106 = vunpack.c.l.b16 %v48
    %v1107 = vunpack.c.l.b16 %v49
    %v1108 = vunpack.c.l.b16 %v50
    %v1109 = vunpack.c.l.b16 %v51
    %v1110 = vunpack.c.l.b16 %v52
    %v1111 = vunpack.c.l.b16 %v53
    %v1112 = vunpack.c.l.b16 %v54
    %v1113 = vunpack.c.l.b16 %v55
    %v1114 = vunpack.c.l.b16 %v56
    %v1115 = vunpack.c.l.b16 %v57
    %v1116 = vunpack.c.l.b16 %v58
    %v1117 = vunpack.c.l.b16 %v59
    %v1118 = vunpack.c.l.b16 %v60
    %v1119 = vunpack.c.l.b16 %v61
    %v1120 = vunpack.c.l.b16 %v62
    %v1121 = vunpack.c.l.b16 %v63
    %v1122 = vunpack.c.l.b16 %v64
    %v1123 = vunpack.c.l.b16 %v65
    %v1124 = vunpack.c.l.b16 %v66
    %v1125 = vunpack.c.l.b16 %v67
    %v1126 = vunpack.c.l.b16 %v68
    %v1127 = vunpack.c.l.b16 %v69
    %v1128 = vunpack.c.l.b16 %v70
    %v1129 = vunpack.c.l.b16 %v71
    %v1130 = vunpack.c.l.b16 %v72
    %v1131 = vunpack.c.l.b16 %v73
    %v1132 = vunpack.c.l.b16 %v74
    %v1133 = vunpack.c.l.b16 %v75
    %v1134 = vunpack.c.l.b16 %v76
    %v1135 = vunpack.c.l.b16 %v77
    %v1136 = vunpack.c.l.b16 %v78
    %v1137 = vunpack.c.l.b16 %v79
    %v1138 = vunpack.c.l.b16 %v80
    %v1139 = vunpack.c.l.b16 %v81
    %v1140 = vunpack.c.l.b16 %v82
    %v1141 = vunpack.c.l.b16 %v83
    %v1142 = vunpack.c.l.b16 %v84
    %v1143 = vunpack.c.l.b16 %v85
    %v1144 = vunpack.c.l.b16 %v86
    %v1145 = vunpack.c.l.b16 %v87
    %v1146 = vunpack.c.l.b16 %v88
    %v1147 = vunpack.c.l.b16 %v89
    %v1148 = vunpack.c.l.b16 %v90
    %v1149 = vunpack.c.l.b16 %v91
    %v1150 = vunpack.c.l.b16 %v92
    %v1151 = vunpack.c.l.b16 %v93
    %v1152 = vunpack.c.l.b16 %v94
    %v1153 = vunpack.c.l.b16 %v95
    %v1154 = vunpack.c.l.b16 %v96
    %v1155 = vunpack.c.l.b16 %v97
    %v1156 = vunpack.c.l.b16 %v98
    %v1157 = vunpack.c.l.b16 %v99
    %v1158 = vunpack.c.l.b16 %v100
    %v1159 = vunpack.c.l.b16 %v101
    %v1160 = vunpack.c.l.b16 %v102
    %v1161 = vunpack.c.l.b16 %v103
    %v1162 = vunpack.c.l.b16 %v104
    %v1163 = vunpack.c.l.b16 %v105
    %v1164 = vunpack.c.l.b16 %v106
    %v1165 = vunpack.c.l.b16 %v107
    %v1166 = vunpack.c.l.b16 %v108
    %v1167 = vunpack.c.l.b16 %v109
    %v1168 = vunpack.c.l.b16 %v110
    %v1169 = vunpack.c.l.b16 %v111
    %v1170 = vunpack.c.l.b16 %v112
    %v1171 = vunpack.c.l.b16 %v113
    %v1172 = vunpack.c.l.b16 %v114
    %v1173 = vunpack.c.l.b16 %v115
    %v1174 = vunpack.c.l.b16 %v116
    %v1175 = vunpack.c.l.b16 %v117
    %v1176 = vunpack.c.l.b16 %v118
    %v1177 = vunpack.c.l.b16 %v119
    %v1178 = vunpack.c.l.b16 %v120
    %v1179 = vunpack.c.l.b16 %v121
    %v1180 = vunpack.c.l.b16 %v122
    %v1181 = vunpack.c.l.b16 %v123
    %v1182 = vunpack.c.l.b16 %v124
    %v1183 = vunpack.c.l.b16 %v125
    %v1184 = vunpack.c.l.b16 %v126
    %v1185 = vunpack.c.l.b16 %v127
    %v1186 = vunpack.c.l.b16 %v128
    %v1187 = vunpack.c.l.b16 %v129
    %v1188 = vunpack.c.l.b16 %v130
    %v1189 = vunpack.c.l.b16 %v131
    %v1190 = vunpack.c.l.b16 %v132
    %v1191 = vunpack.c.l.b16 %v133
    %v1192 = vunpack.c.l.b16 %v134
    %v1193 = vunpack.c.l.b16 %v135
    %v1194 = vunpack.c.l.b16 %v136
    %v1195 = vunpack.c.l.b16 %v137
    %v1196 = vunpack.c.l.b16 %v138
    %v1197 = vunpack.c.l.b16 %v139
    %v1198 = vunpack.c.l.b16 %v140
    %v1199 = vunpack.c.l.b16 %v141
    %v1200 = vunpack.c.l.b16 %v142
    %v1201 = vunpack.c.l.b16 %v143
    %v1202 = vunpack.c.l.b16 %v144
    %v1203 = vunpack.c.l.b16 %v145
    %v1204 = vunpack.c.l.b16 %v146
    %v1205 = vunpack.c.l.b16 %v147
    %v1206 = vunpack.c.l.b16 %v148
    %v1207 = vunpack.c.l.b16 %v149
    %v1208 = vunpack.c.l.b16 %v150
    %v1209 = vunpack.c.l.b16 %v151
    %v1210 = vunpack.c.l.b16 %v152
    %v1211 = vunpack.c.l.b16 %v153
    %v1212 = vunpack.c.l.b16 %v154
    %v1213 = vunpack.c.l.b16 %v155
    %v1214 = vunpack.c.l.b16 %v156
    %v1215 = vunpack.c.l.b16 %v157
    %v1216 = vunpack.c.l.b16 %v158
    %v1217 = vunpack.c.l.b16 %v159
    %v1218 = vunpack.c.l.b16 %v160
    %v1219 = vunpack.c.l.b16 %v161
    %v1220 = vunpack.c.l.b16 %v162
    %v1221 = vunpack.c.l.b16 %v163
    %v1222 = vunpack.c.l.b16 %v164
    %v1223 = vunpack.c.l.b16 %v165
    %v1224 = vunpack.c.l.b16 %v166
    %v1225 = vunpack.c.l.b16 %v167
    %v1226 = vunpack.c.l.b16 %v168
    %v1227 = vunpack.c.l.b16 %v169
    %v1228 = vunpack.c.l.b16 %v170
    %v1229 = vunpack.c.l.b16 %v171
    %v1230 = vunpack.c.l.b16 %v172
    %v1231 = vunpack.c.l.b16 %v173
    %v1232 = vunpack.c.l.b16 %v174
    %v1233 = vunpack.c.l.b16 %v175
    %v1234 = vunpack.c.l.b16 %v176
    %v1235 = vunpack.c.l.b16 %v177
    %v1236 = vunpack.c.l.b16 %v178
    %v1237 = vunpack.c.l.b16 %v179
    %v1238 = vunpack.c.l.b16 %v180
    %v1239 = vunpack.c.l.b16 %v181
    %v1240 = vunpack.c.l.b16 %v182
    %v1241 = vunpack.c.l.b16 %v183
    %v1242 = vunpack.c.l.b16 %v184
    %v1243 = vunpack.c.l.b16 %v185
    %v1244 = vunpack.c.l.b16 %v186
    %v1245 = vunpack.c.l.b16 %v187
    %v1246 = vunpack.c.l.b16 %v188
    %v1247 = vunpack.c.l.b16 %v189
    %v1248 = vunpack.c.l.b16 %v190
    %v1249 = vunpack.c.l.b16 %v191
    %v1250 = vunpack.c.l.b16 %v192
    %v1251 = vunpack.c.l.b16 %v193
    %v1252 = vunpack.c.l.b16 %v194
    %v1253 = vunpack.c.l.b16 %v195
    %v1254 = vunpack.c.l.b16 %v196
    %v1255 = vunpack.c.l.b16 %v197
    %v1256 = vunpack.c.l.b16 %v198
    %v1257 = vunpack.c.l.b16 %v199
    %v1258 = vunpack.c.l.b16 %v200
    %v1259 = vunpack.c.l.b16 %v201
    %v1260 = vunpack.c.l.b16 %v202
    %v1261 = vunpack.c.l.b16 %v203
    %v1262 = vunpack.c.l.b16 %v204
    %v1263 = vunpack.c.l.b16 %v205
    %v1264 = vunpack.c.l.b16 %v206
    %v1265 = vunpack.c.l.b16 %v207
    %v1266 = vunpack.c.l.b16 %v208
    %v1267 = vunpack.c.l.b16 %v209
    %v1268 = vunpack.c.l.b16 %v210
    %v1269 = vunpack.c.l.b16 %v211
    %v1270 = vunpack.c.l.b16 %v212
    %v1271 = vunpack.c.l.b16 %v213
    %v1272 = vunpack.c.l.b16 %v214
    %v1273 = vunpack.c.l.b16 %v215
    %v1274 = vunpack.c.l.b16 %v216
    %v1275 = vunpack.c.l.b16 %v217
    %v1276 = vunpack.c.l.b16 %v218
    %v1277 = vunpack.c.l.b16 %v219
    %v1278 = vunpack.c.l.b16 %v220
    %v1279 = vunpack.c.l.b16 %v221
    %v1280 = vunpack.c.l.b16 %v222
    %v1281 = vunpack.c.l.b16 %v223
    %v1282 = vunpack.c.l.b16 %v224
    %v1283 = vunpack.c.l.b16 %v225
    %v1284 = vunpack.c.l.b16 %v226
    %v1285 = vunpack.c.l.b16 %v227
    %v1286 = vunpack.c.l.b16 %v228
    %v1287 = vunpack.c.l.b16 %v229
    %v1288 = vunpack.c.l.b16 %v230
    %v1289 = vunpack.c.l.b16 %v231
    %v1290 = vunpack.c.l.b16 %v232
    %v1291 = vunpack.c.l.b16 %v233
    %v1292 = vunpack.c.l.b16 %v234
    %v1293 = vunpack.c.l.b16 %v235
    %v1294 = vunpack.c.l.b16 %v236
    %v1295 = vunpack.c.l.b16 %v237
    %v1296 = vunpack.c.l.b16 %v238
    %v1297 = vunpack.c.l.b16 %v239
    %v1298 = vunpack.c.l.b16 %v240
    %v1299 = vunpack.c.l.b16 %v241
    %v1300 = vunpack.c.l.b16 %v242
    %v1301 = vunpack.c.l.b16 %v243
    %v1302 = vunpack.c.l.b16 %v244
    %v1303 = vunpack.c.l.b16 %v245
    %v1304 = vunpack.c.l.b16 %v246
    %v1305 = vunpack.c.l.b16 %v247
    %v1306 = vunpack.c.l.b16 %v248
    %v1307 = vunpack.c.l.b16 %v249
    %v1308 = vunpack.c.l.b16 %v250
    %v1309 = vunpack.c.l.b16 %v251
    %v1310 = vunpack.c.l.b16 %v252
    %v1311 = vunpack.c.l.b16 %v253
    %v1312 = vunpack.c.l.b16 %v254
    %v1313 = vunpack.c.l.b16 %v255
    %v1314 = vunpack.c.l.b16 %v256
    %v1315 = vunpack.c.l.b16 %v257
    %v1316 = vunpack.c.l.b16 %v258
    %v1317 = vunpack.c.l.b16 %v259
    %v1318 = vunpack.c.l.b16 %v260
    %v1319 = vunpack.c.l.b16 %v261
    %v1320 = vunpack.c.l.b16 %v262
    %v1321 = vunpack.c.l.b16 %v263
    %v1322 = vunpack.c.l.b16 %v264
    %v1323 = vunpack.c.l.b16 %v265
    %v1324 = vunpack.c.l.b16 %v266
    %v1325 = vunpack.c.l.b16 %v267
    %v1326 = vunpack.c.l.b16 %v268
    %v1327 = vunpack.c.l.b16 %v269
    %v1328 = vunpack.c.l.b16 %v270
    %v1329 = vunpack.c.l.b16 %v271
    %v1330 = vunpack.c.l.b16 %v272
    %v1331 = vunpack.c.l.b16 %v273
    %v1332 = vunpack.c.l.b16 %v274
    %v1333 = vunpack.c.l.b16 %v275
    %v1334 = vunpack.c.l.b16 %v276
    %v1335 = vunpack.c.l.b16 %v277
    %v1336 = vunpack.c.l.b16 %v278
    %v1337 = vunpack.c.l.b16 %v279
    %v1338 = vunpack.c.l.b16 %v280
    %v1339 = vunpack.c.l.b16 %v281
    %v1340 = vunpack.c.l.b16 %v282
    %v1341 = vunpack.c.l.b16 %v283
    %v1342 = vunpack.c.l.b16 %v284
    %v1343 = vunpack.c.l.b16 %v285
    %v1344 = vunpack.c.l.b16 %v286
    %v1345 = vunpack.c.l.b16 %v287
    %v1346 = vunpack.c.l.b16 %v288
    %v1347 = vunpack.c.l.b16 %v289
    %v1348 = vunpack.c.l.b16 %v290
    %v1349 = vunpack.c.l.b16 %v291
    %v1350 = vunpack.c.l.b16 %v292
    %v1351 = vunpack.c.l.b16 %v293
    %v1352 = vunpack.c.l.b16 %v294
    %v1353 = vunpack.c.l.b16 %v295
    %v1354 = vunpack.c.l.b16 %v296
    %v1355 = vunpack.c.l.b16 %v297
    %v1356 = vunpack.c.l.b16 %v298
    %v1357 = vunpack.c.l.b16 %v299
    %v1358 = vunpack.c.l.b16 %v300
    %v1359 = vunpack.c.l.b16 %v301
    %v1360 = vunpack.c.l.b16 %v302
    %v1361 = vunpack.c.l.b16 %v303
    %v1362 = vunpack.c.l.b16 %v304
    %v1363 = vunpack.c.l.b16 %v305
    %v1364 = vunpack.c.l.b16 %v306
    %v1365 = vunpack.c.l.b16 %v307
    %v1366 = vunpack.c.l.b16 %v308
    %v1367 = vunpack.c.l.b16 %v309
    %v1368 = vunpack.c.l.b16 %v310
    %v1369 = vunpack.c.l.b16 %v311
    %v1370 = vunpack.c.l.b16 %v312
    %v1371 = vunpack.c.l.b16 %v313
    %v1372 = vunpack.c.l.b16 %v314
    %v1373 = vunpack.c.l.b16 %v315
    %v1374 = vunpack.c.l.b16 %v316
    %v1375 = vunpack.c.l.b16 %v317
    %v1376 = vunpack.c.l.b16 %v318
    %v1377 = vunpack.c.l.b16 %v319
    %v1378 = vunpack.c.l.b16 %v320
    %v1379 = vunpack.c.l.b16 %v321
    %v1380 = vunpack.c.l.b16 %v322
    %v1381 = vunpack.c.l.b16 %v323
    %v1382 = vunpack.c.l.b16 %v324
    %v1383 = vunpack.c.l.b16 %v325
    %v1384 = vunpack.c.l.b16 %v326
    %v1385 = vunpack.c.l.b16 %v327
    %v1386 = vunpack.c.l.b16 %v328
    %v1387 = vunpack.c.l.b16 %v329
    %v1388 = vunpack.c.l.b16 %v330
    %v1389 = vunpack.c.l.b16 %v331
    %v1390 = vunpack.c.l.b16 %v332
    %v1391 = vunpack.c.l.b16 %v333
    %v1392 = vunpack.c.l.b16 %v334
    %v1393 = vunpack.c.l.b16 %v335
    %v1394 = vunpack.c.l.b16 %v336
    %v1395 = vunpack.c.l.b16 %v337
    %v1396 = vunpack.c.l.b16 %v338
    %v1397 = vunpack.c.l.b16 %v339
    %v1398 = vunpack.c.l.b16 %v340
    %v1399 = vunpack.c.l.b16 %v341
    %v1400 = vunpack.c.l.b16 %v342
    %v1401 = vunpack.c.l.b16 %v343
    %v1402 = vunpack.c.l.b16 %v344
    %v1403 = vunpack.c.l.b16 %v345
    %v1404 = vunpack.c.l.b16 %v346
    %v1405 = vunpack.c.l.b16 %v347
    %v1406 = vunpack.c.l.b16 %v348
    %v1407 = vunpack.c.l.b16 %v349
    %v1408 = vunpack.c.l.b16 %v350
    %v1409 = vunpack.c.l.b16 %v351
    %v1410 = vunpack.c.l.b16 %v352
    %v1411 = vunpack.c.l.b16 %v353
    %v1412 = vunpack.c.l.b16 %v354
    %v1413 = vunpack.c.l.b16 %v355
    %v1414 = vunpack.c.l.b16 %v356
    %v1415 = vunpack.c.l.b16 %v357
    %v1416 = vunpack.c.l.b16 %v358
    %v1417 = vunpack.c.l.b16 %v359
    %v1418 = vunpack.c.l.b16 %v360
    %v1419 = vunpack.c.l.b16 %v361
    %v1420 = vunpack.c.l.b16 %v362
    %v1421 = vunpack.c.l.b16 %v363
    %v1422 = vunpack.c.l.b16 %v364
    %v1423 = vunpack.c.l.b16 %v365
    %v1424 = vunpack.c.l.b16 %v366
    %v1425 = vunpack.c.l.b16 %v367
    %v1426 = vunpack.c.l.b16 %v368
    %v1427 = vunpack.c.l.b16 %v369
    %v1428 = vunpack.c.l.b16 %v370
    %v1429 = vunpack.c.l.b16 %v371
    %v1430 = vunpack.c.l.b16 %v372
    %v1431 = vunpack.c.l.b16 %v373
    %v1432 = vunpack.c.l.b16 %v374
    %v1433 = vunpack.c.l.b16 %v375
    %v1434 = vunpack.c.l.b16 %v376
    %v1435 = vunpack.c.l.b16 %v377
    %v1436 = vunpack.c.l.b16 %v378
    %v1437 = vunpack.c.l.b16 %v379
    %v1438 = vunpack.c.l.b16 %v380
    %v1439 = vunpack.c.l.b16 %v381
    %v1440 = vunpack.c.l.b16 %v382
    %v1441 = vunpack.c.l.b16 %v383
    %v1442 = vunpack.c.l.b16 %v384
    %v1443 = vunpack.c.l.b16 %v385
    %v1444 = vunpack.c.l.b16 %v386
    %v1445 = vunpack.c.l.b16 %v387
    %v1446 = vunpack.c.l.b16 %v388
    %v1447 = vunpack.c.l.b16 %v389
    %v1448 = vunpack.c.l.b16 %v390
    %v1449 = vunpack.c.l.b16 %v391
    %v1450 = vunpack.c.l.b16 %v392
    %v1451 = vunpack.c.l.b16 %v393
    %v1452 = vunpack.c.l.b16 %v394
    %v1453 = vunpack.c.l.b16 %v395
    %v1454 = vunpack.c.l.b16 %v396
    %v1455 = vunpack.c.l.b16 %v397
    %v1456 = vunpack.c.l.b16 %v398
    %v1457 = vunpack.c.l.b16 %v399
    %v1458 = vunpack.c.l.b16 %v400
    %v1459 = vunpack.c.l.b16 %v401
    %v1460 = vunpack.c.l.b16 %v402
    %v1461 = vunpack.c.l.b16 %v403
    %v1462 = vunpack.c.l.b16 %v404
    %v1463 = vunpack.c.l.b16 %v405
    %v1464 = vunpack.c.l.b16 %v406
    %v1465 = vunpack.c.l.b16 %v407
    %v1466 = vunpack.c.l.b16 %v408
    %v1467 = vunpack.c.l.b16 %v409
    %v1468 = vunpack.c.l.b16 %v410
    %v1469 = vunpack.c.l.b16 %v411
    %v1470 = vunpack.c.l.b16 %v412
    %v1471 = vunpack.c.l.b16 %v413
    %v1472 = vunpack.c.l.b16 %v414
    %v1473 = vunpack.c.l.b16 %v415
    %v1474 = vunpack.c.l.b16 %v416
    %v1475 = vunpack.c.l.b16 %v417
    %v1476 = vunpack.c.l.b16 %v418
    %v1477 = vunpack.c.l.b16 %v419
    %v1478 = vunpack.c.l.b16 %v420
    %v1479 = vunpack.c.l.b16 %v421
    %v1480 = vunpack.c.l.b16 %v422
    %v1481 = vunpack.c.l.b16 %v423
    %v1482 = vunpack.c.l.b16 %v424
    %v1483 = vunpack.c.l.b16 %v425
    %v1484 = vunpack.c.l.b16 %v426
    %v1485 = vunpack.c.l.b16 %v427
    %v1486 = vunpack.c.l.b16 %v428
    %v1487 = vunpack.c.l.b16 %v429
    %v1488 = vunpack.c.l.b16 %v430
    %v1489 = vunpack.c.l.b16 %v431
    %v1490 = vunpack.c.l.b16 %v432
    %v1491 = vunpack.c.l.b16 %v433
    %v1492 = vunpack.c.l.b16 %v434
    %v1493 = vunpack.c.l.b16 %v435
    %v1494 = vunpack.c.l.b16 %v436
    %v1495 = vunpack.c.l.b16 %v437
    %v1496 = vunpack.c.l.b16 %v438
    %v1497 = vunpack.c.l.b16 %v439
    %v1498 = vunpack.c.l.b16 %v440
    %v1499 = vunpack.c.l.b16 %v441
    %v1500 = vunpack.c.l.b16 %v442
    %v1501 = vunpack.c.l.b16 %v443
    %v1502 = vunpack.c.l.b16 %v444
    %v1503 = vunpack.c.l.b16 %v445
    %v1504 = vunpack.c.l.b16 %v446
    %v1505 = vunpack.c.l.b16 %v447
    %v1506 = vunpack.c.l.b16 %v448
    %v1507 = vunpack.c.l.b16 %v449
    %v1508 = vunpack.c.l.b16 %v450
    %v1509 = vunpack.c.l.b16 %v451
    %v1510 = vunpack.c.l.b16 %v452
    %v1511 = vunpack.c.l.b16 %v453
    %v1512 = vunpack.c.l.b16 %v454
    %v1513 = vunpack.c.l.b16 %v455
    %v1514 = vunpack.c.l.b16 %v456
    %v1515 = vunpack.c.l.b16 %v457
    %v1516 = vunpack.c.l.b16 %v458
    %v1517 = vunpack.c.l.b16 %v459
    %v1518 = vunpack.c.l.b16 %v460
    %v1519 = vunpack.c.l.b16 %v461
    %v1520 = vunpack.c.l.b16 %v462
    %v1521 = vunpack.c.l.b16 %v463
    %v1522 = vunpack.c.l.b16 %v464
    %v1523 = vunpack.c.l.b16 %v465
    %v1524 = vunpack.c.l.b16 %v466
    %v1525 = vunpack.c.l.b16 %v467
    %v1526 = vunpack.c.l.b16 %v468
    %v1527 = vunpack.c.l.b16 %v469
    %v1528 = vunpack.c.l.b16 %v470
    %v1529 = vunpack.c.l.b16 %v471
    %v1530 = vunpack.c.l.b16 %v472
    %v1531 = vunpack.c.l.b16 %v473
    %v1532 = vunpack.c.l.b16 %v474
    %v1533 = vunpack.c.l.b16 %v475
    %v1534 = vunpack.c.l.b16 %v476
    %v1535 = vunpack.c.l.b16 %v477
    %v1536 = vunpack.c.l.b16 %v478
    %v1537 = vunpack.c.l.b16 %v479
    %v1538 = vunpack.c.l.b16 %v480
    %v1539 = vunpack.c.l.b16 %v481
    %v1540 = vunpack.c.l.b16 %v482
    %v1541 = vunpack.c.l.b16 %v483
    %v1542 = vunpack.c.l.b16 %v484
    %v1543 = vunpack.c.l.b16 %v485
    %v1544 = vunpack.c.l.b16 %v486
    %v1545 = vunpack.c.l.b16 %v487
    %v1546 = vunpack.c.l.b16 %v488
    %v1547 = vunpack.c.l.b16 %v489
    %v1548 = vunpack.c.l.b16 %v490
    %v1549 = vunpack.c.l.b16 %v491
    %v1550 = vunpack.c.l.b16 %v492
    %v1551 = vunpack.c.l.b16 %v493
    %v1552 = vunpack.c.l.b16 %v494
    %v1553 = vunpack.c.l.b16 %v495
    %v1554 = vunpack.c.l.b16 %v496
    %v1555 = vunpack.c.l.b16 %v497
    %v1556 = vunpack.c.l.b16 %v498
    %v1557 = vunpack.c.l.b16 %v499
    %v1558 = vunpack.c.l.b16 %v500
    %v1559 = vunpack.c.l.b16 %v501
    %v1560 = vunpack.c.l.b16 %v502
    %v1561 = vunpack.c.l.b16 %v503
    %v1562 = vunpack.c.l.b16 %v504
    %v1563 = vunpack.c.l.b16 %v505
    %v1564 = vunpack.c.l.b16 %v506
    %v1565 = vunpack.c.l.b16 %v507
    %v1566 = vunpack.c.l.b16 %v508
    %v1567 = vunpack.c.l.b16 %v509
    %v1568 = vunpack.c.l.b16 %v510
    %v1569 = vunpack.c.l.b16 %v511
    %v1570 = vunpack.c.l.b16 %v512
    %v1571 = vunpack.c.l.b16 %v513
    %v1572 = vunpack.c.l.b16 %v514
    %v1573 = vunpack.c.l.b16 %v515
    %v1574 = vunpack.c.l.b16 %v516
    %v1575 = vunpack.c.l.b16 %v517
    %v1576 = vunpack.c.l.b16 %v518
    %v1577 = vunpack.c.l.b16 %v519
    %v1578 = vunpack.c.l.b16 %v520
    %v1579 = vunpack.c.l.b16 %v521
    %v1580 = vunpack.c.l.b16 %v522
    %v1581 = vunpack.c.l.b16 %v523
    %v1582 = vunpack.c.l.b16 %v524
    %v1583 = vunpack.c.l.b16 %v525
    %v1584 = vunpack.c.l.b16 %v526
    %v1585 = vunpack.c.l.b16 %v527
    %v1586 = vunpack.c.l.b16 %v528
    %v1587 = vunpack.c.l.b16 %v529
    %v1588 = vunpack.c.l.b16 %v530
    %v1589 = vunpack.c.l.b16 %v531
    %v1590 = vunpack.c.l.b16 %v532
    %v1591 = vunpack.c.l.b16 %v533
    %v1592 = vunpack.c.l.b16 %v534
    %v1593 = vunpack.c.l.b16 %v535
    %v1594 = vunpack.c.l.b16 %v536
    %v1595 = vunpack.c.l.b16 %v537
    %v1596 = vunpack.c.l.b16 %v538
    %v1597 = vpack.c.b16 %v1086, %v1085
    %v1598 = vpack.c.b16 %v1088, %v1087
    %v1599 = vpack.c.b16 %v1090, %v1089
    %v1600 = vpack.c.b16 %v1092, %v1091
    %v1601 = vpack.c.b16 %v1094, %v1093
    %v1602 = vpack.c.b16 %v1096, %v1095
    %v1603 = vpack.c.b16 %v1098, %v1097
    %v1604 = vpack.c.b16 %v1100, %v1099
    %v1605 = vpack.c.b16 %v1102, %v1101
    %v1606 = vpack.c.b16 %v1104, %v1103
    %v1607 = vpack.c.b16 %v1106, %v1105
    %v1608 = vpack.c.b16 %v1108, %v1107
    %v1609 = vpack.c.b16 %v1110, %v1109
    %v1610 = vpack.c.b16 %v1112, %v1111
    %v1611 = vpack.c.b16 %v1114, %v1113
    %v1612 = vpack.c.b16 %v1116, %v1115
    %v1613 = vpack.c.b16 %v1118, %v1117
    %v1614 = vpack.c.b16 %v1120, %v1119
    %v1615 = vpack.c.b16 %v1122, %v1121
    %v1616 = vpack.c.b16 %v1124, %v1123
    %v1617 = vpack.c.b16 %v1126, %v1125
    %v1618 = vpack.c.b16 %v1128, %v1127
    %v1619 = vpack.c.b16 %v1130, %v1129
    %v1620 = vpack.c.b16 %v1132, %v1131
    %v1621 = vpack.c.b16 %v1134, %v1133
    %v1622 = vpack.c.b16 %v1136, %v1135
    %v1623 = vpack.c.b16 %v1138, %v1137
    %v1624 = vpack.c.b16 %v1140, %v1139
    %v1625 = vpack.c.b16 %v1142, %v1141
    %v1626 = vpack.c.b16 %v1144, %v1143
    %v1627 = vpack.c.b16 %v1146, %v1145
    %v1628 = vpack.c.b16 %v1148, %v1147
    %v1629 = vpack.c.b16 %v1150, %v1149
    %v1630 = vpack.c.b16 %v1152, %v1151
    %v1631 = vpack.c.b16 %v1154, %v1153
    %v1632 = vpack.c.b16 %v1156, %v1155
    %v1633 = vpack.c.b16 %v1158, %v1157
    %v1634 = vpack.c.b16 %v1160, %v1159
    %v1635 = vpack.c.b16 %v1162, %v1161
    %v1636 = vpack.c.b16 %v1164, %v1163
    %v1637 = vpack.c.b16 %v1166, %v1165
    %v1638 = vpack.c.b16 %v1168, %v1167
    %v1639 = vpack.c.b16 %v1170, %v1169
    %v1640 = vpack.c.b16 %v1172, %v1171
    %v1641 = vpack.c.b16 %v1174, %v1173
    %v1642 = vpack.c.b16 %v1176, %v1175
    %v1643 = vpack.c.b16 %v1178, %v1177
    %v1644 = vpack.c.b16 %v1180, %v1179
    %v1645 = vpack.c.b16 %v1182, %v1181
    %v1646 = vpack.c.b16 %v1184, %v1183
    %v1647 = vpack.c.b16 %v1186, %v1185
    %v1648 = vpack.c.b16 %v1188, %v1187
    %v1649 = vpack.c.b16 %v1190, %v1189
    %v1650 = vpack.c.b16 %v1192, %v1191
    %v1651 = vpack.c.b16 %v1194, %v1193
    %v1652 = vpack.c.b16 %v1196, %v1195
    %v1653 = vpack.c.b16 %v1198, %v1197
    %v1654 = vpack.c.b16 %v1200, %v1199
    %v1655 = vpack.c.b16 %v1202, %v1201
    %v1656 = vpack.c.b16 %v1204, %v1203
    %v1657 = vpack.c.b16 %v1206, %v1205
    %v1658 = vpack.c.b16 %v1208, %v1207
    %v1659 = vpack.c.b16 %v1210, %v1209
    %v1660 = vpack.c.b16 %v1212, %v1211
    %v1661 = vpack.c.b16 %v1214, %v1213
    %v1662 = vpack.c.b16 %v1216, %v1215
    %v1663 = vpack.c.b16 %v1218, %v1217
    %v1664 = vpack.c.b16 %v1220, %v1219
    %v1665 = vpack.c.b16 %v1222, %v1221
    %v1666 = vpack.c.b16 %v1224, %v1223
    %v1667 = vpack.c.b16 %v1226, %v1225
    %v1668 = vpack.c.b16 %v1228, %v1227
    %v1669 = vpack.c.b16 %v1230, %v1229
    %v1670 = vpack.c.b16 %v1232, %v1231
    %v1671 = vpack.c.b16 %v1234, %v1233
    %v1672 = vpack.c.b16 %v1236, %v1235
    %v1673 = vpack.c.b16 %v1238, %v1237
    %v1674 = vpack.c.b16 %v1240, %v1239
    %v1675 = vpack.c.b16 %v1242, %v1241
    %v1676 = vpack.c.b16 %v1244, %v1243
    %v1677 = vpack.c.b16 %v1246, %v1245
    %v1678 = vpack.c.b16 %v1248, %v1247
    %v1679 = vpack.c.b16 %v1250, %v1249
    %v1680 = vpack.c.b16 %v1252, %v1251
    %v1681 = vpack.c.b16 %v1254, %v1253
    %v1682 = vpack.c.b16 %v1256, %v1255
    %v1683 = vpack.c.b16 %v1258, %v1257
    %v1684 = vpack.c.b16 %v1260, %v1259
    %v1685 = vpack.c.b16 %v1262, %v1261
    %v1686 = vpack.c.b16 %v1264, %v1263
    %v1687 = vpack.c.b16 %v1266, %v1265
    %v1688 = vpack.c.b16 %v1268, %v1267
    %v1689 = vpack.c.b16 %v1270, %v1269
    %v1690 = vpack.c.b16 %v1272, %v1271
    %v1691 = vpack.c.b16 %v1274, %v1273
    %v1692 = vpack.c.b16 %v1276, %v1275
    %v1693 = vpack.c.b16 %v1278, %v1277
    %v1694 = vpack.c.b16 %v1280, %v1279
    %v1695 = vpack.c.b16 %v1282, %v1281
    %v1696 = vpack.c.b16 %v1284, %v1283
    %v1697 = vpack.c.b16 %v1286, %v1285
    %v1698 = vpack.c.b16 %v1288, %v1287
    %v1699 = vpack.c.b16 %v1290, %v1289
    %v1700 = vpack.c.b16 %v1292, %v1291
    %v1701 = vpack.c.b16 %v1294, %v1293
    %v1702 = vpack.c.b16 %v1296, %v1295
    %v1703 = vpack.c.b16 %v1298, %v1297
    %v1704 = vpack.c.b16 %v1300, %v1299
    %v1705 = vpack.c.b16 %v1302, %v1301
    %v1706 = vpack.c.b16 %v1304, %v1303
    %v1707 = vpack.c.b16 %v1306, %v1305
    %v1708 = vpack.c.b16 %v1308, %v1307
    %v1709 = vpack.c.b16 %v1310, %v1309
    %v1710 = vpack.c.b16 %v1312, %v1311
    %v1711 = vpack.c.b16 %v1314, %v1313
    %v1712 = vpack.c.b16 %v1316, %v1315
    %v1713 = vpack.c.b16 %v1318, %v1317
    %v1714 = vpack.c.b16 %v1320, %v1319
    %v1715 = vpack.c.b16 %v1322, %v1321
    %v1716 = vpack.c.b16 %v1324, %v1323
    %v1717 = vpack.c.b16 %v1326, %v1325
    %v1718 = vpack.c.b16 %v1328, %v1327
    %v1719 = vpack.c.b16 %v1330, %v1329
    %v1720 = vpack.c.b16 %v1332, %v1331
    %v1721 = vpack.c.b16 %v1334, %v1333
    %v1722 = vpack.c.b16 %v1336, %v1335
    %v1723 = vpack.c.b16 %v1338, %v1337
    %v1724 = vpack.c.b16 %v1340, %v1339
    %v1725 = vpack.c.b16 %v1342, %v1341
    %v1726 = vpack.c.b16 %v1344, %v1343
    %v1727 = vpack.c.b16 %v1346, %v1345
    %v1728 = vpack.c.b16 %v1348, %v1347
    %v1729 = vpack.c.b16 %v1350, %v1349
    %v1730 = vpack.c.b16 %v1352, %v1351
    %v1731 = vpack.c.b16 %v1354, %v1353
    %v1732 = vpack.c.b16 %v1356, %v1355
    %v1733 = vpack.c.b16 %v1358, %v1357
    %v1734 = vpack.c.b16 %v1360, %v1359
    %v1735 = vpack.c.b16 %v1362, %v1361
    %v1736 = vpack.c.b16 %v1364, %v1363
    %v1737 = vpack.c.b16 %v1366, %v1365
    %v1738 = vpack.c.b16 %v1368, %v1367
    %v1739 = vpack.c.b16 %v1370, %v1369
    %v1740 = vpack.c.b16 %v1372, %v1371
    %v1741 = vpack.c.b16 %v1374, %v1373
    %v1742 = vpack.c.b16 %v1376, %v1375
    %v1743 = vpack.c.b16 %v1378, %v1377
    %v1744 = vpack.c.b16 %v1380, %v1379
    %v1745 = vpack.c.b16 %v1382, %v1381
    %v1746 = vpack.c.b16 %v1384, %v1383
    %v1747 = vpack.c.b16 %v1386, %v1385
    %v1748 = vpack.c.b16 %v1388, %v1387
    %v1749 = vpack.c.b16 %v1390, %v1389
    %v1750 = vpack.c.b16 %v1392, %v1391
    %v1751 = vpack.c.b16 %v1394, %v1393
    %v1752 = vpack.c.b16 %v1396, %v1395
    %v1753 = vpack.c.b16 %v1398, %v1397
    %v1754 = vpack.c.b16 %v1400, %v1399
    %v1755 = vpack.c.b16 %v1402, %v1401
    %v1756 = vpack.c.b16 %v1404, %v1403
    %v1757 = vpack.c.b16 %v1406, %v1405
    %v1758 = vpack.c.b16 %v1408, %v1407
    %v1759 = vpack.c.b16 %v1410, %v1409
    %v1760 = vpack.c.b16 %v1412, %v1411
    %v1761 = vpack.c.b16 %v1414, %v1413
    %v1762 = vpack.c.b16 %v1416, %v1415
    %v1763 = vpack.c.b16 %v1418, %v1417
    %v1764 = vpack.c.b16 %v1420, %v1419
    %v1765 = vpack.c.b16 %v1422, %v1421
    %v1766 = vpack.c.b16 %v1424, %v1423
    %v1767 = vpack.c.b16 %v1426, %v1425
    %v1768 = vpack.c.b16 %v1428, %v1427
    %v1769 = vpack.c.b16 %v1430, %v1429
    %v1770 = vpack.c.b16 %v1432, %v1431
    %v1771 = vpack.c.b16 %v1434, %v1433
    %v1772 = vpack.c.b16 %v1436, %v1435
    %v1773 = vpack.c.b16 %v1438, %v1437
    %v1774 = vpack.c.b16 %v1440, %v1439
    %v1775 = vpack.c.b16 %v1442, %v1441
    %v1776 = vpack.c.b16 %v1444, %v1443
    %v1777 = vpack.c.b16 %v1446, %v1445
    %v1778 = vpack.c.b16 %v1448, %v1447
    %v1779 = vpack.c.b16 %v1450, %v1449
    %v1780 = vpack.c.b16 %v1452, %v1451
    %v1781 = vpack.c.b16 %v1454, %v1453
    %v1782 = vpack.c.b16 %v1456, %v1455
    %v1783 = vpack.c.b16 %v1458, %v1457
    %v1784 = vpack.c.b16 %v1460, %v1459
    %v1785 = vpack.c.b16 %v1462, %v1461
    %v1786 = vpack.c.b16 %v1464, %v1463
    %v1787 = vpack.c.b16 %v1466, %v1465
    %v1788 = vpack.c.b16 %v1468, %v1467
    %v1789 = vpack.c.b16 %v1470, %v1469
    %v1790 = vpack.c.b16 %v1472, %v1471
    %v1791 = vpack.c.b16 %v1474, %v1473
    %v1792 = vpack.c.b16 %v1476, %v1475
    %v1793 = vpack.c.b16 %v1478, %v1477
    %v1794 = vpack.c.b16 %v1480, %v1479
    %v1795 = vpack.c.b16 %v1482, %v1481
    %v1796 = vpack.c.b16 %v1484, %v1483
    %v1797 = vpack.c.b16 %v1486, %v1485
    %v1798 = vpack.c.b16 %v1488, %v1487
    %v1799 = vpack.c.b16 %v1490, %v1489
    %v1800 = vpack.c.b16 %v1492, %v1491
    %v1801 = vpack.c.b16 %v1494, %v1493
    %v1802 = vpack.c.b16 %v1496, %v1495
    %v1803 = vpack.c.b16 %v1498, %v1497
    %v1804 = vpack.c.b16 %v1500, %v1499
    %v1805 = vpack.c.b16 %v1502, %v1501
    %v1806 = vpack.c.b16 %v1504, %v1503
    %v1807 = vpack.c.b16 %v1506, %v1505
    %v1808 = vpack.c.b16 %v1508, %v1507
    %v1809 = vpack.c.b16 %v1510, %v1509
    %v1810 = vpack.c.b16 %v1512, %v1511
    %v1811 = vpack.c.b16 %v1514, %v1513
    %v1812 = vpack.c.b16 %v1516, %v1515
    %v1813 = vpack.c.b16 %v1518, %v1517
    %v1814 = vpack.c.b16 %v1520, %v1519
    %v1815 = vpack.c.b16 %v1522, %v1521
    %v1816 = vpack.c.b16 %v1524, %v1523
    %v1817 = vpack.c.b16 %v1526, %v1525
    %v1818 = vpack.c.b16 %v1528, %v1527
    %v1819 = vpack.c.b16 %v1530, %v1529
    %v1820 = vpack.c.b16 %v1532, %v1531
    %v1821 = vpack.c.b16 %v1534, %v1533
    %v1822 = vpack.c.b16 %v1536, %v1535
    %v1823 = vpack.c.b16 %v1538, %v1537
    %v1824 = vpack.c.b16 %v1540, %v1539
    %v1825 = vpack.c.b16 %v1542, %v1541
    %v1826 = vpack.c.b16 %v1544, %v1543
    %v1827 = vpack.c.b16 %v1546, %v1545
    %v1828 = vpack.c.b16 %v1548, %v1547
    %v1829 = vpack.c.b16 %v1550, %v1549
    %v1830 = vpack.c.b16 %v1552, %v1551
    %v1831 = vpack.c.b16 %v1554, %v1553
    %v1832 = vpack.c.b16 %v1556, %v1555
    %v1833 = vpack.c.b16 %v1558, %v1557
    %v1834 = vpack.c.b16 %v1560, %v1559
    %v1835 = vpack.c.b16 %v1562, %v1561
    %v1836 = vpack.c.b16 %v1564, %v1563
    %v1837 = vpack.c.b16 %v1566, %v1565
    %v1838 = vpack.c.b16 %v1568, %v1567
    %v1839 = vpack.c.b16 %v1570, %v1569
    %v1840 = vpack.c.b16 %v1572, %v1571
    %v1841 = vpack.c.b16 %v1574, %v1573
    %v1842 = vpack.c.b16 %v1576, %v1575
    %v1843 = vpack.c.b16 %v1578, %v1577
    %v1844 = vpack.c.b16 %v1580, %v1579
    %v1845 = vpack.c.b16 %v1582, %v1581
    %v1846 = vpack.c.b16 %v1584, %v1583
    %v1847 = vpack.c.b16 %v1586, %v1585
    %v1848 = vpack.c.b16 %v1588, %v1587
    %v1849 = vpack.c.b16 %v1590, %v1589
    %v1850 = vpack.c.b16 %v1592, %v1591
    %v1851 = vpack.c.b16 %v1594, %v1593
    %v1852 = vpack.c.b16 %v1596, %v1595
    %vm1853 = vcmask 130048
    %v1855 = vsel %vm1853, %v571, 0
    %v1858 = vsel %vm1853, %v572, 0
    %v1861 = vsel %vm1853, %v1597, 0
    %v1864 = vsel %vm1853, %v1598, 0
    %v1867 = vsel %vm1853, %v1599, 0
    %v1870 = vsel %vm1853, %v1600, 0
    %v1873 = vsel %vm1853, %v1601, 0
    %v1876 = vsel %vm1853, %v1602, 0
    %v1879 = vsel %vm1853, %v1603, 0
    %v1882 = vsel %vm1853, %v1604, 0
    %v1885 = vsel %vm1853, %v1605, 0
    %v1888 = vsel %vm1853, %v1606, 0
    %v1891 = vsel %vm1853, %v1607, 0
    %v1894 = vsel %vm1853, %v1608, 0
    %v1897 = vsel %vm1853, %v1609, 0
    %v1900 = vsel %vm1853, %v1610, 0
    %v1903 = vsel %vm1853, %v1611, 0
    %v1906 = vsel %vm1853, %v1612, 0
    %v1909 = vsel %vm1853, %v1613, 0
    %v1912 = vsel %vm1853, %v1614, 0
    %v1915 = vsel %vm1853, %v1615, 0
    %v1918 = vsel %vm1853, %v1616, 0
    %v1921 = vsel %vm1853, %v1617, 0
    %v1924 = vsel %vm1853, %v1618, 0
    %v1927 = vsel %vm1853, %v1619, 0
    %v1930 = vsel %vm1853, %v1620, 0
    %v1933 = vsel %vm1853, %v1621, 0
    %v1936 = vsel %vm1853, %v1622, 0
    %v1939 = vsel %vm1853, %v1623, 0
    %v1942 = vsel %vm1853, %v1624, 0
    %v1945 = vsel %vm1853, %v1625, 0
    %v1948 = vsel %vm1853, %v1626, 0
    %v1951 = vsel %vm1853, %v1627, 0
    %v1954 = vsel %vm1853, %v1628, 0
    %v1957 = vsel %vm1853, %v1629, 0
    %v1960 = vsel %vm1853, %v1630, 0
    %v1963 = vsel %vm1853, %v1631, 0
    %v1966 = vsel %vm1853, %v1632, 0
    %v1969 = vsel %vm1853, %v1633, 0
    %v1972 = vsel %vm1853, %v1634, 0
    %v1975 = vsel %vm1853, %v1635, 0
    %v1978 = vsel %vm1853, %v1636, 0
    %v1981 = vsel %vm1853, %v1637, 0
    %v1984 = vsel %vm1853, %v1638, 0
    %v1987 = vsel %vm1853, %v1639, 0
    %v1990 = vsel %vm1853, %v1640, 0
    %v1993 = vsel %vm1853, %v1641, 0
    %v1996 = vsel %vm1853, %v1642, 0
    %v1999 = vsel %vm1853, %v1643, 0
    %v2002 = vsel %vm1853, %v1644, 0
    %v2005 = vsel %vm1853, %v1645, 0
    %v2008 = vsel %vm1853, %v1646, 0
    %v2011 = vsel %vm1853, %v1647, 0
    %v2014 = vsel %vm1853, %v1648, 0
    %v2017 = vsel %vm1853, %v1649, 0
    %v2020 = vsel %vm1853, %v1650, 0
    %v2023 = vsel %vm1853, %v1651, 0
    %v2026 = vsel %vm1853, %v1652, 0
    %v2029 = vsel %vm1853, %v1653, 0
    %v2032 = vsel %vm1853, %v1654, 0
    %v2035 = vsel %vm1853, %v1655, 0
    %v2038 = vsel %vm1853, %v1656, 0
    %v2041 = vsel %vm1853, %v1657, 0
    %v2044 = vsel %vm1853, %v1658, 0
    %v2047 = vsel %vm1853, %v1659, 0
    %v2050 = vsel %vm1853, %v1660, 0
    %v2053 = vsel %vm1853, %v1661, 0
    %v2056 = vsel %vm1853, %v1662, 0
    %v2059 = vsel %vm1853, %v1663, 0
    %v2062 = vsel %vm1853, %v1664, 0
    %v2065 = vsel %vm1853, %v1665, 0
    %v2068 = vsel %vm1853, %v1666, 0
    %v2071 = vsel %vm1853, %v1667, 0
    %v2074 = vsel %vm1853, %v1668, 0
    %v2077 = vsel %vm1853, %v1669, 0
    %v2080 = vsel %vm1853, %v1670, 0
    %v2083 = vsel %vm1853, %v1671, 0
    %v2086 = vsel %vm1853, %v1672, 0
    %v2089 = vsel %vm1853, %v1673, 0
    %v2092 = vsel %vm1853, %v1674, 0
    %v2095 = vsel %vm1853, %v1675, 0
    %v2098 = vsel %vm1853, %v1676, 0
    %v2101 = vsel %vm1853, %v1677, 0
    %v2104 = vsel %vm1853, %v1678, 0
    %v2107 = vsel %vm1853, %v1679, 0
    %v2110 = vsel %vm1853, %v1680, 0
    %v2113 = vsel %vm1853, %v1681, 0
    %v2116 = vsel %vm1853, %v1682, 0
    %v2119 = vsel %vm1853, %v1683, 0
    %v2122 = vsel %vm1853, %v1684, 0
    %v2125 = vsel %vm1853, %v1685, 0
    %v2128 = vsel %vm1853, %v1686, 0
    %v2131 = vsel %vm1853, %v1687, 0
    %v2134 = vsel %vm1853, %v1688, 0
    %v2137 = vsel %vm1853, %v1689, 0
    %v2140 = vsel %vm1853, %v1690, 0
    %v2143 = vsel %vm1853, %v1691, 0
    %v2146 = vsel %vm1853, %v1692, 0
    %v2149 = vsel %vm1853, %v1693, 0
    %v2152 = vsel %vm1853, %v1694, 0
    %v2155 = vsel %vm1853, %v1695, 0
    %v2158 = vsel %vm1853, %v1696, 0
    %v2161 = vsel %vm1853, %v1697, 0
    %v2164 = vsel %vm1853, %v1698, 0
    %v2167 = vsel %vm1853, %v1699, 0
    %v2170 = vsel %vm1853, %v1700, 0
    %v2173 = vsel %vm1853, %v1701, 0
    %v2176 = vsel %vm1853, %v1702, 0
    %v2179 = vsel %vm1853, %v1703, 0
    %v2182 = vsel %vm1853, %v1704, 0
    %v2185 = vsel %vm1853, %v1705, 0
    %v2188 = vsel %vm1853, %v1706, 0
    %v2191 = vsel %vm1853, %v1707, 0
    %v2194 = vsel %vm1853, %v1708, 0
    %v2197 = vsel %vm1853, %v1709, 0
    %v2200 = vsel %vm1853, %v1710, 0
    %v2203 = vsel %vm1853, %v1711, 0
    %v2206 = vsel %vm1853, %v1712, 0
    %v2209 = vsel %vm1853, %v1713, 0
    %v2212 = vsel %vm1853, %v1714, 0
    %v2215 = vsel %vm1853, %v1715, 0
    %v2218 = vsel %vm1853, %v1716, 0
    %v2221 = vsel %vm1853, %v1717, 0
    %v2224 = vsel %vm1853, %v1718, 0
    %v2227 = vsel %vm1853, %v1719, 0
    %v2230 = vsel %vm1853, %v1720, 0
    %v2233 = vsel %vm1853, %v1721, 0
    %v2236 = vsel %vm1853, %v1722, 0
    %v2239 = vsel %vm1853, %v1723, 0
    %v2242 = vsel %vm1853, %v1724, 0
    %v2245 = vsel %vm1853, %v1725, 0
    %v2248 = vsel %vm1853, %v1726, 0
    %v2251 = vsel %vm1853, %v1727, 0
    %v2254 = vsel %vm1853, %v1728, 0
    %v2257 = vsel %vm1853, %v1729, 0
    %v2260 = vsel %vm1853, %v1730, 0
    %v2263 = vsel %vm1853, %v1731, 0
    %v2266 = vsel %vm1853, %v1732, 0
    %v2269 = vsel %vm1853, %v1733, 0
    %v2272 = vsel %vm1853, %v1734, 0
    %v2275 = vsel %vm1853, %v1735, 0
    %v2278 = vsel %vm1853, %v1736, 0
    %v2281 = vsel %vm1853, %v1737, 0
    %v2284 = vsel %vm1853, %v1738, 0
    %v2287 = vsel %vm1853, %v1739, 0
    %v2290 = vsel %vm1853, %v1740, 0
    %v2293 = vsel %vm1853, %v1741, 0
    %v2296 = vsel %vm1853, %v1742, 0
    %v2299 = vsel %vm1853, %v1743, 0
    %v2302 = vsel %vm1853, %v1744, 0
    %v2305 = vsel %vm1853, %v1745, 0
    %v2308 = vsel %vm1853, %v1746, 0
    %v2311 = vsel %vm1853, %v1747, 0
    %v2314 = vsel %vm1853, %v1748, 0
    %v2317 = vsel %vm1853, %v1749, 0
    %v2320 = vsel %vm1853, %v1750, 0
    %v2323 = vsel %vm1853, %v1751, 0
    %v2326 = vsel %vm1853, %v1752, 0
    %v2329 = vsel %vm1853, %v1753, 0
    %v2332 = vsel %vm1853, %v1754, 0
    %v2335 = vsel %vm1853, %v1755, 0
    %v2338 = vsel %vm1853, %v1756, 0
    %v2341 = vsel %vm1853, %v1757, 0
    %v2344 = vsel %vm1853, %v1758, 0
    %v2347 = vsel %vm1853, %v1759, 0
    %v2350 = vsel %vm1853, %v1760, 0
    %v2353 = vsel %vm1853, %v1761, 0
    %v2356 = vsel %vm1853, %v1762, 0
    %v2359 = vsel %vm1853, %v1763, 0
    %v2362 = vsel %vm1853, %v1764, 0
    %v2365 = vsel %vm1853, %v1765, 0
    %v2368 = vsel %vm1853, %v1766, 0
    %v2371 = vsel %vm1853, %v1767, 0
    %v2374 = vsel %vm1853, %v1768, 0
    %v2377 = vsel %vm1853, %v1769, 0
    %v2380 = vsel %vm1853, %v1770, 0
    %v2383 = vsel %vm1853, %v1771, 0
    %v2386 = vsel %vm1853, %v1772, 0
    %v2389 = vsel %vm1853, %v1773, 0
    %v2392 = vsel %vm1853, %v1774, 0
    %v2395 = vsel %vm1853, %v1775, 0
    %v2398 = vsel %vm1853, %v1776, 0
    %v2401 = vsel %vm1853, %v1777, 0
    %v2404 = vsel %vm1853, %v1778, 0
    %v2407 = vsel %vm1853, %v1779, 0
    %v2410 = vsel %vm1853, %v1780, 0
    %v2413 = vsel %vm1853, %v1781, 0
    %v2416 = vsel %vm1853, %v1782, 0
    %v2419 = vsel %vm1853, %v1783, 0
    %v2422 = vsel %vm1853, %v1784, 0
    %v2425 = vsel %vm1853, %v1785, 0
    %v2428 = vsel %vm1853, %v1786, 0
    %v2431 = vsel %vm1853, %v1787, 0
    %v2434 = vsel %vm1853, %v1788, 0
    %v2437 = vsel %vm1853, %v1789, 0
    %v2440 = vsel %vm1853, %v1790, 0
    %v2443 = vsel %vm1853, %v1791, 0
    %v2446 = vsel %vm1853, %v1792, 0
    %v2449 = vsel %vm1853, %v1793, 0
    %v2452 = vsel %vm1853, %v1794, 0
    %v2455 = vsel %vm1853, %v1795, 0
    %v2458 = vsel %vm1853, %v1796, 0
    %v2461 = vsel %vm1853, %v1797, 0
    %v2464 = vsel %vm1853, %v1798, 0
    %v2467 = vsel %vm1853, %v1799, 0
    %v2470 = vsel %vm1853, %v1800, 0
    %v2473 = vsel %vm1853, %v1801, 0
    %v2476 = vsel %vm1853, %v1802, 0
    %v2479 = vsel %vm1853, %v1803, 0
    %v2482 = vsel %vm1853, %v1804, 0
    %v2485 = vsel %vm1853, %v1805, 0
    %v2488 = vsel %vm1853, %v1806, 0
    %v2491 = vsel %vm1853, %v1807, 0
    %v2494 = vsel %vm1853, %v1808, 0
    %v2497 = vsel %vm1853, %v1809, 0
    %v2500 = vsel %vm1853, %v1810, 0
    %v2503 = vsel %vm1853, %v1811, 0
    %v2506 = vsel %vm1853, %v1812, 0
    %v2509 = vsel %vm1853, %v1813, 0
    %v2512 = vsel %vm1853, %v1814, 0
    %v2515 = vsel %vm1853, %v1815, 0
    %v2518 = vsel %vm1853, %v1816, 0
    %v2521 = vsel %vm1853, %v1817, 0
    %v2524 = vsel %vm1853, %v1818, 0
    %v2527 = vsel %vm1853, %v1819, 0
    %v2530 = vsel %vm1853, %v1820, 0
    %v2533 = vsel %vm1853, %v1821, 0
    %v2536 = vsel %vm1853, %v1822, 0
    %v2539 = vsel %vm1853, %v1823, 0
    %v2542 = vsel %vm1853, %v1824, 0
    %v2545 = vsel %vm1853, %v1825, 0
    %v2548 = vsel %vm1853, %v1826, 0
    %v2551 = vsel %vm1853, %v1827, 0
    %v2554 = vsel %vm1853, %v1828, 0
    %v2557 = vsel %vm1853, %v1829, 0
    %v2560 = vsel %vm1853, %v1830, 0
    %v2563 = vsel %vm1853, %v1831, 0
    %v2566 = vsel %vm1853, %v1832, 0
    %v2569 = vsel %vm1853, %v1833, 0
    %v2572 = vsel %vm1853, %v1834, 0
    %v2575 = vsel %vm1853, %v1835, 0
    %v2578 = vsel %vm1853, %v1836, 0
    %v2581 = vsel %vm1853, %v1837, 0
    %v2584 = vsel %vm1853, %v1838, 0
    %v2587 = vsel %vm1853, %v1839, 0
    %v2590 = vsel %vm1853, %v1840, 0
    %v2593 = vsel %vm1853, %v1841, 0
    %v2596 = vsel %vm1853, %v1842, 0
    %v2599 = vsel %vm1853, %v1843, 0
    %v2602 = vsel %vm1853, %v1844, 0
    %v2605 = vsel %vm1853, %v1845, 0
    %v2608 = vsel %vm1853, %v1846, 0
    %v2611 = vsel %vm1853, %v1847, 0
    %v2614 = vsel %vm1853, %v1848, 0
    %v2617 = vsel %vm1853, %v1849, 0
    %v2620 = vsel %vm1853, %v1850, 0
    %v2623 = vsel %vm1853, %v1851, 0
    %v2626 = vsel %vm1853, %v1852, 0
    %2628 = vmatprep.subr.bf16.mxu0 0
    %2629 = vmatpush1.bf16.xpose.msra.mxu0 %v1882
    %2630 = vmatprep.subr.bf16.mxu0 0
    %2631 = vmatpush1.bf16.xpose.msra.mxu0 %v1879
    %2632 = vmatprep.subr.bf16.mxu0 0
    %2633 = vmatpush1.bf16.xpose.msra.mxu0 %v1876
    %2634 = vmatprep.subr.bf16.mxu0 0
    %2635 = vmatpush1.bf16.xpose.msra.mxu0 %v1873
    %2636 = vmatprep.subr.bf16.mxu0 0
    %2637 = vmatpush1.bf16.xpose.msra.mxu0 %v1870
    %2638 = vmatprep.subr.bf16.mxu0 0
    %2639 = vmatpush1.bf16.xpose.msra.mxu0 %v1867
    %2640 = vmatprep.subr.bf16.mxu0 0
    %2641 = vmatpush1.bf16.xpose.msra.mxu0 %v1864
    %2642 = vmatprep.subr.bf16.mxu0 0
    %2643 = vmatpush1.bf16.xpose.msra.mxu0 %v1861
    %2644 = vmatprep.subr.bf16.mxu0 0
    %2645 = vmatpush2.bf16.xpose.msra.mxu0 %v1906
    %2646 = vmatprep.subr.bf16.mxu0 0
    %2647 = vmatpush2.bf16.xpose.msra.mxu0 %v1903
    %2648 = vmatprep.subr.bf16.mxu0 0
    %2649 = vmatpush2.bf16.xpose.msra.mxu0 %v1900
    %2650 = vmatprep.subr.bf16.mxu0 0
    %2651 = vmatpush2.bf16.xpose.msra.mxu0 %v1897
    %2652 = vmatprep.subr.bf16.mxu0 0
    %2653 = vmatpush2.bf16.xpose.msra.mxu0 %v1894
    %2654 = vmatprep.subr.bf16.mxu0 0
    %2655 = vmatpush2.bf16.xpose.msra.mxu0 %v1891
    %2656 = vmatprep.subr.bf16.mxu0 0
    %2657 = vmatpush2.bf16.xpose.msra.mxu0 %v1888
    %2658 = vmatprep.subr.bf16.mxu0 0
    %2659 = vmatpush2.bf16.xpose.msra.mxu0 %v1885
    %2660 = vmatprep.mubr.bf16.mxu0 0
    %2661 = vmatmul.mubr.bf16.gmra.mxu0 %v1855
    %v2662 = vpop.f32.mrf.mxu0
    %v2663 = vadd.f32 %v546, %v2662
    %v2664 = vpop.f32.mrf.mxu0
    %v2665 = vadd.f32 %v546, %v2664
    %v2666 = vpop.f32.mrf.mxu0
    %v2667 = vadd.f32 %v551, %v2666
    %v2668 = vpop.f32.mrf.mxu0
    %v2669 = vadd.f32 %v551, %v2668
    %2670 = vmatprep.mubr.bf16.mxu0 0
    %2671 = vmatmul.mubr.bf16.gmra.mxu0 %v1858
    %v2672 = vpop.f32.mrf.mxu0
    %v2673 = vadd.f32 %v556, %v2672
    %v2674 = vpop.f32.mrf.mxu0
    %v2675 = vadd.f32 %v556, %v2674
    %v2676 = vpop.f32.mrf.mxu0
    %v2677 = vadd.f32 %v561, %v2676
    %v2678 = vpop.f32.mrf.mxu0
    %v2679 = vadd.f32 %v561, %v2678
    %2680 = vdwg.mxu0
    %2681 = vmatprep.subr.bf16.mxu0 0
    %2682 = vmatpush1.bf16.xpose.msra.mxu0 %v1930
    %2683 = vmatprep.subr.bf16.mxu0 0
    %2684 = vmatpush1.bf16.xpose.msra.mxu0 %v1927
    %2685 = vmatprep.subr.bf16.mxu0 0
    %2686 = vmatpush1.bf16.xpose.msra.mxu0 %v1924
    %2687 = vmatprep.subr.bf16.mxu0 0
    %2688 = vmatpush1.bf16.xpose.msra.mxu0 %v1921
    %2689 = vmatprep.subr.bf16.mxu0 0
    %2690 = vmatpush1.bf16.xpose.msra.mxu0 %v1918
    %2691 = vmatprep.subr.bf16.mxu0 0
    %2692 = vmatpush1.bf16.xpose.msra.mxu0 %v1915
    %2693 = vmatprep.subr.bf16.mxu0 0
    %2694 = vmatpush1.bf16.xpose.msra.mxu0 %v1912
    %2695 = vmatprep.subr.bf16.mxu0 0
    %2696 = vmatpush1.bf16.xpose.msra.mxu0 %v1909
    %2697 = vmatprep.subr.bf16.mxu0 0
    %2698 = vmatpush2.bf16.xpose.msra.mxu0 %v1954
    %2699 = vmatprep.subr.bf16.mxu0 0
    %2700 = vmatpush2.bf16.xpose.msra.mxu0 %v1951
    %2701 = vmatprep.subr.bf16.mxu0 0
    %2702 = vmatpush2.bf16.xpose.msra.mxu0 %v1948
    %2703 = vmatprep.subr.bf16.mxu0 0
    %2704 = vmatpush2.bf16.xpose.msra.mxu0 %v1945
    %2705 = vmatprep.subr.bf16.mxu0 0
    %2706 = vmatpush2.bf16.xpose.msra.mxu0 %v1942
    %2707 = vmatprep.subr.bf16.mxu0 0
    %2708 = vmatpush2.bf16.xpose.msra.mxu0 %v1939
    %2709 = vmatprep.subr.bf16.mxu0 0
    %2710 = vmatpush2.bf16.xpose.msra.mxu0 %v1936
    %2711 = vmatprep.subr.bf16.mxu0 0
    %2712 = vmatpush2.bf16.xpose.msra.mxu0 %v1933
    %2713 = vmatprep.mubr.bf16.mxu0 0
    %2714 = vmatmul.mubr.bf16.gmra.mxu0 %v1855
    %v2715 = vpop.f32.mrf.mxu0
    %v2716 = vadd.f32 %v546, %v2715
    %v2717 = vpop.f32.mrf.mxu0
    %v2718 = vadd.f32 %v546, %v2717
    %v2719 = vpop.f32.mrf.mxu0
    %v2720 = vadd.f32 %v551, %v2719
    %v2721 = vpop.f32.mrf.mxu0
    %v2722 = vadd.f32 %v551, %v2721
    %2723 = vmatprep.mubr.bf16.mxu0 0
    %2724 = vmatmul.mubr.bf16.gmra.mxu0 %v1858
    %v2725 = vpop.f32.mrf.mxu0
    %v2726 = vadd.f32 %v556, %v2725
    %v2727 = vpop.f32.mrf.mxu0
    %v2728 = vadd.f32 %v556, %v2727
    %v2729 = vpop.f32.mrf.mxu0
    %v2730 = vadd.f32 %v561, %v2729
    %v2731 = vpop.f32.mrf.mxu0
    %v2732 = vadd.f32 %v561, %v2731
    %2733 = vdwg.mxu0
    %2734 = vmatprep.subr.bf16.mxu0 0
    %2735 = vmatpush1.bf16.xpose.msra.mxu0 %v1978
    %2736 = vmatprep.subr.bf16.mxu0 0
    %2737 = vmatpush1.bf16.xpose.msra.mxu0 %v1975
    %2738 = vmatprep.subr.bf16.mxu0 0
    %2739 = vmatpush1.bf16.xpose.msra.mxu0 %v1972
    %2740 = vmatprep.subr.bf16.mxu0 0
    %2741 = vmatpush1.bf16.xpose.msra.mxu0 %v1969
    %2742 = vmatprep.subr.bf16.mxu0 0
    %2743 = vmatpush1.bf16.xpose.msra.mxu0 %v1966
    %2744 = vmatprep.subr.bf16.mxu0 0
    %2745 = vmatpush1.bf16.xpose.msra.mxu0 %v1963
    %2746 = vmatprep.subr.bf16.mxu0 0
    %2747 = vmatpush1.bf16.xpose.msra.mxu0 %v1960
    %2748 = vmatprep.subr.bf16.mxu0 0
    %2749 = vmatpush1.bf16.xpose.msra.mxu0 %v1957
    %2750 = vmatprep.subr.bf16.mxu0 0
    %2751 = vmatpush2.bf16.xpose.msra.mxu0 %v2002
    %2752 = vmatprep.subr.bf16.mxu0 0
    %2753 = vmatpush2.bf16.xpose.msra.mxu0 %v1999
    %2754 = vmatprep.subr.bf16.mxu0 0
    %2755 = vmatpush2.bf16.xpose.msra.mxu0 %v1996
    %2756 = vmatprep.subr.bf16.mxu0 0
    %2757 = vmatpush2.bf16.xpose.msra.mxu0 %v1993
    %2758 = vmatprep.subr.bf16.mxu0 0
    %2759 = vmatpush2.bf16.xpose.msra.mxu0 %v1990
    %2760 = vmatprep.subr.bf16.mxu0 0
    %2761 = vmatpush2.bf16.xpose.msra.mxu0 %v1987
    %2762 = vmatprep.subr.bf16.mxu0 0
    %2763 = vmatpush2.bf16.xpose.msra.mxu0 %v1984
    %2764 = vmatprep.subr.bf16.mxu0 0
    %2765 = vmatpush2.bf16.xpose.msra.mxu0 %v1981
    %2766 = vmatprep.mubr.bf16.mxu0 0
    %2767 = vmatmul.mubr.bf16.gmra.mxu0 %v1855
    %v2768 = vpop.f32.mrf.mxu0
    %v2769 = vadd.f32 %v546, %v2768
    %v2770 = vpop.f32.mrf.mxu0
    %v2771 = vadd.f32 %v546, %v2770
    %v2772 = vpop.f32.mrf.mxu0
    %v2773 = vadd.f32 %v551, %v2772
    %v2774 = vpop.f32.mrf.mxu0
    %v2775 = vadd.f32 %v551, %v2774
    %2776 = vmatprep.mubr.bf16.mxu0 0
    %2777 = vmatmul.mubr.bf16.gmra.mxu0 %v1858
    %v2778 = vpop.f32.mrf.mxu0
    %v2779 = vadd.f32 %v556, %v2778
    %v2780 = vpop.f32.mrf.mxu0
    %v2781 = vadd.f32 %v556, %v2780
    %v2782 = vpop.f32.mrf.mxu0
    %v2783 = vadd.f32 %v561, %v2782
    %v2784 = vpop.f32.mrf.mxu0
    %v2785 = vadd.f32 %v561, %v2784
    %2786 = vdwg.mxu0
    %2787 = vmatprep.subr.bf16.mxu0 0
    %2788 = vmatpush1.bf16.xpose.msra.mxu0 %v2026
    %2789 = vmatprep.subr.bf16.mxu0 0
    %2790 = vmatpush1.bf16.xpose.msra.mxu0 %v2023
    %2791 = vmatprep.subr.bf16.mxu0 0
    %2792 = vmatpush1.bf16.xpose.msra.mxu0 %v2020
    %2793 = vmatprep.subr.bf16.mxu0 0
    %2794 = vmatpush1.bf16.xpose.msra.mxu0 %v2017
    %2795 = vmatprep.subr.bf16.mxu0 0
    %2796 = vmatpush1.bf16.xpose.msra.mxu0 %v2014
    %2797 = vmatprep.subr.bf16.mxu0 0
    %2798 = vmatpush1.bf16.xpose.msra.mxu0 %v2011
    %2799 = vmatprep.subr.bf16.mxu0 0
    %2800 = vmatpush1.bf16.xpose.msra.mxu0 %v2008
    %2801 = vmatprep.subr.bf16.mxu0 0
    %2802 = vmatpush1.bf16.xpose.msra.mxu0 %v2005
    %2803 = vmatprep.subr.bf16.mxu0 0
    %2804 = vmatpush2.bf16.xpose.msra.mxu0 %v2050
    %2805 = vmatprep.subr.bf16.mxu0 0
    %2806 = vmatpush2.bf16.xpose.msra.mxu0 %v2047
    %2807 = vmatprep.subr.bf16.mxu0 0
    %2808 = vmatpush2.bf16.xpose.msra.mxu0 %v2044
    %2809 = vmatprep.subr.bf16.mxu0 0
    %2810 = vmatpush2.bf16.xpose.msra.mxu0 %v2041
    %2811 = vmatprep.subr.bf16.mxu0 0
    %2812 = vmatpush2.bf16.xpose.msra.mxu0 %v2038
    %2813 = vmatprep.subr.bf16.mxu0 0
    %2814 = vmatpush2.bf16.xpose.msra.mxu0 %v2035
    %2815 = vmatprep.subr.bf16.mxu0 0
    %2816 = vmatpush2.bf16.xpose.msra.mxu0 %v2032
    %2817 = vmatprep.subr.bf16.mxu0 0
    %2818 = vmatpush2.bf16.xpose.msra.mxu0 %v2029
    %2819 = vmatprep.mubr.bf16.mxu0 0
    %2820 = vmatmul.mubr.bf16.gmra.mxu0 %v1855
    %v2821 = vpop.f32.mrf.mxu0
    %v2822 = vadd.f32 %v546, %v2821
    %v2823 = vpop.f32.mrf.mxu0
    %v2824 = vadd.f32 %v546, %v2823
    %v2825 = vpop.f32.mrf.mxu0
    %v2826 = vadd.f32 %v551, %v2825
    %v2827 = vpop.f32.mrf.mxu0
    %v2828 = vadd.f32 %v551, %v2827
    %2829 = vmatprep.mubr.bf16.mxu0 0
    %2830 = vmatmul.mubr.bf16.gmra.mxu0 %v1858
    %v2831 = vpop.f32.mrf.mxu0
    %v2832 = vadd.f32 %v556, %v2831
    %v2833 = vpop.f32.mrf.mxu0
    %v2834 = vadd.f32 %v556, %v2833
    %v2835 = vpop.f32.mrf.mxu0
    %v2836 = vadd.f32 %v561, %v2835
    %v2837 = vpop.f32.mrf.mxu0
    %v2838 = vadd.f32 %v561, %v2837
    %2839 = vdwg.mxu0
    %2840 = vmatprep.subr.bf16.mxu0 0
    %2841 = vmatpush1.bf16.xpose.msra.mxu0 %v2074
    %2842 = vmatprep.subr.bf16.mxu0 0
    %2843 = vmatpush1.bf16.xpose.msra.mxu0 %v2071
    %2844 = vmatprep.subr.bf16.mxu0 0
    %2845 = vmatpush1.bf16.xpose.msra.mxu0 %v2068
    %2846 = vmatprep.subr.bf16.mxu0 0
    %2847 = vmatpush1.bf16.xpose.msra.mxu0 %v2065
    %2848 = vmatprep.subr.bf16.mxu0 0
    %2849 = vmatpush1.bf16.xpose.msra.mxu0 %v2062
    %2850 = vmatprep.subr.bf16.mxu0 0
    %2851 = vmatpush1.bf16.xpose.msra.mxu0 %v2059
    %2852 = vmatprep.subr.bf16.mxu0 0
    %2853 = vmatpush1.bf16.xpose.msra.mxu0 %v2056
    %2854 = vmatprep.subr.bf16.mxu0 0
    %2855 = vmatpush1.bf16.xpose.msra.mxu0 %v2053
    %2856 = vmatprep.subr.bf16.mxu0 0
    %2857 = vmatpush2.bf16.xpose.msra.mxu0 %v2098
    %2858 = vmatprep.subr.bf16.mxu0 0
    %2859 = vmatpush2.bf16.xpose.msra.mxu0 %v2095
    %2860 = vmatprep.subr.bf16.mxu0 0
    %2861 = vmatpush2.bf16.xpose.msra.mxu0 %v2092
    %2862 = vmatprep.subr.bf16.mxu0 0
    %2863 = vmatpush2.bf16.xpose.msra.mxu0 %v2089
    %2864 = vmatprep.subr.bf16.mxu0 0
    %2865 = vmatpush2.bf16.xpose.msra.mxu0 %v2086
    %2866 = vmatprep.subr.bf16.mxu0 0
    %2867 = vmatpush2.bf16.xpose.msra.mxu0 %v2083
    %2868 = vmatprep.subr.bf16.mxu0 0
    %2869 = vmatpush2.bf16.xpose.msra.mxu0 %v2080
    %2870 = vmatprep.subr.bf16.mxu0 0
    %2871 = vmatpush2.bf16.xpose.msra.mxu0 %v2077
    %2872 = vmatprep.mubr.bf16.mxu0 0
    %2873 = vmatmul.mubr.bf16.gmra.mxu0 %v1855
    %v2874 = vpop.f32.mrf.mxu0
    %v2875 = vadd.f32 %v546, %v2874
    %v2876 = vpop.f32.mrf.mxu0
    %v2877 = vadd.f32 %v546, %v2876
    %v2878 = vpop.f32.mrf.mxu0
    %v2879 = vadd.f32 %v551, %v2878
    %v2880 = vpop.f32.mrf.mxu0
    %v2881 = vadd.f32 %v551, %v2880
    %2882 = vmatprep.mubr.bf16.mxu0 0
    %2883 = vmatmul.mubr.bf16.gmra.mxu0 %v1858
    %v2884 = vpop.f32.mrf.mxu0
    %v2885 = vadd.f32 %v556, %v2884
    %v2886 = vpop.f32.mrf.mxu0
    %v2887 = vadd.f32 %v556, %v2886
    %v2888 = vpop.f32.mrf.mxu0
    %v2889 = vadd.f32 %v561, %v2888
    %v2890 = vpop.f32.mrf.mxu0
    %v2891 = vadd.f32 %v561, %v2890
    %2892 = vdwg.mxu0
    %2893 = vmatprep.subr.bf16.mxu0 0
    %2894 = vmatpush1.bf16.xpose.msra.mxu0 %v2122
    %2895 = vmatprep.subr.bf16.mxu0 0
    %2896 = vmatpush1.bf16.xpose.msra.mxu0 %v2119
    %2897 = vmatprep.subr.bf16.mxu0 0
    %2898 = vmatpush1.bf16.xpose.msra.mxu0 %v2116
    %2899 = vmatprep.subr.bf16.mxu0 0
    %2900 = vmatpush1.bf16.xpose.msra.mxu0 %v2113
    %2901 = vmatprep.subr.bf16.mxu0 0
    %2902 = vmatpush1.bf16.xpose.msra.mxu0 %v2110
    %2903 = vmatprep.subr.bf16.mxu0 0
    %2904 = vmatpush1.bf16.xpose.msra.mxu0 %v2107
    %2905 = vmatprep.subr.bf16.mxu0 0
    %2906 = vmatpush1.bf16.xpose.msra.mxu0 %v2104
    %2907 = vmatprep.subr.bf16.mxu0 0
    %2908 = vmatpush1.bf16.xpose.msra.mxu0 %v2101
    %2909 = vmatprep.subr.bf16.mxu0 0
    %2910 = vmatpush2.bf16.xpose.msra.mxu0 %v2146
    %2911 = vmatprep.subr.bf16.mxu0 0
    %2912 = vmatpush2.bf16.xpose.msra.mxu0 %v2143
    %2913 = vmatprep.subr.bf16.mxu0 0
    %2914 = vmatpush2.bf16.xpose.msra.mxu0 %v2140
    %2915 = vmatprep.subr.bf16.mxu0 0
    %2916 = vmatpush2.bf16.xpose.msra.mxu0 %v2137
    %2917 = vmatprep.subr.bf16.mxu0 0
    %2918 = vmatpush2.bf16.xpose.msra.mxu0 %v2134
    %2919 = vmatprep.subr.bf16.mxu0 0
    %2920 = vmatpush2.bf16.xpose.msra.mxu0 %v2131
    %2921 = vmatprep.subr.bf16.mxu0 0
    %2922 = vmatpush2.bf16.xpose.msra.mxu0 %v2128
    %2923 = vmatprep.subr.bf16.mxu0 0
    %2924 = vmatpush2.bf16.xpose.msra.mxu0 %v2125
    %2925 = vmatprep.mubr.bf16.mxu0 0
    %2926 = vmatmul.mubr.bf16.gmra.mxu0 %v1855
    %v2927 = vpop.f32.mrf.mxu0
    %v2928 = vadd.f32 %v546, %v2927
    %v2929 = vpop.f32.mrf.mxu0
    %v2930 = vadd.f32 %v546, %v2929
    %v2931 = vpop.f32.mrf.mxu0
    %v2932 = vadd.f32 %v551, %v2931
    %v2933 = vpop.f32.mrf.mxu0
    %v2934 = vadd.f32 %v551, %v2933
    %2935 = vmatprep.mubr.bf16.mxu0 0
    %2936 = vmatmul.mubr.bf16.gmra.mxu0 %v1858
    %v2937 = vpop.f32.mrf.mxu0
    %v2938 = vadd.f32 %v556, %v2937
    %v2939 = vpop.f32.mrf.mxu0
    %v2940 = vadd.f32 %v556, %v2939
    %v2941 = vpop.f32.mrf.mxu0
    %v2942 = vadd.f32 %v561, %v2941
    %v2943 = vpop.f32.mrf.mxu0
    %v2944 = vadd.f32 %v561, %v2943
    %2945 = vdwg.mxu0
    %2946 = vmatprep.subr.bf16.mxu0 0
    %2947 = vmatpush1.bf16.xpose.msra.mxu0 %v2170
    %2948 = vmatprep.subr.bf16.mxu0 0
    %2949 = vmatpush1.bf16.xpose.msra.mxu0 %v2167
    %2950 = vmatprep.subr.bf16.mxu0 0
    %2951 = vmatpush1.bf16.xpose.msra.mxu0 %v2164
    %2952 = vmatprep.subr.bf16.mxu0 0
    %2953 = vmatpush1.bf16.xpose.msra.mxu0 %v2161
    %2954 = vmatprep.subr.bf16.mxu0 0
    %2955 = vmatpush1.bf16.xpose.msra.mxu0 %v2158
    %2956 = vmatprep.subr.bf16.mxu0 0
    %2957 = vmatpush1.bf16.xpose.msra.mxu0 %v2155
    %2958 = vmatprep.subr.bf16.mxu0 0
    %2959 = vmatpush1.bf16.xpose.msra.mxu0 %v2152
    %2960 = vmatprep.subr.bf16.mxu0 0
    %2961 = vmatpush1.bf16.xpose.msra.mxu0 %v2149
    %2962 = vmatprep.subr.bf16.mxu0 0
    %2963 = vmatpush2.bf16.xpose.msra.mxu0 %v2194
    %2964 = vmatprep.subr.bf16.mxu0 0
    %2965 = vmatpush2.bf16.xpose.msra.mxu0 %v2191
    %2966 = vmatprep.subr.bf16.mxu0 0
    %2967 = vmatpush2.bf16.xpose.msra.mxu0 %v2188
    %2968 = vmatprep.subr.bf16.mxu0 0
    %2969 = vmatpush2.bf16.xpose.msra.mxu0 %v2185
    %2970 = vmatprep.subr.bf16.mxu0 0
    %2971 = vmatpush2.bf16.xpose.msra.mxu0 %v2182
    %2972 = vmatprep.subr.bf16.mxu0 0
    %2973 = vmatpush2.bf16.xpose.msra.mxu0 %v2179
    %2974 = vmatprep.subr.bf16.mxu0 0
    %2975 = vmatpush2.bf16.xpose.msra.mxu0 %v2176
    %2976 = vmatprep.subr.bf16.mxu0 0
    %2977 = vmatpush2.bf16.xpose.msra.mxu0 %v2173
    %2978 = vmatprep.mubr.bf16.mxu0 0
    %2979 = vmatmul.mubr.bf16.gmra.mxu0 %v1855
    %v2980 = vpop.f32.mrf.mxu0
    %v2981 = vadd.f32 %v546, %v2980
    %v2982 = vpop.f32.mrf.mxu0
    %v2983 = vadd.f32 %v546, %v2982
    %v2984 = vpop.f32.mrf.mxu0
    %v2985 = vadd.f32 %v551, %v2984
    %v2986 = vpop.f32.mrf.mxu0
    %v2987 = vadd.f32 %v551, %v2986
    %2988 = vmatprep.mubr.bf16.mxu0 0
    %2989 = vmatmul.mubr.bf16.gmra.mxu0 %v1858
    %v2990 = vpop.f32.mrf.mxu0
    %v2991 = vadd.f32 %v556, %v2990
    %v2992 = vpop.f32.mrf.mxu0
    %v2993 = vadd.f32 %v556, %v2992
    %v2994 = vpop.f32.mrf.mxu0
    %v2995 = vadd.f32 %v561, %v2994
    %v2996 = vpop.f32.mrf.mxu0
    %v2997 = vadd.f32 %v561, %v2996
    %2998 = vdwg.mxu0
    %2999 = vmatprep.subr.bf16.mxu0 0
    %3000 = vmatpush1.bf16.xpose.msra.mxu0 %v2218
    %3001 = vmatprep.subr.bf16.mxu0 0
    %3002 = vmatpush1.bf16.xpose.msra.mxu0 %v2215
    %3003 = vmatprep.subr.bf16.mxu0 0
    %3004 = vmatpush1.bf16.xpose.msra.mxu0 %v2212
    %3005 = vmatprep.subr.bf16.mxu0 0
    %3006 = vmatpush1.bf16.xpose.msra.mxu0 %v2209
    %3007 = vmatprep.subr.bf16.mxu0 0
    %3008 = vmatpush1.bf16.xpose.msra.mxu0 %v2206
    %3009 = vmatprep.subr.bf16.mxu0 0
    %3010 = vmatpush1.bf16.xpose.msra.mxu0 %v2203
    %3011 = vmatprep.subr.bf16.mxu0 0
    %3012 = vmatpush1.bf16.xpose.msra.mxu0 %v2200
    %3013 = vmatprep.subr.bf16.mxu0 0
    %3014 = vmatpush1.bf16.xpose.msra.mxu0 %v2197
    %3015 = vmatprep.subr.bf16.mxu0 0
    %3016 = vmatpush2.bf16.xpose.msra.mxu0 %v2242
    %3017 = vmatprep.subr.bf16.mxu0 0
    %3018 = vmatpush2.bf16.xpose.msra.mxu0 %v2239
    %3019 = vmatprep.subr.bf16.mxu0 0
    %3020 = vmatpush2.bf16.xpose.msra.mxu0 %v2236
    %3021 = vmatprep.subr.bf16.mxu0 0
    %3022 = vmatpush2.bf16.xpose.msra.mxu0 %v2233
    %3023 = vmatprep.subr.bf16.mxu0 0
    %3024 = vmatpush2.bf16.xpose.msra.mxu0 %v2230
    %3025 = vmatprep.subr.bf16.mxu0 0
    %3026 = vmatpush2.bf16.xpose.msra.mxu0 %v2227
    %3027 = vmatprep.subr.bf16.mxu0 0
    %3028 = vmatpush2.bf16.xpose.msra.mxu0 %v2224
    %3029 = vmatprep.subr.bf16.mxu0 0
    %3030 = vmatpush2.bf16.xpose.msra.mxu0 %v2221
    %3031 = vmatprep.mubr.bf16.mxu0 0
    %3032 = vmatmul.mubr.bf16.gmra.mxu0 %v1855
    %v3033 = vpop.f32.mrf.mxu0
    %v3034 = vadd.f32 %v546, %v3033
    %v3035 = vpop.f32.mrf.mxu0
    %v3036 = vadd.f32 %v546, %v3035
    %v3037 = vpop.f32.mrf.mxu0
    %v3038 = vadd.f32 %v551, %v3037
    %v3039 = vpop.f32.mrf.mxu0
    %v3040 = vadd.f32 %v551, %v3039
    %3041 = vmatprep.mubr.bf16.mxu0 0
    %3042 = vmatmul.mubr.bf16.gmra.mxu0 %v1858
    %v3043 = vpop.f32.mrf.mxu0
    %v3044 = vadd.f32 %v556, %v3043
    %v3045 = vpop.f32.mrf.mxu0
    %v3046 = vadd.f32 %v556, %v3045
    %v3047 = vpop.f32.mrf.mxu0
    %v3048 = vadd.f32 %v561, %v3047
    %v3049 = vpop.f32.mrf.mxu0
    %v3050 = vadd.f32 %v561, %v3049
    %3051 = vdwg.mxu0
    %3052 = vmatprep.subr.bf16.mxu0 0
    %3053 = vmatpush1.bf16.xpose.msra.mxu0 %v2266
    %3054 = vmatprep.subr.bf16.mxu0 0
    %3055 = vmatpush1.bf16.xpose.msra.mxu0 %v2263
    %3056 = vmatprep.subr.bf16.mxu0 0
    %3057 = vmatpush1.bf16.xpose.msra.mxu0 %v2260
    %3058 = vmatprep.subr.bf16.mxu0 0
    %3059 = vmatpush1.bf16.xpose.msra.mxu0 %v2257
    %3060 = vmatprep.subr.bf16.mxu0 0
    %3061 = vmatpush1.bf16.xpose.msra.mxu0 %v2254
    %3062 = vmatprep.subr.bf16.mxu0 0
    %3063 = vmatpush1.bf16.xpose.msra.mxu0 %v2251
    %3064 = vmatprep.subr.bf16.mxu0 0
    %3065 = vmatpush1.bf16.xpose.msra.mxu0 %v2248
    %3066 = vmatprep.subr.bf16.mxu0 0
    %3067 = vmatpush1.bf16.xpose.msra.mxu0 %v2245
    %3068 = vmatprep.subr.bf16.mxu0 0
    %3069 = vmatpush2.bf16.xpose.msra.mxu0 %v2290
    %3070 = vmatprep.subr.bf16.mxu0 0
    %3071 = vmatpush2.bf16.xpose.msra.mxu0 %v2287
    %3072 = vmatprep.subr.bf16.mxu0 0
    %3073 = vmatpush2.bf16.xpose.msra.mxu0 %v2284
    %3074 = vmatprep.subr.bf16.mxu0 0
    %3075 = vmatpush2.bf16.xpose.msra.mxu0 %v2281
    %3076 = vmatprep.subr.bf16.mxu0 0
    %3077 = vmatpush2.bf16.xpose.msra.mxu0 %v2278
    %3078 = vmatprep.subr.bf16.mxu0 0
    %3079 = vmatpush2.bf16.xpose.msra.mxu0 %v2275
    %3080 = vmatprep.subr.bf16.mxu0 0
    %3081 = vmatpush2.bf16.xpose.msra.mxu0 %v2272
    %3082 = vmatprep.subr.bf16.mxu0 0
    %3083 = vmatpush2.bf16.xpose.msra.mxu0 %v2269
    %3084 = vmatprep.mubr.bf16.mxu0 0
    %3085 = vmatmul.mubr.bf16.gmra.mxu0 %v1855
    %v3086 = vpop.f32.mrf.mxu0
    %v3087 = vadd.f32 %v546, %v3086
    %v3088 = vpop.f32.mrf.mxu0
    %v3089 = vadd.f32 %v546, %v3088
    %v3090 = vpop.f32.mrf.mxu0
    %v3091 = vadd.f32 %v551, %v3090
    %v3092 = vpop.f32.mrf.mxu0
    %v3093 = vadd.f32 %v551, %v3092
    %3094 = vmatprep.mubr.bf16.mxu0 0
    %3095 = vmatmul.mubr.bf16.gmra.mxu0 %v1858
    %v3096 = vpop.f32.mrf.mxu0
    %v3097 = vadd.f32 %v556, %v3096
    %v3098 = vpop.f32.mrf.mxu0
    %v3099 = vadd.f32 %v556, %v3098
    %v3100 = vpop.f32.mrf.mxu0
    %v3101 = vadd.f32 %v561, %v3100
    %v3102 = vpop.f32.mrf.mxu0
    %v3103 = vadd.f32 %v561, %v3102
    %3104 = vdwg.mxu0
    %3105 = vmatprep.subr.bf16.mxu0 0
    %3106 = vmatpush1.bf16.xpose.msra.mxu0 %v2314
    %3107 = vmatprep.subr.bf16.mxu0 0
    %3108 = vmatpush1.bf16.xpose.msra.mxu0 %v2311
    %3109 = vmatprep.subr.bf16.mxu0 0
    %3110 = vmatpush1.bf16.xpose.msra.mxu0 %v2308
    %3111 = vmatprep.subr.bf16.mxu0 0
    %3112 = vmatpush1.bf16.xpose.msra.mxu0 %v2305
    %3113 = vmatprep.subr.bf16.mxu0 0
    %3114 = vmatpush1.bf16.xpose.msra.mxu0 %v2302
    %3115 = vmatprep.subr.bf16.mxu0 0
    %3116 = vmatpush1.bf16.xpose.msra.mxu0 %v2299
    %3117 = vmatprep.subr.bf16.mxu0 0
    %3118 = vmatpush1.bf16.xpose.msra.mxu0 %v2296
    %3119 = vmatprep.subr.bf16.mxu0 0
    %3120 = vmatpush1.bf16.xpose.msra.mxu0 %v2293
    %3121 = vmatprep.subr.bf16.mxu0 0
    %3122 = vmatpush2.bf16.xpose.msra.mxu0 %v2338
    %3123 = vmatprep.subr.bf16.mxu0 0
    %3124 = vmatpush2.bf16.xpose.msra.mxu0 %v2335
    %3125 = vmatprep.subr.bf16.mxu0 0
    %3126 = vmatpush2.bf16.xpose.msra.mxu0 %v2332
    %3127 = vmatprep.subr.bf16.mxu0 0
    %3128 = vmatpush2.bf16.xpose.msra.mxu0 %v2329
    %3129 = vmatprep.subr.bf16.mxu0 0
    %3130 = vmatpush2.bf16.xpose.msra.mxu0 %v2326
    %3131 = vmatprep.subr.bf16.mxu0 0
    %3132 = vmatpush2.bf16.xpose.msra.mxu0 %v2323
    %3133 = vmatprep.subr.bf16.mxu0 0
    %3134 = vmatpush2.bf16.xpose.msra.mxu0 %v2320
    %3135 = vmatprep.subr.bf16.mxu0 0
    %3136 = vmatpush2.bf16.xpose.msra.mxu0 %v2317
    %3137 = vmatprep.mubr.bf16.mxu0 0
    %3138 = vmatmul.mubr.bf16.gmra.mxu0 %v1855
    %v3139 = vpop.f32.mrf.mxu0
    %v3140 = vadd.f32 %v546, %v3139
    %v3141 = vpop.f32.mrf.mxu0
    %v3142 = vadd.f32 %v546, %v3141
    %v3143 = vpop.f32.mrf.mxu0
    %v3144 = vadd.f32 %v551, %v3143
    %v3145 = vpop.f32.mrf.mxu0
    %v3146 = vadd.f32 %v551, %v3145
    %3147 = vmatprep.mubr.bf16.mxu0 0
    %3148 = vmatmul.mubr.bf16.gmra.mxu0 %v1858
    %v3149 = vpop.f32.mrf.mxu0
    %v3150 = vadd.f32 %v556, %v3149
    %v3151 = vpop.f32.mrf.mxu0
    %v3152 = vadd.f32 %v556, %v3151
    %v3153 = vpop.f32.mrf.mxu0
    %v3154 = vadd.f32 %v561, %v3153
    %v3155 = vpop.f32.mrf.mxu0
    %v3156 = vadd.f32 %v561, %v3155
    %3157 = vdwg.mxu0
    %3158 = vmatprep.subr.bf16.mxu0 0
    %3159 = vmatpush1.bf16.xpose.msra.mxu0 %v2362
    %3160 = vmatprep.subr.bf16.mxu0 0
    %3161 = vmatpush1.bf16.xpose.msra.mxu0 %v2359
    %3162 = vmatprep.subr.bf16.mxu0 0
    %3163 = vmatpush1.bf16.xpose.msra.mxu0 %v2356
    %3164 = vmatprep.subr.bf16.mxu0 0
    %3165 = vmatpush1.bf16.xpose.msra.mxu0 %v2353
    %3166 = vmatprep.subr.bf16.mxu0 0
    %3167 = vmatpush1.bf16.xpose.msra.mxu0 %v2350
    %3168 = vmatprep.subr.bf16.mxu0 0
    %3169 = vmatpush1.bf16.xpose.msra.mxu0 %v2347
    %3170 = vmatprep.subr.bf16.mxu0 0
    %3171 = vmatpush1.bf16.xpose.msra.mxu0 %v2344
    %3172 = vmatprep.subr.bf16.mxu0 0
    %3173 = vmatpush1.bf16.xpose.msra.mxu0 %v2341
    %3174 = vmatprep.subr.bf16.mxu0 0
    %3175 = vmatpush2.bf16.xpose.msra.mxu0 %v2386
    %3176 = vmatprep.subr.bf16.mxu0 0
    %3177 = vmatpush2.bf16.xpose.msra.mxu0 %v2383
    %3178 = vmatprep.subr.bf16.mxu0 0
    %3179 = vmatpush2.bf16.xpose.msra.mxu0 %v2380
    %3180 = vmatprep.subr.bf16.mxu0 0
    %3181 = vmatpush2.bf16.xpose.msra.mxu0 %v2377
    %3182 = vmatprep.subr.bf16.mxu0 0
    %3183 = vmatpush2.bf16.xpose.msra.mxu0 %v2374
    %3184 = vmatprep.subr.bf16.mxu0 0
    %3185 = vmatpush2.bf16.xpose.msra.mxu0 %v2371
    %3186 = vmatprep.subr.bf16.mxu0 0
    %3187 = vmatpush2.bf16.xpose.msra.mxu0 %v2368
    %3188 = vmatprep.subr.bf16.mxu0 0
    %3189 = vmatpush2.bf16.xpose.msra.mxu0 %v2365
    %3190 = vmatprep.mubr.bf16.mxu0 0
    %3191 = vmatmul.mubr.bf16.gmra.mxu0 %v1855
    %v3192 = vpop.f32.mrf.mxu0
    %v3193 = vadd.f32 %v546, %v3192
    %v3194 = vpop.f32.mrf.mxu0
    %v3195 = vadd.f32 %v546, %v3194
    %v3196 = vpop.f32.mrf.mxu0
    %v3197 = vadd.f32 %v551, %v3196
    %v3198 = vpop.f32.mrf.mxu0
    %v3199 = vadd.f32 %v551, %v3198
    %3200 = vmatprep.mubr.bf16.mxu0 0
    %3201 = vmatmul.mubr.bf16.gmra.mxu0 %v1858
    %v3202 = vpop.f32.mrf.mxu0
    %v3203 = vadd.f32 %v556, %v3202
    %v3204 = vpop.f32.mrf.mxu0
    %v3205 = vadd.f32 %v556, %v3204
    %v3206 = vpop.f32.mrf.mxu0
    %v3207 = vadd.f32 %v561, %v3206
    %v3208 = vpop.f32.mrf.mxu0
    %v3209 = vadd.f32 %v561, %v3208
    %3210 = vdwg.mxu0
    %3211 = vmatprep.subr.bf16.mxu0 0
    %3212 = vmatpush1.bf16.xpose.msra.mxu0 %v2410
    %3213 = vmatprep.subr.bf16.mxu0 0
    %3214 = vmatpush1.bf16.xpose.msra.mxu0 %v2407
    %3215 = vmatprep.subr.bf16.mxu0 0
    %3216 = vmatpush1.bf16.xpose.msra.mxu0 %v2404
    %3217 = vmatprep.subr.bf16.mxu0 0
    %3218 = vmatpush1.bf16.xpose.msra.mxu0 %v2401
    %3219 = vmatprep.subr.bf16.mxu0 0
    %3220 = vmatpush1.bf16.xpose.msra.mxu0 %v2398
    %3221 = vmatprep.subr.bf16.mxu0 0
    %3222 = vmatpush1.bf16.xpose.msra.mxu0 %v2395
    %3223 = vmatprep.subr.bf16.mxu0 0
    %3224 = vmatpush1.bf16.xpose.msra.mxu0 %v2392
    %3225 = vmatprep.subr.bf16.mxu0 0
    %3226 = vmatpush1.bf16.xpose.msra.mxu0 %v2389
    %3227 = vmatprep.subr.bf16.mxu0 0
    %3228 = vmatpush2.bf16.xpose.msra.mxu0 %v2434
    %3229 = vmatprep.subr.bf16.mxu0 0
    %3230 = vmatpush2.bf16.xpose.msra.mxu0 %v2431
    %3231 = vmatprep.subr.bf16.mxu0 0
    %3232 = vmatpush2.bf16.xpose.msra.mxu0 %v2428
    %3233 = vmatprep.subr.bf16.mxu0 0
    %3234 = vmatpush2.bf16.xpose.msra.mxu0 %v2425
    %3235 = vmatprep.subr.bf16.mxu0 0
    %3236 = vmatpush2.bf16.xpose.msra.mxu0 %v2422
    %3237 = vmatprep.subr.bf16.mxu0 0
    %3238 = vmatpush2.bf16.xpose.msra.mxu0 %v2419
    %3239 = vmatprep.subr.bf16.mxu0 0
    %3240 = vmatpush2.bf16.xpose.msra.mxu0 %v2416
    %3241 = vmatprep.subr.bf16.mxu0 0
    %3242 = vmatpush2.bf16.xpose.msra.mxu0 %v2413
    %3243 = vmatprep.mubr.bf16.mxu0 0
    %3244 = vmatmul.mubr.bf16.gmra.mxu0 %v1855
    %v3245 = vpop.f32.mrf.mxu0
    %v3246 = vadd.f32 %v546, %v3245
    %v3247 = vpop.f32.mrf.mxu0
    %v3248 = vadd.f32 %v546, %v3247
    %v3249 = vpop.f32.mrf.mxu0
    %v3250 = vadd.f32 %v551, %v3249
    %v3251 = vpop.f32.mrf.mxu0
    %v3252 = vadd.f32 %v551, %v3251
    %3253 = vmatprep.mubr.bf16.mxu0 0
    %3254 = vmatmul.mubr.bf16.gmra.mxu0 %v1858
    %v3255 = vpop.f32.mrf.mxu0
    %v3256 = vadd.f32 %v556, %v3255
    %v3257 = vpop.f32.mrf.mxu0
    %v3258 = vadd.f32 %v556, %v3257
    %v3259 = vpop.f32.mrf.mxu0
    %v3260 = vadd.f32 %v561, %v3259
    %v3261 = vpop.f32.mrf.mxu0
    %v3262 = vadd.f32 %v561, %v3261
    %3263 = vdwg.mxu0
    %3264 = vmatprep.subr.bf16.mxu0 0
    %3265 = vmatpush1.bf16.xpose.msra.mxu0 %v2458
    %3266 = vmatprep.subr.bf16.mxu0 0
    %3267 = vmatpush1.bf16.xpose.msra.mxu0 %v2455
    %3268 = vmatprep.subr.bf16.mxu0 0
    %3269 = vmatpush1.bf16.xpose.msra.mxu0 %v2452
    %3270 = vmatprep.subr.bf16.mxu0 0
    %3271 = vmatpush1.bf16.xpose.msra.mxu0 %v2449
    %3272 = vmatprep.subr.bf16.mxu0 0
    %3273 = vmatpush1.bf16.xpose.msra.mxu0 %v2446
    %3274 = vmatprep.subr.bf16.mxu0 0
    %3275 = vmatpush1.bf16.xpose.msra.mxu0 %v2443
    %3276 = vmatprep.subr.bf16.mxu0 0
    %3277 = vmatpush1.bf16.xpose.msra.mxu0 %v2440
    %3278 = vmatprep.subr.bf16.mxu0 0
    %3279 = vmatpush1.bf16.xpose.msra.mxu0 %v2437
    %3280 = vmatprep.subr.bf16.mxu0 0
    %3281 = vmatpush2.bf16.xpose.msra.mxu0 %v2482
    %3282 = vmatprep.subr.bf16.mxu0 0
    %3283 = vmatpush2.bf16.xpose.msra.mxu0 %v2479
    %3284 = vmatprep.subr.bf16.mxu0 0
    %3285 = vmatpush2.bf16.xpose.msra.mxu0 %v2476
    %3286 = vmatprep.subr.bf16.mxu0 0
    %3287 = vmatpush2.bf16.xpose.msra.mxu0 %v2473
    %3288 = vmatprep.subr.bf16.mxu0 0
    %3289 = vmatpush2.bf16.xpose.msra.mxu0 %v2470
    %3290 = vmatprep.subr.bf16.mxu0 0
    %3291 = vmatpush2.bf16.xpose.msra.mxu0 %v2467
    %3292 = vmatprep.subr.bf16.mxu0 0
    %3293 = vmatpush2.bf16.xpose.msra.mxu0 %v2464
    %3294 = vmatprep.subr.bf16.mxu0 0
    %3295 = vmatpush2.bf16.xpose.msra.mxu0 %v2461
    %3296 = vmatprep.mubr.bf16.mxu0 0
    %3297 = vmatmul.mubr.bf16.gmra.mxu0 %v1855
    %v3298 = vpop.f32.mrf.mxu0
    %v3299 = vadd.f32 %v546, %v3298
    %v3300 = vpop.f32.mrf.mxu0
    %v3301 = vadd.f32 %v546, %v3300
    %v3302 = vpop.f32.mrf.mxu0
    %v3303 = vadd.f32 %v551, %v3302
    %v3304 = vpop.f32.mrf.mxu0
    %v3305 = vadd.f32 %v551, %v3304
    %3306 = vmatprep.mubr.bf16.mxu0 0
    %3307 = vmatmul.mubr.bf16.gmra.mxu0 %v1858
    %v3308 = vpop.f32.mrf.mxu0
    %v3309 = vadd.f32 %v556, %v3308
    %v3310 = vpop.f32.mrf.mxu0
    %v3311 = vadd.f32 %v556, %v3310
    %v3312 = vpop.f32.mrf.mxu0
    %v3313 = vadd.f32 %v561, %v3312
    %v3314 = vpop.f32.mrf.mxu0
    %v3315 = vadd.f32 %v561, %v3314
    %3316 = vdwg.mxu0
    %3317 = vmatprep.subr.bf16.mxu0 0
    %3318 = vmatpush1.bf16.xpose.msra.mxu0 %v2506
    %3319 = vmatprep.subr.bf16.mxu0 0
    %3320 = vmatpush1.bf16.xpose.msra.mxu0 %v2503
    %3321 = vmatprep.subr.bf16.mxu0 0
    %3322 = vmatpush1.bf16.xpose.msra.mxu0 %v2500
    %3323 = vmatprep.subr.bf16.mxu0 0
    %3324 = vmatpush1.bf16.xpose.msra.mxu0 %v2497
    %3325 = vmatprep.subr.bf16.mxu0 0
    %3326 = vmatpush1.bf16.xpose.msra.mxu0 %v2494
    %3327 = vmatprep.subr.bf16.mxu0 0
    %3328 = vmatpush1.bf16.xpose.msra.mxu0 %v2491
    %3329 = vmatprep.subr.bf16.mxu0 0
    %3330 = vmatpush1.bf16.xpose.msra.mxu0 %v2488
    %3331 = vmatprep.subr.bf16.mxu0 0
    %3332 = vmatpush1.bf16.xpose.msra.mxu0 %v2485
    %3333 = vmatprep.subr.bf16.mxu0 0
    %3334 = vmatpush2.bf16.xpose.msra.mxu0 %v2530
    %3335 = vmatprep.subr.bf16.mxu0 0
    %3336 = vmatpush2.bf16.xpose.msra.mxu0 %v2527
    %3337 = vmatprep.subr.bf16.mxu0 0
    %3338 = vmatpush2.bf16.xpose.msra.mxu0 %v2524
    %3339 = vmatprep.subr.bf16.mxu0 0
    %3340 = vmatpush2.bf16.xpose.msra.mxu0 %v2521
    %3341 = vmatprep.subr.bf16.mxu0 0
    %3342 = vmatpush2.bf16.xpose.msra.mxu0 %v2518
    %3343 = vmatprep.subr.bf16.mxu0 0
    %3344 = vmatpush2.bf16.xpose.msra.mxu0 %v2515
    %3345 = vmatprep.subr.bf16.mxu0 0
    %3346 = vmatpush2.bf16.xpose.msra.mxu0 %v2512
    %3347 = vmatprep.subr.bf16.mxu0 0
    %3348 = vmatpush2.bf16.xpose.msra.mxu0 %v2509
    %3349 = vmatprep.mubr.bf16.mxu0 0
    %3350 = vmatmul.mubr.bf16.gmra.mxu0 %v1855
    %v3351 = vpop.f32.mrf.mxu0
    %v3352 = vadd.f32 %v546, %v3351
    %v3353 = vpop.f32.mrf.mxu0
    %v3354 = vadd.f32 %v546, %v3353
    %v3355 = vpop.f32.mrf.mxu0
    %v3356 = vadd.f32 %v551, %v3355
    %v3357 = vpop.f32.mrf.mxu0
    %v3358 = vadd.f32 %v551, %v3357
    %3359 = vmatprep.mubr.bf16.mxu0 0
    %3360 = vmatmul.mubr.bf16.gmra.mxu0 %v1858
    %v3361 = vpop.f32.mrf.mxu0
    %v3362 = vadd.f32 %v556, %v3361
    %v3363 = vpop.f32.mrf.mxu0
    %v3364 = vadd.f32 %v556, %v3363
    %v3365 = vpop.f32.mrf.mxu0
    %v3366 = vadd.f32 %v561, %v3365
    %v3367 = vpop.f32.mrf.mxu0
    %v3368 = vadd.f32 %v561, %v3367
    %3369 = vdwg.mxu0
    %3370 = vmatprep.subr.bf16.mxu0 0
    %3371 = vmatpush1.bf16.xpose.msra.mxu0 %v2554
    %3372 = vmatprep.subr.bf16.mxu0 0
    %3373 = vmatpush1.bf16.xpose.msra.mxu0 %v2551
    %3374 = vmatprep.subr.bf16.mxu0 0
    %3375 = vmatpush1.bf16.xpose.msra.mxu0 %v2548
    %3376 = vmatprep.subr.bf16.mxu0 0
    %3377 = vmatpush1.bf16.xpose.msra.mxu0 %v2545
    %3378 = vmatprep.subr.bf16.mxu0 0
    %3379 = vmatpush1.bf16.xpose.msra.mxu0 %v2542
    %3380 = vmatprep.subr.bf16.mxu0 0
    %3381 = vmatpush1.bf16.xpose.msra.mxu0 %v2539
    %3382 = vmatprep.subr.bf16.mxu0 0
    %3383 = vmatpush1.bf16.xpose.msra.mxu0 %v2536
    %3384 = vmatprep.subr.bf16.mxu0 0
    %3385 = vmatpush1.bf16.xpose.msra.mxu0 %v2533
    %3386 = vmatprep.subr.bf16.mxu0 0
    %3387 = vmatpush2.bf16.xpose.msra.mxu0 %v2578
    %3388 = vmatprep.subr.bf16.mxu0 0
    %3389 = vmatpush2.bf16.xpose.msra.mxu0 %v2575
    %3390 = vmatprep.subr.bf16.mxu0 0
    %3391 = vmatpush2.bf16.xpose.msra.mxu0 %v2572
    %3392 = vmatprep.subr.bf16.mxu0 0
    %3393 = vmatpush2.bf16.xpose.msra.mxu0 %v2569
    %3394 = vmatprep.subr.bf16.mxu0 0
    %3395 = vmatpush2.bf16.xpose.msra.mxu0 %v2566
    %3396 = vmatprep.subr.bf16.mxu0 0
    %3397 = vmatpush2.bf16.xpose.msra.mxu0 %v2563
    %3398 = vmatprep.subr.bf16.mxu0 0
    %3399 = vmatpush2.bf16.xpose.msra.mxu0 %v2560
    %3400 = vmatprep.subr.bf16.mxu0 0
    %3401 = vmatpush2.bf16.xpose.msra.mxu0 %v2557
    %3402 = vmatprep.mubr.bf16.mxu0 0
    %3403 = vmatmul.mubr.bf16.gmra.mxu0 %v1855
    %v3404 = vpop.f32.mrf.mxu0
    %v3405 = vadd.f32 %v546, %v3404
    %v3406 = vpop.f32.mrf.mxu0
    %v3407 = vadd.f32 %v546, %v3406
    %v3408 = vpop.f32.mrf.mxu0
    %v3409 = vadd.f32 %v551, %v3408
    %v3410 = vpop.f32.mrf.mxu0
    %v3411 = vadd.f32 %v551, %v3410
    %3412 = vmatprep.mubr.bf16.mxu0 0
    %3413 = vmatmul.mubr.bf16.gmra.mxu0 %v1858
    %v3414 = vpop.f32.mrf.mxu0
    %v3415 = vadd.f32 %v556, %v3414
    %v3416 = vpop.f32.mrf.mxu0
    %v3417 = vadd.f32 %v556, %v3416
    %v3418 = vpop.f32.mrf.mxu0
    %v3419 = vadd.f32 %v561, %v3418
    %v3420 = vpop.f32.mrf.mxu0
    %v3421 = vadd.f32 %v561, %v3420
    %3422 = vdwg.mxu0
    %3423 = vmatprep.subr.bf16.mxu0 0
    %3424 = vmatpush1.bf16.xpose.msra.mxu0 %v2602
    %3425 = vmatprep.subr.bf16.mxu0 0
    %3426 = vmatpush1.bf16.xpose.msra.mxu0 %v2599
    %3427 = vmatprep.subr.bf16.mxu0 0
    %3428 = vmatpush1.bf16.xpose.msra.mxu0 %v2596
    %3429 = vmatprep.subr.bf16.mxu0 0
    %3430 = vmatpush1.bf16.xpose.msra.mxu0 %v2593
    %3431 = vmatprep.subr.bf16.mxu0 0
    %3432 = vmatpush1.bf16.xpose.msra.mxu0 %v2590
    %3433 = vmatprep.subr.bf16.mxu0 0
    %3434 = vmatpush1.bf16.xpose.msra.mxu0 %v2587
    %3435 = vmatprep.subr.bf16.mxu0 0
    %3436 = vmatpush1.bf16.xpose.msra.mxu0 %v2584
    %3437 = vmatprep.subr.bf16.mxu0 0
    %3438 = vmatpush1.bf16.xpose.msra.mxu0 %v2581
    %3439 = vmatprep.subr.bf16.mxu0 0
    %3440 = vmatpush2.bf16.xpose.msra.mxu0 %v2626
    %3441 = vmatprep.subr.bf16.mxu0 0
    %3442 = vmatpush2.bf16.xpose.msra.mxu0 %v2623
    %3443 = vmatprep.subr.bf16.mxu0 0
    %3444 = vmatpush2.bf16.xpose.msra.mxu0 %v2620
    %3445 = vmatprep.subr.bf16.mxu0 0
    %3446 = vmatpush2.bf16.xpose.msra.mxu0 %v2617
    %3447 = vmatprep.subr.bf16.mxu0 0
    %3448 = vmatpush2.bf16.xpose.msra.mxu0 %v2614
    %3449 = vmatprep.subr.bf16.mxu0 0
    %3450 = vmatpush2.bf16.xpose.msra.mxu0 %v2611
    %3451 = vmatprep.subr.bf16.mxu0 0
    %3452 = vmatpush2.bf16.xpose.msra.mxu0 %v2608
    %3453 = vmatprep.subr.bf16.mxu0 0
    %3454 = vmatpush2.bf16.xpose.msra.mxu0 %v2605
    %3455 = vmatprep.mubr.bf16.mxu0 0
    %3456 = vmatmul.mubr.bf16.gmra.mxu0 %v1855
    %v3457 = vpop.f32.mrf.mxu0
    %v3458 = vadd.f32 %v546, %v3457
    %v3459 = vpop.f32.mrf.mxu0
    %v3460 = vadd.f32 %v546, %v3459
    %v3461 = vpop.f32.mrf.mxu0
    %v3462 = vadd.f32 %v551, %v3461
    %v3463 = vpop.f32.mrf.mxu0
    %v3464 = vadd.f32 %v551, %v3463
    %3465 = vmatprep.mubr.bf16.mxu0 0
    %3466 = vmatmul.mubr.bf16.gmra.mxu0 %v1858
    %v3467 = vpop.f32.mrf.mxu0
    %v3468 = vadd.f32 %v556, %v3467
    %v3469 = vpop.f32.mrf.mxu0
    %v3470 = vadd.f32 %v556, %v3469
    %v3471 = vpop.f32.mrf.mxu0
    %v3472 = vadd.f32 %v561, %v3471
    %v3473 = vpop.f32.mrf.mxu0
    %v3474 = vadd.f32 %v561, %v3473
    %3475 = vdwg.mxu0
    %v3476 = vmax.f32 %v2663, 0.0
    %v3477 = vmax.f32 %v2665, 0.0
    %v3478 = vmax.f32 %v2716, 0.0
    %v3479 = vmax.f32 %v2718, 0.0
    %v3480 = vmax.f32 %v2769, 0.0
    %v3481 = vmax.f32 %v2771, 0.0
    %v3482 = vmax.f32 %v2822, 0.0
    %v3483 = vmax.f32 %v2824, 0.0
    %v3484 = vmax.f32 %v2875, 0.0
    %v3485 = vmax.f32 %v2877, 0.0
    %v3486 = vmax.f32 %v2928, 0.0
    %v3487 = vmax.f32 %v2930, 0.0
    %v3488 = vmax.f32 %v2981, 0.0
    %v3489 = vmax.f32 %v2983, 0.0
    %v3490 = vmax.f32 %v3034, 0.0
    %v3491 = vmax.f32 %v3036, 0.0
    %v3492 = vmax.f32 %v3087, 0.0
    %v3493 = vmax.f32 %v3089, 0.0
    %v3494 = vmax.f32 %v3140, 0.0
    %v3495 = vmax.f32 %v3142, 0.0
    %v3496 = vmax.f32 %v3193, 0.0
    %v3497 = vmax.f32 %v3195, 0.0
    %v3498 = vmax.f32 %v3246, 0.0
    %v3499 = vmax.f32 %v3248, 0.0
    %v3500 = vmax.f32 %v3299, 0.0
    %v3501 = vmax.f32 %v3301, 0.0
    %v3502 = vmax.f32 %v3352, 0.0
    %v3503 = vmax.f32 %v3354, 0.0
    %v3504 = vmax.f32 %v3405, 0.0
    %v3505 = vmax.f32 %v3407, 0.0
    %v3506 = vmax.f32 %v3458, 0.0
    %v3507 = vmax.f32 %v3460, 0.0
    %v3508 = vmax.f32 %v2667, 0.0
    %v3509 = vmax.f32 %v2669, 0.0
    %v3510 = vmax.f32 %v2720, 0.0
    %v3511 = vmax.f32 %v2722, 0.0
    %v3512 = vmax.f32 %v2773, 0.0
    %v3513 = vmax.f32 %v2775, 0.0
    %v3514 = vmax.f32 %v2826, 0.0
    %v3515 = vmax.f32 %v2828, 0.0
    %v3516 = vmax.f32 %v2879, 0.0
    %v3517 = vmax.f32 %v2881, 0.0
    %v3518 = vmax.f32 %v2932, 0.0
    %v3519 = vmax.f32 %v2934, 0.0
    %v3520 = vmax.f32 %v2985, 0.0
    %v3521 = vmax.f32 %v2987, 0.0
    %v3522 = vmax.f32 %v3038, 0.0
    %v3523 = vmax.f32 %v3040, 0.0
    %v3524 = vmax.f32 %v3091, 0.0
    %v3525 = vmax.f32 %v3093, 0.0
    %v3526 = vmax.f32 %v3144, 0.0
    %v3527 = vmax.f32 %v3146, 0.0
    %v3528 = vmax.f32 %v3197, 0.0
    %v3529 = vmax.f32 %v3199, 0.0
    %v3530 = vmax.f32 %v3250, 0.0
    %v3531 = vmax.f32 %v3252, 0.0
    %v3532 = vmax.f32 %v3303, 0.0
    %v3533 = vmax.f32 %v3305, 0.0
    %v3534 = vmax.f32 %v3356, 0.0
    %v3535 = vmax.f32 %v3358, 0.0
    %v3536 = vmax.f32 %v3409, 0.0
    %v3537 = vmax.f32 %v3411, 0.0
    %v3538 = vmax.f32 %v3462, 0.0
    %v3539 = vmax.f32 %v3464, 0.0
    %v3540 = vmax.f32 %v2673, 0.0
    %v3541 = vmax.f32 %v2675, 0.0
    %v3542 = vmax.f32 %v2726, 0.0
    %v3543 = vmax.f32 %v2728, 0.0
    %v3544 = vmax.f32 %v2779, 0.0
    %v3545 = vmax.f32 %v2781, 0.0
    %v3546 = vmax.f32 %v2832, 0.0
    %v3547 = vmax.f32 %v2834, 0.0
    %v3548 = vmax.f32 %v2885, 0.0
    %v3549 = vmax.f32 %v2887, 0.0
    %v3550 = vmax.f32 %v2938, 0.0
    %v3551 = vmax.f32 %v2940, 0.0
    %v3552 = vmax.f32 %v2991, 0.0
    %v3553 = vmax.f32 %v2993, 0.0
    %v3554 = vmax.f32 %v3044, 0.0
    %v3555 = vmax.f32 %v3046, 0.0
    %v3556 = vmax.f32 %v3097, 0.0
    %v3557 = vmax.f32 %v3099, 0.0
    %v3558 = vmax.f32 %v3150, 0.0
    %v3559 = vmax.f32 %v3152, 0.0
    %v3560 = vmax.f32 %v3203, 0.0
    %v3561 = vmax.f32 %v3205, 0.0
    %v3562 = vmax.f32 %v3256, 0.0
    %v3563 = vmax.f32 %v3258, 0.0
    %v3564 = vmax.f32 %v3309, 0.0
    %v3565 = vmax.f32 %v3311, 0.0
    %v3566 = vmax.f32 %v3362, 0.0
    %v3567 = vmax.f32 %v3364, 0.0
    %v3568 = vmax.f32 %v3415, 0.0
    %v3569 = vmax.f32 %v3417, 0.0
    %v3570 = vmax.f32 %v3468, 0.0
    %v3571 = vmax.f32 %v3470, 0.0
    %v3572 = vmax.f32 %v2677, 0.0
    %v3573 = vmax.f32 %v2679, 0.0
    %v3574 = vmax.f32 %v2730, 0.0
    %v3575 = vmax.f32 %v2732, 0.0
    %v3576 = vmax.f32 %v2783, 0.0
    %v3577 = vmax.f32 %v2785, 0.0
    %v3578 = vmax.f32 %v2836, 0.0
    %v3579 = vmax.f32 %v2838, 0.0
    %v3580 = vmax.f32 %v2889, 0.0
    %v3581 = vmax.f32 %v2891, 0.0
    %v3582 = vmax.f32 %v2942, 0.0
    %v3583 = vmax.f32 %v2944, 0.0
    %v3584 = vmax.f32 %v2995, 0.0
    %v3585 = vmax.f32 %v2997, 0.0
    %v3586 = vmax.f32 %v3048, 0.0
    %v3587 = vmax.f32 %v3050, 0.0
    %v3588 = vmax.f32 %v3101, 0.0
    %v3589 = vmax.f32 %v3103, 0.0
    %v3590 = vmax.f32 %v3154, 0.0
    %v3591 = vmax.f32 %v3156, 0.0
    %v3592 = vmax.f32 %v3207, 0.0
    %v3593 = vmax.f32 %v3209, 0.0
    %v3594 = vmax.f32 %v3260, 0.0
    %v3595 = vmax.f32 %v3262, 0.0
    %v3596 = vmax.f32 %v3313, 0.0
    %v3597 = vmax.f32 %v3315, 0.0
    %v3598 = vmax.f32 %v3366, 0.0
    %v3599 = vmax.f32 %v3368, 0.0
    %v3600 = vmax.f32 %v3419, 0.0
    %v3601 = vmax.f32 %v3421, 0.0
    %v3602 = vmax.f32 %v3472, 0.0
    %v3603 = vmax.f32 %v3474, 0.0
    %v3604 = vld [vmem:[%s3] sm:$0x1]
    %s3605 = sld [smem:[#allocation2]]
    %v3606 = vstv %s3605
    %vm3607 = vcmask 261120
    %v3609 = vsel %vm3607, %v3604, 0
    %3611 = vmatprep.subr.mxu0 0.0
    %3612 = vmatpush1.msra.mxu0 0.0
    %3613 = vmatprep.subr.mxu0 0.0
    %3614 = vmatpush1.msra.mxu0 0.0
    %3615 = vmatprep.subr.mxu0 0.0
    %3616 = vmatpush1.msra.mxu0 0.0
    %3617 = vmatprep.subr.mxu0 0.0
    %3618 = vmatpush1.msra.mxu0 0.0
    %3619 = vmatprep.subr.mxu0 0.0
    %3620 = vmatpush1.msra.mxu0 0.0
    %3621 = vmatprep.subr.mxu0 0.0
    %3622 = vmatpush1.msra.mxu0 0.0
    %3623 = vmatprep.subr.mxu0 0.0
    %3624 = vmatpush1.msra.mxu0 0.0
    %3625 = vmatprep.subr.mxu0 0.0
    %3626 = vmatpush1.msra.mxu0 0.0
    %3627 = vmatprep.subr.mxu0 0.0
    %3628 = vmatpush1.msra.mxu0 0.0
    %3629 = vmatprep.subr.mxu0 0.0
    %3630 = vmatpush1.msra.mxu0 0.0
    %3631 = vmatprep.subr.mxu0 0.0
    %3632 = vmatpush1.msra.mxu0 0.0
    %3633 = vmatprep.subr.mxu0 0.0
    %3634 = vmatpush1.msra.mxu0 0.0
    %3635 = vmatprep.subr.mxu0 %v3573
    %3636 = vmatpush1.msra.mxu0 %v3572
    %3637 = vmatprep.subr.mxu0 %v3541
    %3638 = vmatpush1.msra.mxu0 %v3540
    %3639 = vmatprep.subr.mxu0 %v3509
    %3640 = vmatpush1.msra.mxu0 %v3508
    %3641 = vmatprep.subr.mxu0 %v3477
    %3642 = vmatpush1.msra.mxu0 %v3476
    %3643 = vmatprep.subr.mxu0 0.0
    %3644 = vmatpush2.msra.mxu0 0.0
    %3645 = vmatprep.subr.mxu0 0.0
    %3646 = vmatpush2.msra.mxu0 0.0
    %3647 = vmatprep.subr.mxu0 0.0
    %3648 = vmatpush2.msra.mxu0 0.0
    %3649 = vmatprep.subr.mxu0 0.0
    %3650 = vmatpush2.msra.mxu0 0.0
    %3651 = vmatprep.subr.mxu0 0.0
    %3652 = vmatpush2.msra.mxu0 0.0
    %3653 = vmatprep.subr.mxu0 0.0
    %3654 = vmatpush2.msra.mxu0 0.0
    %3655 = vmatprep.subr.mxu0 0.0
    %3656 = vmatpush2.msra.mxu0 0.0
    %3657 = vmatprep.subr.mxu0 0.0
    %3658 = vmatpush2.msra.mxu0 0.0
    %3659 = vmatprep.subr.mxu0 0.0
    %3660 = vmatpush2.msra.mxu0 0.0
    %3661 = vmatprep.subr.mxu0 0.0
    %3662 = vmatpush2.msra.mxu0 0.0
    %3663 = vmatprep.subr.mxu0 0.0
    %3664 = vmatpush2.msra.mxu0 0.0
    %3665 = vmatprep.subr.mxu0 0.0
    %3666 = vmatpush2.msra.mxu0 0.0
    %3667 = vmatprep.subr.mxu0 0.0
    %3668 = vmatpush2.msra.mxu0 0.0
    %3669 = vmatprep.subr.mxu0 0.0
    %3670 = vmatpush2.msra.mxu0 0.0
    %3671 = vmatprep.subr.mxu0 0.0
    %3672 = vmatpush2.msra.mxu0 0.0
    %3673 = vmatprep.subr.mxu0 0.0
    %3674 = vmatpush2.msra.mxu0 0.0
    %3675 = vmatprep.mubr.f32.mxu0 0.0
    %3676 = vmatmul.mubr.f32.gmra.mxu0 %v3609
    %v3677 = vpop.f32.mrf.mxu0
    %v3678 = vadd.f32 %v3606, %v3677
    %v3679 = vpop.f32.mrf.mxu0
    %v3680 = vadd.f32 %v3606, %v3679
    %3681 = vdwg.mxu0
    %3682 = vmatprep.subr.mxu0 0.0
    %3683 = vmatpush1.msra.mxu0 0.0
    %3684 = vmatprep.subr.mxu0 0.0
    %3685 = vmatpush1.msra.mxu0 0.0
    %3686 = vmatprep.subr.mxu0 0.0
    %3687 = vmatpush1.msra.mxu0 0.0
    %3688 = vmatprep.subr.mxu0 0.0
    %3689 = vmatpush1.msra.mxu0 0.0
    %3690 = vmatprep.subr.mxu0 0.0
    %3691 = vmatpush1.msra.mxu0 0.0
    %3692 = vmatprep.subr.mxu0 0.0
    %3693 = vmatpush1.msra.mxu0 0.0
    %3694 = vmatprep.subr.mxu0 0.0
    %3695 = vmatpush1.msra.mxu0 0.0
    %3696 = vmatprep.subr.mxu0 0.0
    %3697 = vmatpush1.msra.mxu0 0.0
    %3698 = vmatprep.subr.mxu0 0.0
    %3699 = vmatpush1.msra.mxu0 0.0
    %3700 = vmatprep.subr.mxu0 0.0
    %3701 = vmatpush1.msra.mxu0 0.0
    %3702 = vmatprep.subr.mxu0 0.0
    %3703 = vmatpush1.msra.mxu0 0.0
    %3704 = vmatprep.subr.mxu0 0.0
    %3705 = vmatpush1.msra.mxu0 0.0
    %3706 = vmatprep.subr.mxu0 %v3575
    %3707 = vmatpush1.msra.mxu0 %v3574
    %3708 = vmatprep.subr.mxu0 %v3543
    %3709 = vmatpush1.msra.mxu0 %v3542
    %3710 = vmatprep.subr.mxu0 %v3511
    %3711 = vmatpush1.msra.mxu0 %v3510
    %3712 = vmatprep.subr.mxu0 %v3479
    %3713 = vmatpush1.msra.mxu0 %v3478
    %3714 = vmatprep.subr.mxu0 0.0
    %3715 = vmatpush2.msra.mxu0 0.0
    %3716 = vmatprep.subr.mxu0 0.0
    %3717 = vmatpush2.msra.mxu0 0.0
    %3718 = vmatprep.subr.mxu0 0.0
    %3719 = vmatpush2.msra.mxu0 0.0
    %3720 = vmatprep.subr.mxu0 0.0
    %3721 = vmatpush2.msra.mxu0 0.0
    %3722 = vmatprep.subr.mxu0 0.0
    %3723 = vmatpush2.msra.mxu0 0.0
    %3724 = vmatprep.subr.mxu0 0.0
    %3725 = vmatpush2.msra.mxu0 0.0
    %3726 = vmatprep.subr.mxu0 0.0
    %3727 = vmatpush2.msra.mxu0 0.0
    %3728 = vmatprep.subr.mxu0 0.0
    %3729 = vmatpush2.msra.mxu0 0.0
    %3730 = vmatprep.subr.mxu0 0.0
    %3731 = vmatpush2.msra.mxu0 0.0
    %3732 = vmatprep.subr.mxu0 0.0
    %3733 = vmatpush2.msra.mxu0 0.0
    %3734 = vmatprep.subr.mxu0 0.0
    %3735 = vmatpush2.msra.mxu0 0.0
    %3736 = vmatprep.subr.mxu0 0.0
    %3737 = vmatpush2.msra.mxu0 0.0
    %3738 = vmatprep.subr.mxu0 0.0
    %3739 = vmatpush2.msra.mxu0 0.0
    %3740 = vmatprep.subr.mxu0 0.0
    %3741 = vmatpush2.msra.mxu0 0.0
    %3742 = vmatprep.subr.mxu0 0.0
    %3743 = vmatpush2.msra.mxu0 0.0
    %3744 = vmatprep.subr.mxu0 0.0
    %3745 = vmatpush2.msra.mxu0 0.0
    %3746 = vmatprep.mubr.f32.mxu0 0.0
    %3747 = vmatmul.mubr.f32.gmra.mxu0 %v3609
    %v3748 = vpop.f32.mrf.mxu0
    %v3749 = vadd.f32 %v3606, %v3748
    %v3750 = vpop.f32.mrf.mxu0
    %v3751 = vadd.f32 %v3606, %v3750
    %3752 = vdwg.mxu0
    %3753 = vmatprep.subr.mxu0 0.0
    %3754 = vmatpush1.msra.mxu0 0.0
    %3755 = vmatprep.subr.mxu0 0.0
    %3756 = vmatpush1.msra.mxu0 0.0
    %3757 = vmatprep.subr.mxu0 0.0
    %3758 = vmatpush1.msra.mxu0 0.0
    %3759 = vmatprep.subr.mxu0 0.0
    %3760 = vmatpush1.msra.mxu0 0.0
    %3761 = vmatprep.subr.mxu0 0.0
    %3762 = vmatpush1.msra.mxu0 0.0
    %3763 = vmatprep.subr.mxu0 0.0
    %3764 = vmatpush1.msra.mxu0 0.0
    %3765 = vmatprep.subr.mxu0 0.0
    %3766 = vmatpush1.msra.mxu0 0.0
    %3767 = vmatprep.subr.mxu0 0.0
    %3768 = vmatpush1.msra.mxu0 0.0
    %3769 = vmatprep.subr.mxu0 0.0
    %3770 = vmatpush1.msra.mxu0 0.0
    %3771 = vmatprep.subr.mxu0 0.0
    %3772 = vmatpush1.msra.mxu0 0.0
    %3773 = vmatprep.subr.mxu0 0.0
    %3774 = vmatpush1.msra.mxu0 0.0
    %3775 = vmatprep.subr.mxu0 0.0
    %3776 = vmatpush1.msra.mxu0 0.0
    %3777 = vmatprep.subr.mxu0 %v3577
    %3778 = vmatpush1.msra.mxu0 %v3576
    %3779 = vmatprep.subr.mxu0 %v3545
    %3780 = vmatpush1.msra.mxu0 %v3544
    %3781 = vmatprep.subr.mxu0 %v3513
    %3782 = vmatpush1.msra.mxu0 %v3512
    %3783 = vmatprep.subr.mxu0 %v3481
    %3784 = vmatpush1.msra.mxu0 %v3480
    %3785 = vmatprep.subr.mxu0 0.0
    %3786 = vmatpush2.msra.mxu0 0.0
    %3787 = vmatprep.subr.mxu0 0.0
    %3788 = vmatpush2.msra.mxu0 0.0
    %3789 = vmatprep.subr.mxu0 0.0
    %3790 = vmatpush2.msra.mxu0 0.0
    %3791 = vmatprep.subr.mxu0 0.0
    %3792 = vmatpush2.msra.mxu0 0.0
    %3793 = vmatprep.subr.mxu0 0.0
    %3794 = vmatpush2.msra.mxu0 0.0
    %3795 = vmatprep.subr.mxu0 0.0
    %3796 = vmatpush2.msra.mxu0 0.0
    %3797 = vmatprep.subr.mxu0 0.0
    %3798 = vmatpush2.msra.mxu0 0.0
    %3799 = vmatprep.subr.mxu0 0.0
    %3800 = vmatpush2.msra.mxu0 0.0
    %3801 = vmatprep.subr.mxu0 0.0
    %3802 = vmatpush2.msra.mxu0 0.0
    %3803 = vmatprep.subr.mxu0 0.0
    %3804 = vmatpush2.msra.mxu0 0.0
    %3805 = vmatprep.subr.mxu0 0.0
    %3806 = vmatpush2.msra.mxu0 0.0
    %3807 = vmatprep.subr.mxu0 0.0
    %3808 = vmatpush2.msra.mxu0 0.0
    %3809 = vmatprep.subr.mxu0 0.0
    %3810 = vmatpush2.msra.mxu0 0.0
    %3811 = vmatprep.subr.mxu0 0.0
    %3812 = vmatpush2.msra.mxu0 0.0
    %3813 = vmatprep.subr.mxu0 0.0
    %3814 = vmatpush2.msra.mxu0 0.0
    %3815 = vmatprep.subr.mxu0 0.0
    %3816 = vmatpush2.msra.mxu0 0.0
    %3817 = vmatprep.mubr.f32.mxu0 0.0
    %3818 = vmatmul.mubr.f32.gmra.mxu0 %v3609
    %v3819 = vpop.f32.mrf.mxu0
    %v3820 = vadd.f32 %v3606, %v3819
    %v3821 = vpop.f32.mrf.mxu0
    %v3822 = vadd.f32 %v3606, %v3821
    %3823 = vdwg.mxu0
    %3824 = vmatprep.subr.mxu0 0.0
    %3825 = vmatpush1.msra.mxu0 0.0
    %3826 = vmatprep.subr.mxu0 0.0
    %3827 = vmatpush1.msra.mxu0 0.0
    %3828 = vmatprep.subr.mxu0 0.0
    %3829 = vmatpush1.msra.mxu0 0.0
    %3830 = vmatprep.subr.mxu0 0.0
    %3831 = vmatpush1.msra.mxu0 0.0
    %3832 = vmatprep.subr.mxu0 0.0
    %3833 = vmatpush1.msra.mxu0 0.0
    %3834 = vmatprep.subr.mxu0 0.0
    %3835 = vmatpush1.msra.mxu0 0.0
    %3836 = vmatprep.subr.mxu0 0.0
    %3837 = vmatpush1.msra.mxu0 0.0
    %3838 = vmatprep.subr.mxu0 0.0
    %3839 = vmatpush1.msra.mxu0 0.0
    %3840 = vmatprep.subr.mxu0 0.0
    %3841 = vmatpush1.msra.mxu0 0.0
    %3842 = vmatprep.subr.mxu0 0.0
    %3843 = vmatpush1.msra.mxu0 0.0
    %3844 = vmatprep.subr.mxu0 0.0
    %3845 = vmatpush1.msra.mxu0 0.0
    %3846 = vmatprep.subr.mxu0 0.0
    %3847 = vmatpush1.msra.mxu0 0.0
    %3848 = vmatprep.subr.mxu0 %v3579
    %3849 = vmatpush1.msra.mxu0 %v3578
    %3850 = vmatprep.subr.mxu0 %v3547
    %3851 = vmatpush1.msra.mxu0 %v3546
    %3852 = vmatprep.subr.mxu0 %v3515
    %3853 = vmatpush1.msra.mxu0 %v3514
    %3854 = vmatprep.subr.mxu0 %v3483
    %3855 = vmatpush1.msra.mxu0 %v3482
    %3856 = vmatprep.subr.mxu0 0.0
    %3857 = vmatpush2.msra.mxu0 0.0
    %3858 = vmatprep.subr.mxu0 0.0
    %3859 = vmatpush2.msra.mxu0 0.0
    %3860 = vmatprep.subr.mxu0 0.0
    %3861 = vmatpush2.msra.mxu0 0.0
    %3862 = vmatprep.subr.mxu0 0.0
    %3863 = vmatpush2.msra.mxu0 0.0
    %3864 = vmatprep.subr.mxu0 0.0
    %3865 = vmatpush2.msra.mxu0 0.0
    %3866 = vmatprep.subr.mxu0 0.0
    %3867 = vmatpush2.msra.mxu0 0.0
    %3868 = vmatprep.subr.mxu0 0.0
    %3869 = vmatpush2.msra.mxu0 0.0
    %3870 = vmatprep.subr.mxu0 0.0
    %3871 = vmatpush2.msra.mxu0 0.0
    %3872 = vmatprep.subr.mxu0 0.0
    %3873 = vmatpush2.msra.mxu0 0.0
    %3874 = vmatprep.subr.mxu0 0.0
    %3875 = vmatpush2.msra.mxu0 0.0
    %3876 = vmatprep.subr.mxu0 0.0
    %3877 = vmatpush2.msra.mxu0 0.0
    %3878 = vmatprep.subr.mxu0 0.0
    %3879 = vmatpush2.msra.mxu0 0.0
    %3880 = vmatprep.subr.mxu0 0.0
    %3881 = vmatpush2.msra.mxu0 0.0
    %3882 = vmatprep.subr.mxu0 0.0
    %3883 = vmatpush2.msra.mxu0 0.0
    %3884 = vmatprep.subr.mxu0 0.0
    %3885 = vmatpush2.msra.mxu0 0.0
    %3886 = vmatprep.subr.mxu0 0.0
    %3887 = vmatpush2.msra.mxu0 0.0
    %3888 = vmatprep.mubr.f32.mxu0 0.0
    %3889 = vmatmul.mubr.f32.gmra.mxu0 %v3609
    %v3890 = vpop.f32.mrf.mxu0
    %v3891 = vadd.f32 %v3606, %v3890
    %v3892 = vpop.f32.mrf.mxu0
    %v3893 = vadd.f32 %v3606, %v3892
    %3894 = vdwg.mxu0
    %3895 = vmatprep.subr.mxu0 0.0
    %3896 = vmatpush1.msra.mxu0 0.0
    %3897 = vmatprep.subr.mxu0 0.0
    %3898 = vmatpush1.msra.mxu0 0.0
    %3899 = vmatprep.subr.mxu0 0.0
    %3900 = vmatpush1.msra.mxu0 0.0
    %3901 = vmatprep.subr.mxu0 0.0
    %3902 = vmatpush1.msra.mxu0 0.0
    %3903 = vmatprep.subr.mxu0 0.0
    %3904 = vmatpush1.msra.mxu0 0.0
    %3905 = vmatprep.subr.mxu0 0.0
    %3906 = vmatpush1.msra.mxu0 0.0
    %3907 = vmatprep.subr.mxu0 0.0
    %3908 = vmatpush1.msra.mxu0 0.0
    %3909 = vmatprep.subr.mxu0 0.0
    %3910 = vmatpush1.msra.mxu0 0.0
    %3911 = vmatprep.subr.mxu0 0.0
    %3912 = vmatpush1.msra.mxu0 0.0
    %3913 = vmatprep.subr.mxu0 0.0
    %3914 = vmatpush1.msra.mxu0 0.0
    %3915 = vmatprep.subr.mxu0 0.0
    %3916 = vmatpush1.msra.mxu0 0.0
    %3917 = vmatprep.subr.mxu0 0.0
    %3918 = vmatpush1.msra.mxu0 0.0
    %3919 = vmatprep.subr.mxu0 %v3581
    %3920 = vmatpush1.msra.mxu0 %v3580
    %3921 = vmatprep.subr.mxu0 %v3549
    %3922 = vmatpush1.msra.mxu0 %v3548
    %3923 = vmatprep.subr.mxu0 %v3517
    %3924 = vmatpush1.msra.mxu0 %v3516
    %3925 = vmatprep.subr.mxu0 %v3485
    %3926 = vmatpush1.msra.mxu0 %v3484
    %3927 = vmatprep.subr.mxu0 0.0
    %3928 = vmatpush2.msra.mxu0 0.0
    %3929 = vmatprep.subr.mxu0 0.0
    %3930 = vmatpush2.msra.mxu0 0.0
    %3931 = vmatprep.subr.mxu0 0.0
    %3932 = vmatpush2.msra.mxu0 0.0
    %3933 = vmatprep.subr.mxu0 0.0
    %3934 = vmatpush2.msra.mxu0 0.0
    %3935 = vmatprep.subr.mxu0 0.0
    %3936 = vmatpush2.msra.mxu0 0.0
    %3937 = vmatprep.subr.mxu0 0.0
    %3938 = vmatpush2.msra.mxu0 0.0
    %3939 = vmatprep.subr.mxu0 0.0
    %3940 = vmatpush2.msra.mxu0 0.0
    %3941 = vmatprep.subr.mxu0 0.0
    %3942 = vmatpush2.msra.mxu0 0.0
    %3943 = vmatprep.subr.mxu0 0.0
    %3944 = vmatpush2.msra.mxu0 0.0
    %3945 = vmatprep.subr.mxu0 0.0
    %3946 = vmatpush2.msra.mxu0 0.0
    %3947 = vmatprep.subr.mxu0 0.0
    %3948 = vmatpush2.msra.mxu0 0.0
    %3949 = vmatprep.subr.mxu0 0.0
    %3950 = vmatpush2.msra.mxu0 0.0
    %3951 = vmatprep.subr.mxu0 0.0
    %3952 = vmatpush2.msra.mxu0 0.0
    %3953 = vmatprep.subr.mxu0 0.0
    %3954 = vmatpush2.msra.mxu0 0.0
    %3955 = vmatprep.subr.mxu0 0.0
    %3956 = vmatpush2.msra.mxu0 0.0
    %3957 = vmatprep.subr.mxu0 0.0
    %3958 = vmatpush2.msra.mxu0 0.0
    %3959 = vmatprep.mubr.f32.mxu0 0.0
    %3960 = vmatmul.mubr.f32.gmra.mxu0 %v3609
    %v3961 = vpop.f32.mrf.mxu0
    %v3962 = vadd.f32 %v3606, %v3961
    %v3963 = vpop.f32.mrf.mxu0
    %v3964 = vadd.f32 %v3606, %v3963
    %3965 = vdwg.mxu0
    %3966 = vmatprep.subr.mxu0 0.0
    %3967 = vmatpush1.msra.mxu0 0.0
    %3968 = vmatprep.subr.mxu0 0.0
    %3969 = vmatpush1.msra.mxu0 0.0
    %3970 = vmatprep.subr.mxu0 0.0
    %3971 = vmatpush1.msra.mxu0 0.0
    %3972 = vmatprep.subr.mxu0 0.0
    %3973 = vmatpush1.msra.mxu0 0.0
    %3974 = vmatprep.subr.mxu0 0.0
    %3975 = vmatpush1.msra.mxu0 0.0
    %3976 = vmatprep.subr.mxu0 0.0
    %3977 = vmatpush1.msra.mxu0 0.0
    %3978 = vmatprep.subr.mxu0 0.0
    %3979 = vmatpush1.msra.mxu0 0.0
    %3980 = vmatprep.subr.mxu0 0.0
    %3981 = vmatpush1.msra.mxu0 0.0
    %3982 = vmatprep.subr.mxu0 0.0
    %3983 = vmatpush1.msra.mxu0 0.0
    %3984 = vmatprep.subr.mxu0 0.0
    %3985 = vmatpush1.msra.mxu0 0.0
    %3986 = vmatprep.subr.mxu0 0.0
    %3987 = vmatpush1.msra.mxu0 0.0
    %3988 = vmatprep.subr.mxu0 0.0
    %3989 = vmatpush1.msra.mxu0 0.0
    %3990 = vmatprep.subr.mxu0 %v3583
    %3991 = vmatpush1.msra.mxu0 %v3582
    %3992 = vmatprep.subr.mxu0 %v3551
    %3993 = vmatpush1.msra.mxu0 %v3550
    %3994 = vmatprep.subr.mxu0 %v3519
    %3995 = vmatpush1.msra.mxu0 %v3518
    %3996 = vmatprep.subr.mxu0 %v3487
    %3997 = vmatpush1.msra.mxu0 %v3486
    %3998 = vmatprep.subr.mxu0 0.0
    %3999 = vmatpush2.msra.mxu0 0.0
    %4000 = vmatprep.subr.mxu0 0.0
    %4001 = vmatpush2.msra.mxu0 0.0
    %4002 = vmatprep.subr.mxu0 0.0
    %4003 = vmatpush2.msra.mxu0 0.0
    %4004 = vmatprep.subr.mxu0 0.0
    %4005 = vmatpush2.msra.mxu0 0.0
    %4006 = vmatprep.subr.mxu0 0.0
    %4007 = vmatpush2.msra.mxu0 0.0
    %4008 = vmatprep.subr.mxu0 0.0
    %4009 = vmatpush2.msra.mxu0 0.0
    %4010 = vmatprep.subr.mxu0 0.0
    %4011 = vmatpush2.msra.mxu0 0.0
    %4012 = vmatprep.subr.mxu0 0.0
    %4013 = vmatpush2.msra.mxu0 0.0
    %4014 = vmatprep.subr.mxu0 0.0
    %4015 = vmatpush2.msra.mxu0 0.0
    %4016 = vmatprep.subr.mxu0 0.0
    %4017 = vmatpush2.msra.mxu0 0.0
    %4018 = vmatprep.subr.mxu0 0.0
    %4019 = vmatpush2.msra.mxu0 0.0
    %4020 = vmatprep.subr.mxu0 0.0
    %4021 = vmatpush2.msra.mxu0 0.0
    %4022 = vmatprep.subr.mxu0 0.0
    %4023 = vmatpush2.msra.mxu0 0.0
    %4024 = vmatprep.subr.mxu0 0.0
    %4025 = vmatpush2.msra.mxu0 0.0
    %4026 = vmatprep.subr.mxu0 0.0
    %4027 = vmatpush2.msra.mxu0 0.0
    %4028 = vmatprep.subr.mxu0 0.0
    %4029 = vmatpush2.msra.mxu0 0.0
    %4030 = vmatprep.mubr.f32.mxu0 0.0
    %4031 = vmatmul.mubr.f32.gmra.mxu0 %v3609
    %v4032 = vpop.f32.mrf.mxu0
    %v4033 = vadd.f32 %v3606, %v4032
    %v4034 = vpop.f32.mrf.mxu0
    %v4035 = vadd.f32 %v3606, %v4034
    %4036 = vdwg.mxu0
    %4037 = vmatprep.subr.mxu0 0.0
    %4038 = vmatpush1.msra.mxu0 0.0
    %4039 = vmatprep.subr.mxu0 0.0
    %4040 = vmatpush1.msra.mxu0 0.0
    %4041 = vmatprep.subr.mxu0 0.0
    %4042 = vmatpush1.msra.mxu0 0.0
    %4043 = vmatprep.subr.mxu0 0.0
    %4044 = vmatpush1.msra.mxu0 0.0
    %4045 = vmatprep.subr.mxu0 0.0
    %4046 = vmatpush1.msra.mxu0 0.0
    %4047 = vmatprep.subr.mxu0 0.0
    %4048 = vmatpush1.msra.mxu0 0.0
    %4049 = vmatprep.subr.mxu0 0.0
    %4050 = vmatpush1.msra.mxu0 0.0
    %4051 = vmatprep.subr.mxu0 0.0
    %4052 = vmatpush1.msra.mxu0 0.0
    %4053 = vmatprep.subr.mxu0 0.0
    %4054 = vmatpush1.msra.mxu0 0.0
    %4055 = vmatprep.subr.mxu0 0.0
    %4056 = vmatpush1.msra.mxu0 0.0
    %4057 = vmatprep.subr.mxu0 0.0
    %4058 = vmatpush1.msra.mxu0 0.0
    %4059 = vmatprep.subr.mxu0 0.0
    %4060 = vmatpush1.msra.mxu0 0.0
    %4061 = vmatprep.subr.mxu0 %v3585
    %4062 = vmatpush1.msra.mxu0 %v3584
    %4063 = vmatprep.subr.mxu0 %v3553
    %4064 = vmatpush1.msra.mxu0 %v3552
    %4065 = vmatprep.subr.mxu0 %v3521
    %4066 = vmatpush1.msra.mxu0 %v3520
    %4067 = vmatprep.subr.mxu0 %v3489
    %4068 = vmatpush1.msra.mxu0 %v3488
    %4069 = vmatprep.subr.mxu0 0.0
    %4070 = vmatpush2.msra.mxu0 0.0
    %4071 = vmatprep.subr.mxu0 0.0
    %4072 = vmatpush2.msra.mxu0 0.0
    %4073 = vmatprep.subr.mxu0 0.0
    %4074 = vmatpush2.msra.mxu0 0.0
    %4075 = vmatprep.subr.mxu0 0.0
    %4076 = vmatpush2.msra.mxu0 0.0
    %4077 = vmatprep.subr.mxu0 0.0
    %4078 = vmatpush2.msra.mxu0 0.0
    %4079 = vmatprep.subr.mxu0 0.0
    %4080 = vmatpush2.msra.mxu0 0.0
    %4081 = vmatprep.subr.mxu0 0.0
    %4082 = vmatpush2.msra.mxu0 0.0
    %4083 = vmatprep.subr.mxu0 0.0
    %4084 = vmatpush2.msra.mxu0 0.0
    %4085 = vmatprep.subr.mxu0 0.0
    %4086 = vmatpush2.msra.mxu0 0.0
    %4087 = vmatprep.subr.mxu0 0.0
    %4088 = vmatpush2.msra.mxu0 0.0
    %4089 = vmatprep.subr.mxu0 0.0
    %4090 = vmatpush2.msra.mxu0 0.0
    %4091 = vmatprep.subr.mxu0 0.0
    %4092 = vmatpush2.msra.mxu0 0.0
    %4093 = vmatprep.subr.mxu0 0.0
    %4094 = vmatpush2.msra.mxu0 0.0
    %4095 = vmatprep.subr.mxu0 0.0
    %4096 = vmatpush2.msra.mxu0 0.0
    %4097 = vmatprep.subr.mxu0 0.0
    %4098 = vmatpush2.msra.mxu0 0.0
    %4099 = vmatprep.subr.mxu0 0.0
    %4100 = vmatpush2.msra.mxu0 0.0
    %4101 = vmatprep.mubr.f32.mxu0 0.0
    %4102 = vmatmul.mubr.f32.gmra.mxu0 %v3609
    %v4103 = vpop.f32.mrf.mxu0
    %v4104 = vadd.f32 %v3606, %v4103
    %v4105 = vpop.f32.mrf.mxu0
    %v4106 = vadd.f32 %v3606, %v4105
    %4107 = vdwg.mxu0
    %4108 = vmatprep.subr.mxu0 0.0
    %4109 = vmatpush1.msra.mxu0 0.0
    %4110 = vmatprep.subr.mxu0 0.0
    %4111 = vmatpush1.msra.mxu0 0.0
    %4112 = vmatprep.subr.mxu0 0.0
    %4113 = vmatpush1.msra.mxu0 0.0
    %4114 = vmatprep.subr.mxu0 0.0
    %4115 = vmatpush1.msra.mxu0 0.0
    %4116 = vmatprep.subr.mxu0 0.0
    %4117 = vmatpush1.msra.mxu0 0.0
    %4118 = vmatprep.subr.mxu0 0.0
    %4119 = vmatpush1.msra.mxu0 0.0
    %4120 = vmatprep.subr.mxu0 0.0
    %4121 = vmatpush1.msra.mxu0 0.0
    %4122 = vmatprep.subr.mxu0 0.0
    %4123 = vmatpush1.msra.mxu0 0.0
    %4124 = vmatprep.subr.mxu0 0.0
    %4125 = vmatpush1.msra.mxu0 0.0
    %4126 = vmatprep.subr.mxu0 0.0
    %4127 = vmatpush1.msra.mxu0 0.0
    %4128 = vmatprep.subr.mxu0 0.0
    %4129 = vmatpush1.msra.mxu0 0.0
    %4130 = vmatprep.subr.mxu0 0.0
    %4131 = vmatpush1.msra.mxu0 0.0
    %4132 = vmatprep.subr.mxu0 %v3587
    %4133 = vmatpush1.msra.mxu0 %v3586
    %4134 = vmatprep.subr.mxu0 %v3555
    %4135 = vmatpush1.msra.mxu0 %v3554
    %4136 = vmatprep.subr.mxu0 %v3523
    %4137 = vmatpush1.msra.mxu0 %v3522
    %4138 = vmatprep.subr.mxu0 %v3491
    %4139 = vmatpush1.msra.mxu0 %v3490
    %4140 = vmatprep.subr.mxu0 0.0
    %4141 = vmatpush2.msra.mxu0 0.0
    %4142 = vmatprep.subr.mxu0 0.0
    %4143 = vmatpush2.msra.mxu0 0.0
    %4144 = vmatprep.subr.mxu0 0.0
    %4145 = vmatpush2.msra.mxu0 0.0
    %4146 = vmatprep.subr.mxu0 0.0
    %4147 = vmatpush2.msra.mxu0 0.0
    %4148 = vmatprep.subr.mxu0 0.0
    %4149 = vmatpush2.msra.mxu0 0.0
    %4150 = vmatprep.subr.mxu0 0.0
    %4151 = vmatpush2.msra.mxu0 0.0
    %4152 = vmatprep.subr.mxu0 0.0
    %4153 = vmatpush2.msra.mxu0 0.0
    %4154 = vmatprep.subr.mxu0 0.0
    %4155 = vmatpush2.msra.mxu0 0.0
    %4156 = vmatprep.subr.mxu0 0.0
    %4157 = vmatpush2.msra.mxu0 0.0
    %4158 = vmatprep.subr.mxu0 0.0
    %4159 = vmatpush2.msra.mxu0 0.0
    %4160 = vmatprep.subr.mxu0 0.0
    %4161 = vmatpush2.msra.mxu0 0.0
    %4162 = vmatprep.subr.mxu0 0.0
    %4163 = vmatpush2.msra.mxu0 0.0
    %4164 = vmatprep.subr.mxu0 0.0
    %4165 = vmatpush2.msra.mxu0 0.0
    %4166 = vmatprep.subr.mxu0 0.0
    %4167 = vmatpush2.msra.mxu0 0.0
    %4168 = vmatprep.subr.mxu0 0.0
    %4169 = vmatpush2.msra.mxu0 0.0
    %4170 = vmatprep.subr.mxu0 0.0
    %4171 = vmatpush2.msra.mxu0 0.0
    %4172 = vmatprep.mubr.f32.mxu0 0.0
    %4173 = vmatmul.mubr.f32.gmra.mxu0 %v3609
    %v4174 = vpop.f32.mrf.mxu0
    %v4175 = vadd.f32 %v3606, %v4174
    %v4176 = vpop.f32.mrf.mxu0
    %v4177 = vadd.f32 %v3606, %v4176
    %4178 = vdwg.mxu0
    %4179 = vmatprep.subr.mxu0 0.0
    %4180 = vmatpush1.msra.mxu0 0.0
    %4181 = vmatprep.subr.mxu0 0.0
    %4182 = vmatpush1.msra.mxu0 0.0
    %4183 = vmatprep.subr.mxu0 0.0
    %4184 = vmatpush1.msra.mxu0 0.0
    %4185 = vmatprep.subr.mxu0 0.0
    %4186 = vmatpush1.msra.mxu0 0.0
    %4187 = vmatprep.subr.mxu0 0.0
    %4188 = vmatpush1.msra.mxu0 0.0
    %4189 = vmatprep.subr.mxu0 0.0
    %4190 = vmatpush1.msra.mxu0 0.0
    %4191 = vmatprep.subr.mxu0 0.0
    %4192 = vmatpush1.msra.mxu0 0.0
    %4193 = vmatprep.subr.mxu0 0.0
    %4194 = vmatpush1.msra.mxu0 0.0
    %4195 = vmatprep.subr.mxu0 0.0
    %4196 = vmatpush1.msra.mxu0 0.0
    %4197 = vmatprep.subr.mxu0 0.0
    %4198 = vmatpush1.msra.mxu0 0.0
    %4199 = vmatprep.subr.mxu0 0.0
    %4200 = vmatpush1.msra.mxu0 0.0
    %4201 = vmatprep.subr.mxu0 0.0
    %4202 = vmatpush1.msra.mxu0 0.0
    %4203 = vmatprep.subr.mxu0 %v3589
    %4204 = vmatpush1.msra.mxu0 %v3588
    %4205 = vmatprep.subr.mxu0 %v3557
    %4206 = vmatpush1.msra.mxu0 %v3556
    %4207 = vmatprep.subr.mxu0 %v3525
    %4208 = vmatpush1.msra.mxu0 %v3524
    %4209 = vmatprep.subr.mxu0 %v3493
    %4210 = vmatpush1.msra.mxu0 %v3492
    %4211 = vmatprep.subr.mxu0 0.0
    %4212 = vmatpush2.msra.mxu0 0.0
    %4213 = vmatprep.subr.mxu0 0.0
    %4214 = vmatpush2.msra.mxu0 0.0
    %4215 = vmatprep.subr.mxu0 0.0
    %4216 = vmatpush2.msra.mxu0 0.0
    %4217 = vmatprep.subr.mxu0 0.0
    %4218 = vmatpush2.msra.mxu0 0.0
    %4219 = vmatprep.subr.mxu0 0.0
    %4220 = vmatpush2.msra.mxu0 0.0
    %4221 = vmatprep.subr.mxu0 0.0
    %4222 = vmatpush2.msra.mxu0 0.0
    %4223 = vmatprep.subr.mxu0 0.0
    %4224 = vmatpush2.msra.mxu0 0.0
    %4225 = vmatprep.subr.mxu0 0.0
    %4226 = vmatpush2.msra.mxu0 0.0
    %4227 = vmatprep.subr.mxu0 0.0
    %4228 = vmatpush2.msra.mxu0 0.0
    %4229 = vmatprep.subr.mxu0 0.0
    %4230 = vmatpush2.msra.mxu0 0.0
    %4231 = vmatprep.subr.mxu0 0.0
    %4232 = vmatpush2.msra.mxu0 0.0
    %4233 = vmatprep.subr.mxu0 0.0
    %4234 = vmatpush2.msra.mxu0 0.0
    %4235 = vmatprep.subr.mxu0 0.0
    %4236 = vmatpush2.msra.mxu0 0.0
    %4237 = vmatprep.subr.mxu0 0.0
    %4238 = vmatpush2.msra.mxu0 0.0
    %4239 = vmatprep.subr.mxu0 0.0
    %4240 = vmatpush2.msra.mxu0 0.0
    %4241 = vmatprep.subr.mxu0 0.0
    %4242 = vmatpush2.msra.mxu0 0.0
    %4243 = vmatprep.mubr.f32.mxu0 0.0
    %4244 = vmatmul.mubr.f32.gmra.mxu0 %v3609
    %v4245 = vpop.f32.mrf.mxu0
    %v4246 = vadd.f32 %v3606, %v4245
    %v4247 = vpop.f32.mrf.mxu0
    %v4248 = vadd.f32 %v3606, %v4247
    %4249 = vdwg.mxu0
    %4250 = vmatprep.subr.mxu0 0.0
    %4251 = vmatpush1.msra.mxu0 0.0
    %4252 = vmatprep.subr.mxu0 0.0
    %4253 = vmatpush1.msra.mxu0 0.0
    %4254 = vmatprep.subr.mxu0 0.0
    %4255 = vmatpush1.msra.mxu0 0.0
    %4256 = vmatprep.subr.mxu0 0.0
    %4257 = vmatpush1.msra.mxu0 0.0
    %4258 = vmatprep.subr.mxu0 0.0
    %4259 = vmatpush1.msra.mxu0 0.0
    %4260 = vmatprep.subr.mxu0 0.0
    %4261 = vmatpush1.msra.mxu0 0.0
    %4262 = vmatprep.subr.mxu0 0.0
    %4263 = vmatpush1.msra.mxu0 0.0
    %4264 = vmatprep.subr.mxu0 0.0
    %4265 = vmatpush1.msra.mxu0 0.0
    %4266 = vmatprep.subr.mxu0 0.0
    %4267 = vmatpush1.msra.mxu0 0.0
    %4268 = vmatprep.subr.mxu0 0.0
    %4269 = vmatpush1.msra.mxu0 0.0
    %4270 = vmatprep.subr.mxu0 0.0
    %4271 = vmatpush1.msra.mxu0 0.0
    %4272 = vmatprep.subr.mxu0 0.0
    %4273 = vmatpush1.msra.mxu0 0.0
    %4274 = vmatprep.subr.mxu0 %v3591
    %4275 = vmatpush1.msra.mxu0 %v3590
    %4276 = vmatprep.subr.mxu0 %v3559
    %4277 = vmatpush1.msra.mxu0 %v3558
    %4278 = vmatprep.subr.mxu0 %v3527
    %4279 = vmatpush1.msra.mxu0 %v3526
    %4280 = vmatprep.subr.mxu0 %v3495
    %4281 = vmatpush1.msra.mxu0 %v3494
    %4282 = vmatprep.subr.mxu0 0.0
    %4283 = vmatpush2.msra.mxu0 0.0
    %4284 = vmatprep.subr.mxu0 0.0
    %4285 = vmatpush2.msra.mxu0 0.0
    %4286 = vmatprep.subr.mxu0 0.0
    %4287 = vmatpush2.msra.mxu0 0.0
    %4288 = vmatprep.subr.mxu0 0.0
    %4289 = vmatpush2.msra.mxu0 0.0
    %4290 = vmatprep.subr.mxu0 0.0
    %4291 = vmatpush2.msra.mxu0 0.0
    %4292 = vmatprep.subr.mxu0 0.0
    %4293 = vmatpush2.msra.mxu0 0.0
    %4294 = vmatprep.subr.mxu0 0.0
    %4295 = vmatpush2.msra.mxu0 0.0
    %4296 = vmatprep.subr.mxu0 0.0
    %4297 = vmatpush2.msra.mxu0 0.0
    %4298 = vmatprep.subr.mxu0 0.0
    %4299 = vmatpush2.msra.mxu0 0.0
    %4300 = vmatprep.subr.mxu0 0.0
    %4301 = vmatpush2.msra.mxu0 0.0
    %4302 = vmatprep.subr.mxu0 0.0
    %4303 = vmatpush2.msra.mxu0 0.0
    %4304 = vmatprep.subr.mxu0 0.0
    %4305 = vmatpush2.msra.mxu0 0.0
    %4306 = vmatprep.subr.mxu0 0.0
    %4307 = vmatpush2.msra.mxu0 0.0
    %4308 = vmatprep.subr.mxu0 0.0
    %4309 = vmatpush2.msra.mxu0 0.0
    %4310 = vmatprep.subr.mxu0 0.0
    %4311 = vmatpush2.msra.mxu0 0.0
    %4312 = vmatprep.subr.mxu0 0.0
    %4313 = vmatpush2.msra.mxu0 0.0
    %4314 = vmatprep.mubr.f32.mxu0 0.0
    %4315 = vmatmul.mubr.f32.gmra.mxu0 %v3609
    %v4316 = vpop.f32.mrf.mxu0
    %v4317 = vadd.f32 %v3606, %v4316
    %v4318 = vpop.f32.mrf.mxu0
    %v4319 = vadd.f32 %v3606, %v4318
    %4320 = vdwg.mxu0
    %4321 = vmatprep.subr.mxu0 0.0
    %4322 = vmatpush1.msra.mxu0 0.0
    %4323 = vmatprep.subr.mxu0 0.0
    %4324 = vmatpush1.msra.mxu0 0.0
    %4325 = vmatprep.subr.mxu0 0.0
    %4326 = vmatpush1.msra.mxu0 0.0
    %4327 = vmatprep.subr.mxu0 0.0
    %4328 = vmatpush1.msra.mxu0 0.0
    %4329 = vmatprep.subr.mxu0 0.0
    %4330 = vmatpush1.msra.mxu0 0.0
    %4331 = vmatprep.subr.mxu0 0.0
    %4332 = vmatpush1.msra.mxu0 0.0
    %4333 = vmatprep.subr.mxu0 0.0
    %4334 = vmatpush1.msra.mxu0 0.0
    %4335 = vmatprep.subr.mxu0 0.0
    %4336 = vmatpush1.msra.mxu0 0.0
    %4337 = vmatprep.subr.mxu0 0.0
    %4338 = vmatpush1.msra.mxu0 0.0
    %4339 = vmatprep.subr.mxu0 0.0
    %4340 = vmatpush1.msra.mxu0 0.0
    %4341 = vmatprep.subr.mxu0 0.0
    %4342 = vmatpush1.msra.mxu0 0.0
    %4343 = vmatprep.subr.mxu0 0.0
    %4344 = vmatpush1.msra.mxu0 0.0
    %4345 = vmatprep.subr.mxu0 %v3593
    %4346 = vmatpush1.msra.mxu0 %v3592
    %4347 = vmatprep.subr.mxu0 %v3561
    %4348 = vmatpush1.msra.mxu0 %v3560
    %4349 = vmatprep.subr.mxu0 %v3529
    %4350 = vmatpush1.msra.mxu0 %v3528
    %4351 = vmatprep.subr.mxu0 %v3497
    %4352 = vmatpush1.msra.mxu0 %v3496
    %4353 = vmatprep.subr.mxu0 0.0
    %4354 = vmatpush2.msra.mxu0 0.0
    %4355 = vmatprep.subr.mxu0 0.0
    %4356 = vmatpush2.msra.mxu0 0.0
    %4357 = vmatprep.subr.mxu0 0.0
    %4358 = vmatpush2.msra.mxu0 0.0
    %4359 = vmatprep.subr.mxu0 0.0
    %4360 = vmatpush2.msra.mxu0 0.0
    %4361 = vmatprep.subr.mxu0 0.0
    %4362 = vmatpush2.msra.mxu0 0.0
    %4363 = vmatprep.subr.mxu0 0.0
    %4364 = vmatpush2.msra.mxu0 0.0
    %4365 = vmatprep.subr.mxu0 0.0
    %4366 = vmatpush2.msra.mxu0 0.0
    %4367 = vmatprep.subr.mxu0 0.0
    %4368 = vmatpush2.msra.mxu0 0.0
    %4369 = vmatprep.subr.mxu0 0.0
    %4370 = vmatpush2.msra.mxu0 0.0
    %4371 = vmatprep.subr.mxu0 0.0
    %4372 = vmatpush2.msra.mxu0 0.0
    %4373 = vmatprep.subr.mxu0 0.0
    %4374 = vmatpush2.msra.mxu0 0.0
    %4375 = vmatprep.subr.mxu0 0.0
    %4376 = vmatpush2.msra.mxu0 0.0
    %4377 = vmatprep.subr.mxu0 0.0
    %4378 = vmatpush2.msra.mxu0 0.0
    %4379 = vmatprep.subr.mxu0 0.0
    %4380 = vmatpush2.msra.mxu0 0.0
    %4381 = vmatprep.subr.mxu0 0.0
    %4382 = vmatpush2.msra.mxu0 0.0
    %4383 = vmatprep.subr.mxu0 0.0
    %4384 = vmatpush2.msra.mxu0 0.0
    %4385 = vmatprep.mubr.f32.mxu0 0.0
    %4386 = vmatmul.mubr.f32.gmra.mxu0 %v3609
    %v4387 = vpop.f32.mrf.mxu0
    %v4388 = vadd.f32 %v3606, %v4387
    %v4389 = vpop.f32.mrf.mxu0
    %v4390 = vadd.f32 %v3606, %v4389
    %4391 = vdwg.mxu0
    %4392 = vmatprep.subr.mxu0 0.0
    %4393 = vmatpush1.msra.mxu0 0.0
    %4394 = vmatprep.subr.mxu0 0.0
    %4395 = vmatpush1.msra.mxu0 0.0
    %4396 = vmatprep.subr.mxu0 0.0
    %4397 = vmatpush1.msra.mxu0 0.0
    %4398 = vmatprep.subr.mxu0 0.0
    %4399 = vmatpush1.msra.mxu0 0.0
    %4400 = vmatprep.subr.mxu0 0.0
    %4401 = vmatpush1.msra.mxu0 0.0
    %4402 = vmatprep.subr.mxu0 0.0
    %4403 = vmatpush1.msra.mxu0 0.0
    %4404 = vmatprep.subr.mxu0 0.0
    %4405 = vmatpush1.msra.mxu0 0.0
    %4406 = vmatprep.subr.mxu0 0.0
    %4407 = vmatpush1.msra.mxu0 0.0
    %4408 = vmatprep.subr.mxu0 0.0
    %4409 = vmatpush1.msra.mxu0 0.0
    %4410 = vmatprep.subr.mxu0 0.0
    %4411 = vmatpush1.msra.mxu0 0.0
    %4412 = vmatprep.subr.mxu0 0.0
    %4413 = vmatpush1.msra.mxu0 0.0
    %4414 = vmatprep.subr.mxu0 0.0
    %4415 = vmatpush1.msra.mxu0 0.0
    %4416 = vmatprep.subr.mxu0 %v3595
    %4417 = vmatpush1.msra.mxu0 %v3594
    %4418 = vmatprep.subr.mxu0 %v3563
    %4419 = vmatpush1.msra.mxu0 %v3562
    %4420 = vmatprep.subr.mxu0 %v3531
    %4421 = vmatpush1.msra.mxu0 %v3530
    %4422 = vmatprep.subr.mxu0 %v3499
    %4423 = vmatpush1.msra.mxu0 %v3498
    %4424 = vmatprep.subr.mxu0 0.0
    %4425 = vmatpush2.msra.mxu0 0.0
    %4426 = vmatprep.subr.mxu0 0.0
    %4427 = vmatpush2.msra.mxu0 0.0
    %4428 = vmatprep.subr.mxu0 0.0
    %4429 = vmatpush2.msra.mxu0 0.0
    %4430 = vmatprep.subr.mxu0 0.0
    %4431 = vmatpush2.msra.mxu0 0.0
    %4432 = vmatprep.subr.mxu0 0.0
    %4433 = vmatpush2.msra.mxu0 0.0
    %4434 = vmatprep.subr.mxu0 0.0
    %4435 = vmatpush2.msra.mxu0 0.0
    %4436 = vmatprep.subr.mxu0 0.0
    %4437 = vmatpush2.msra.mxu0 0.0
    %4438 = vmatprep.subr.mxu0 0.0
    %4439 = vmatpush2.msra.mxu0 0.0
    %4440 = vmatprep.subr.mxu0 0.0
    %4441 = vmatpush2.msra.mxu0 0.0
    %4442 = vmatprep.subr.mxu0 0.0
    %4443 = vmatpush2.msra.mxu0 0.0
    %4444 = vmatprep.subr.mxu0 0.0
    %4445 = vmatpush2.msra.mxu0 0.0
    %4446 = vmatprep.subr.mxu0 0.0
    %4447 = vmatpush2.msra.mxu0 0.0
    %4448 = vmatprep.subr.mxu0 0.0
    %4449 = vmatpush2.msra.mxu0 0.0
    %4450 = vmatprep.subr.mxu0 0.0
    %4451 = vmatpush2.msra.mxu0 0.0
    %4452 = vmatprep.subr.mxu0 0.0
    %4453 = vmatpush2.msra.mxu0 0.0
    %4454 = vmatprep.subr.mxu0 0.0
    %4455 = vmatpush2.msra.mxu0 0.0
    %4456 = vmatprep.mubr.f32.mxu0 0.0
    %4457 = vmatmul.mubr.f32.gmra.mxu0 %v3609
    %v4458 = vpop.f32.mrf.mxu0
    %v4459 = vadd.f32 %v3606, %v4458
    %v4460 = vpop.f32.mrf.mxu0
    %v4461 = vadd.f32 %v3606, %v4460
    %4462 = vdwg.mxu0
    %4463 = vmatprep.subr.mxu0 0.0
    %4464 = vmatpush1.msra.mxu0 0.0
    %4465 = vmatprep.subr.mxu0 0.0
    %4466 = vmatpush1.msra.mxu0 0.0
    %4467 = vmatprep.subr.mxu0 0.0
    %4468 = vmatpush1.msra.mxu0 0.0
    %4469 = vmatprep.subr.mxu0 0.0
    %4470 = vmatpush1.msra.mxu0 0.0
    %4471 = vmatprep.subr.mxu0 0.0
    %4472 = vmatpush1.msra.mxu0 0.0
    %4473 = vmatprep.subr.mxu0 0.0
    %4474 = vmatpush1.msra.mxu0 0.0
    %4475 = vmatprep.subr.mxu0 0.0
    %4476 = vmatpush1.msra.mxu0 0.0
    %4477 = vmatprep.subr.mxu0 0.0
    %4478 = vmatpush1.msra.mxu0 0.0
    %4479 = vmatprep.subr.mxu0 0.0
    %4480 = vmatpush1.msra.mxu0 0.0
    %4481 = vmatprep.subr.mxu0 0.0
    %4482 = vmatpush1.msra.mxu0 0.0
    %4483 = vmatprep.subr.mxu0 0.0
    %4484 = vmatpush1.msra.mxu0 0.0
    %4485 = vmatprep.subr.mxu0 0.0
    %4486 = vmatpush1.msra.mxu0 0.0
    %4487 = vmatprep.subr.mxu0 %v3597
    %4488 = vmatpush1.msra.mxu0 %v3596
    %4489 = vmatprep.subr.mxu0 %v3565
    %4490 = vmatpush1.msra.mxu0 %v3564
    %4491 = vmatprep.subr.mxu0 %v3533
    %4492 = vmatpush1.msra.mxu0 %v3532
    %4493 = vmatprep.subr.mxu0 %v3501
    %4494 = vmatpush1.msra.mxu0 %v3500
    %4495 = vmatprep.subr.mxu0 0.0
    %4496 = vmatpush2.msra.mxu0 0.0
    %4497 = vmatprep.subr.mxu0 0.0
    %4498 = vmatpush2.msra.mxu0 0.0
    %4499 = vmatprep.subr.mxu0 0.0
    %4500 = vmatpush2.msra.mxu0 0.0
    %4501 = vmatprep.subr.mxu0 0.0
    %4502 = vmatpush2.msra.mxu0 0.0
    %4503 = vmatprep.subr.mxu0 0.0
    %4504 = vmatpush2.msra.mxu0 0.0
    %4505 = vmatprep.subr.mxu0 0.0
    %4506 = vmatpush2.msra.mxu0 0.0
    %4507 = vmatprep.subr.mxu0 0.0
    %4508 = vmatpush2.msra.mxu0 0.0
    %4509 = vmatprep.subr.mxu0 0.0
    %4510 = vmatpush2.msra.mxu0 0.0
    %4511 = vmatprep.subr.mxu0 0.0
    %4512 = vmatpush2.msra.mxu0 0.0
    %4513 = vmatprep.subr.mxu0 0.0
    %4514 = vmatpush2.msra.mxu0 0.0
    %4515 = vmatprep.subr.mxu0 0.0
    %4516 = vmatpush2.msra.mxu0 0.0
    %4517 = vmatprep.subr.mxu0 0.0
    %4518 = vmatpush2.msra.mxu0 0.0
    %4519 = vmatprep.subr.mxu0 0.0
    %4520 = vmatpush2.msra.mxu0 0.0
    %4521 = vmatprep.subr.mxu0 0.0
    %4522 = vmatpush2.msra.mxu0 0.0
    %4523 = vmatprep.subr.mxu0 0.0
    %4524 = vmatpush2.msra.mxu0 0.0
    %4525 = vmatprep.subr.mxu0 0.0
    %4526 = vmatpush2.msra.mxu0 0.0
    %4527 = vmatprep.mubr.f32.mxu0 0.0
    %4528 = vmatmul.mubr.f32.gmra.mxu0 %v3609
    %v4529 = vpop.f32.mrf.mxu0
    %v4530 = vadd.f32 %v3606, %v4529
    %v4531 = vpop.f32.mrf.mxu0
    %v4532 = vadd.f32 %v3606, %v4531
    %4533 = vdwg.mxu0
    %4534 = vmatprep.subr.mxu0 0.0
    %4535 = vmatpush1.msra.mxu0 0.0
    %4536 = vmatprep.subr.mxu0 0.0
    %4537 = vmatpush1.msra.mxu0 0.0
    %4538 = vmatprep.subr.mxu0 0.0
    %4539 = vmatpush1.msra.mxu0 0.0
    %4540 = vmatprep.subr.mxu0 0.0
    %4541 = vmatpush1.msra.mxu0 0.0
    %4542 = vmatprep.subr.mxu0 0.0
    %4543 = vmatpush1.msra.mxu0 0.0
    %4544 = vmatprep.subr.mxu0 0.0
    %4545 = vmatpush1.msra.mxu0 0.0
    %4546 = vmatprep.subr.mxu0 0.0
    %4547 = vmatpush1.msra.mxu0 0.0
    %4548 = vmatprep.subr.mxu0 0.0
    %4549 = vmatpush1.msra.mxu0 0.0
    %4550 = vmatprep.subr.mxu0 0.0
    %4551 = vmatpush1.msra.mxu0 0.0
    %4552 = vmatprep.subr.mxu0 0.0
    %4553 = vmatpush1.msra.mxu0 0.0
    %4554 = vmatprep.subr.mxu0 0.0
    %4555 = vmatpush1.msra.mxu0 0.0
    %4556 = vmatprep.subr.mxu0 0.0
    %4557 = vmatpush1.msra.mxu0 0.0
    %4558 = vmatprep.subr.mxu0 %v3599
    %4559 = vmatpush1.msra.mxu0 %v3598
    %4560 = vmatprep.subr.mxu0 %v3567
    %4561 = vmatpush1.msra.mxu0 %v3566
    %4562 = vmatprep.subr.mxu0 %v3535
    %4563 = vmatpush1.msra.mxu0 %v3534
    %4564 = vmatprep.subr.mxu0 %v3503
    %4565 = vmatpush1.msra.mxu0 %v3502
    %4566 = vmatprep.subr.mxu0 0.0
    %4567 = vmatpush2.msra.mxu0 0.0
    %4568 = vmatprep.subr.mxu0 0.0
    %4569 = vmatpush2.msra.mxu0 0.0
    %4570 = vmatprep.subr.mxu0 0.0
    %4571 = vmatpush2.msra.mxu0 0.0
    %4572 = vmatprep.subr.mxu0 0.0
    %4573 = vmatpush2.msra.mxu0 0.0
    %4574 = vmatprep.subr.mxu0 0.0
    %4575 = vmatpush2.msra.mxu0 0.0
    %4576 = vmatprep.subr.mxu0 0.0
    %4577 = vmatpush2.msra.mxu0 0.0
    %4578 = vmatprep.subr.mxu0 0.0
    %4579 = vmatpush2.msra.mxu0 0.0
    %4580 = vmatprep.subr.mxu0 0.0
    %4581 = vmatpush2.msra.mxu0 0.0
    %4582 = vmatprep.subr.mxu0 0.0
    %4583 = vmatpush2.msra.mxu0 0.0
    %4584 = vmatprep.subr.mxu0 0.0
    %4585 = vmatpush2.msra.mxu0 0.0
    %4586 = vmatprep.subr.mxu0 0.0
    %4587 = vmatpush2.msra.mxu0 0.0
    %4588 = vmatprep.subr.mxu0 0.0
    %4589 = vmatpush2.msra.mxu0 0.0
    %4590 = vmatprep.subr.mxu0 0.0
    %4591 = vmatpush2.msra.mxu0 0.0
    %4592 = vmatprep.subr.mxu0 0.0
    %4593 = vmatpush2.msra.mxu0 0.0
    %4594 = vmatprep.subr.mxu0 0.0
    %4595 = vmatpush2.msra.mxu0 0.0
    %4596 = vmatprep.subr.mxu0 0.0
    %4597 = vmatpush2.msra.mxu0 0.0
    %4598 = vmatprep.mubr.f32.mxu0 0.0
    %4599 = vmatmul.mubr.f32.gmra.mxu0 %v3609
    %v4600 = vpop.f32.mrf.mxu0
    %v4601 = vadd.f32 %v3606, %v4600
    %v4602 = vpop.f32.mrf.mxu0
    %v4603 = vadd.f32 %v3606, %v4602
    %4604 = vdwg.mxu0
    %4605 = vmatprep.subr.mxu0 0.0
    %4606 = vmatpush1.msra.mxu0 0.0
    %4607 = vmatprep.subr.mxu0 0.0
    %4608 = vmatpush1.msra.mxu0 0.0
    %4609 = vmatprep.subr.mxu0 0.0
    %4610 = vmatpush1.msra.mxu0 0.0
    %4611 = vmatprep.subr.mxu0 0.0
    %4612 = vmatpush1.msra.mxu0 0.0
    %4613 = vmatprep.subr.mxu0 0.0
    %4614 = vmatpush1.msra.mxu0 0.0
    %4615 = vmatprep.subr.mxu0 0.0
    %4616 = vmatpush1.msra.mxu0 0.0
    %4617 = vmatprep.subr.mxu0 0.0
    %4618 = vmatpush1.msra.mxu0 0.0
    %4619 = vmatprep.subr.mxu0 0.0
    %4620 = vmatpush1.msra.mxu0 0.0
    %4621 = vmatprep.subr.mxu0 0.0
    %4622 = vmatpush1.msra.mxu0 0.0
    %4623 = vmatprep.subr.mxu0 0.0
    %4624 = vmatpush1.msra.mxu0 0.0
    %4625 = vmatprep.subr.mxu0 0.0
    %4626 = vmatpush1.msra.mxu0 0.0
    %4627 = vmatprep.subr.mxu0 0.0
    %4628 = vmatpush1.msra.mxu0 0.0
    %4629 = vmatprep.subr.mxu0 %v3601
    %4630 = vmatpush1.msra.mxu0 %v3600
    %4631 = vmatprep.subr.mxu0 %v3569
    %4632 = vmatpush1.msra.mxu0 %v3568
    %4633 = vmatprep.subr.mxu0 %v3537
    %4634 = vmatpush1.msra.mxu0 %v3536
    %4635 = vmatprep.subr.mxu0 %v3505
    %4636 = vmatpush1.msra.mxu0 %v3504
    %4637 = vmatprep.subr.mxu0 0.0
    %4638 = vmatpush2.msra.mxu0 0.0
    %4639 = vmatprep.subr.mxu0 0.0
    %4640 = vmatpush2.msra.mxu0 0.0
    %4641 = vmatprep.subr.mxu0 0.0
    %4642 = vmatpush2.msra.mxu0 0.0
    %4643 = vmatprep.subr.mxu0 0.0
    %4644 = vmatpush2.msra.mxu0 0.0
    %4645 = vmatprep.subr.mxu0 0.0
    %4646 = vmatpush2.msra.mxu0 0.0
    %4647 = vmatprep.subr.mxu0 0.0
    %4648 = vmatpush2.msra.mxu0 0.0
    %4649 = vmatprep.subr.mxu0 0.0
    %4650 = vmatpush2.msra.mxu0 0.0
    %4651 = vmatprep.subr.mxu0 0.0
    %4652 = vmatpush2.msra.mxu0 0.0
    %4653 = vmatprep.subr.mxu0 0.0
    %4654 = vmatpush2.msra.mxu0 0.0
    %4655 = vmatprep.subr.mxu0 0.0
    %4656 = vmatpush2.msra.mxu0 0.0
    %4657 = vmatprep.subr.mxu0 0.0
    %4658 = vmatpush2.msra.mxu0 0.0
    %4659 = vmatprep.subr.mxu0 0.0
    %4660 = vmatpush2.msra.mxu0 0.0
    %4661 = vmatprep.subr.mxu0 0.0
    %4662 = vmatpush2.msra.mxu0 0.0
    %4663 = vmatprep.subr.mxu0 0.0
    %4664 = vmatpush2.msra.mxu0 0.0
    %4665 = vmatprep.subr.mxu0 0.0
    %4666 = vmatpush2.msra.mxu0 0.0
    %4667 = vmatprep.subr.mxu0 0.0
    %4668 = vmatpush2.msra.mxu0 0.0
    %4669 = vmatprep.mubr.f32.mxu0 0.0
    %4670 = vmatmul.mubr.f32.gmra.mxu0 %v3609
    %v4671 = vpop.f32.mrf.mxu0
    %v4672 = vadd.f32 %v3606, %v4671
    %v4673 = vpop.f32.mrf.mxu0
    %v4674 = vadd.f32 %v3606, %v4673
    %4675 = vdwg.mxu0
    %4676 = vmatprep.subr.mxu0 0.0
    %4677 = vmatpush1.msra.mxu0 0.0
    %4678 = vmatprep.subr.mxu0 0.0
    %4679 = vmatpush1.msra.mxu0 0.0
    %4680 = vmatprep.subr.mxu0 0.0
    %4681 = vmatpush1.msra.mxu0 0.0
    %4682 = vmatprep.subr.mxu0 0.0
    %4683 = vmatpush1.msra.mxu0 0.0
    %4684 = vmatprep.subr.mxu0 0.0
    %4685 = vmatpush1.msra.mxu0 0.0
    %4686 = vmatprep.subr.mxu0 0.0
    %4687 = vmatpush1.msra.mxu0 0.0
    %4688 = vmatprep.subr.mxu0 0.0
    %4689 = vmatpush1.msra.mxu0 0.0
    %4690 = vmatprep.subr.mxu0 0.0
    %4691 = vmatpush1.msra.mxu0 0.0
    %4692 = vmatprep.subr.mxu0 0.0
    %4693 = vmatpush1.msra.mxu0 0.0
    %4694 = vmatprep.subr.mxu0 0.0
    %4695 = vmatpush1.msra.mxu0 0.0
    %4696 = vmatprep.subr.mxu0 0.0
    %4697 = vmatpush1.msra.mxu0 0.0
    %4698 = vmatprep.subr.mxu0 0.0
    %4699 = vmatpush1.msra.mxu0 0.0
    %4700 = vmatprep.subr.mxu0 %v3603
    %4701 = vmatpush1.msra.mxu0 %v3602
    %4702 = vmatprep.subr.mxu0 %v3571
    %4703 = vmatpush1.msra.mxu0 %v3570
    %4704 = vmatprep.subr.mxu0 %v3539
    %4705 = vmatpush1.msra.mxu0 %v3538
    %4706 = vmatprep.subr.mxu0 %v3507
    %4707 = vmatpush1.msra.mxu0 %v3506
    %4708 = vmatprep.subr.mxu0 0.0
    %4709 = vmatpush2.msra.mxu0 0.0
    %4710 = vmatprep.subr.mxu0 0.0
    %4711 = vmatpush2.msra.mxu0 0.0
    %4712 = vmatprep.subr.mxu0 0.0
    %4713 = vmatpush2.msra.mxu0 0.0
    %4714 = vmatprep.subr.mxu0 0.0
    %4715 = vmatpush2.msra.mxu0 0.0
    %4716 = vmatprep.subr.mxu0 0.0
    %4717 = vmatpush2.msra.mxu0 0.0
    %4718 = vmatprep.subr.mxu0 0.0
    %4719 = vmatpush2.msra.mxu0 0.0
    %4720 = vmatprep.subr.mxu0 0.0
    %4721 = vmatpush2.msra.mxu0 0.0
    %4722 = vmatprep.subr.mxu0 0.0
    %4723 = vmatpush2.msra.mxu0 0.0
    %4724 = vmatprep.subr.mxu0 0.0
    %4725 = vmatpush2.msra.mxu0 0.0
    %4726 = vmatprep.subr.mxu0 0.0
    %4727 = vmatpush2.msra.mxu0 0.0
    %4728 = vmatprep.subr.mxu0 0.0
    %4729 = vmatpush2.msra.mxu0 0.0
    %4730 = vmatprep.subr.mxu0 0.0
    %4731 = vmatpush2.msra.mxu0 0.0
    %4732 = vmatprep.subr.mxu0 0.0
    %4733 = vmatpush2.msra.mxu0 0.0
    %4734 = vmatprep.subr.mxu0 0.0
    %4735 = vmatpush2.msra.mxu0 0.0
    %4736 = vmatprep.subr.mxu0 0.0
    %4737 = vmatpush2.msra.mxu0 0.0
    %4738 = vmatprep.subr.mxu0 0.0
    %4739 = vmatpush2.msra.mxu0 0.0
    %4740 = vmatprep.mubr.f32.mxu0 0.0
    %4741 = vmatmul.mubr.f32.gmra.mxu0 %v3609
    %v4742 = vpop.f32.mrf.mxu0
    %v4743 = vadd.f32 %v3606, %v4742
    %v4744 = vpop.f32.mrf.mxu0
    %v4745 = vadd.f32 %v3606, %v4744
    %4746 = vdwg.mxu0
    %v4779 = vcombine.low %v3678, %v3680
    %v4780 = vcombine.low %v3749, %v3751
    %v4781 = vcombine.low %v3820, %v3822
    %v4782 = vcombine.low %v3891, %v3893
    %v4784 = vunpack.c.l.s4 1966171168
    %v4785 = vunpack.c.0.s8 %v4784
    %v4786 = vlaneseq
    %v4787 = vshrl.u32 %v4786, 7
    %v4788 = vsub.s32 %v4785, %v4787
    %v4789 = vrot.slane %v4779, %v4788
    %v4791 = vunpack.c.l.s4 1966171168
    %v4792 = vunpack.c.0.s8 %v4791
    %v4793 = vlaneseq
    %v4794 = vshrl.u32 %v4793, 7
    %v4795 = vsub.s32 %v4792, %v4794
    %v4796 = vrot.slane %v4780, %v4795
    %v4798 = vunpack.c.l.s4 1966171168
    %v4799 = vunpack.c.0.s8 %v4798
    %v4800 = vlaneseq
    %v4801 = vshrl.u32 %v4800, 7
    %v4802 = vsub.s32 %v4799, %v4801
    %v4803 = vrot.slane %v4781, %v4802
    %v4805 = vunpack.c.l.s4 1966171168
    %v4806 = vunpack.c.0.s8 %v4805
    %v4807 = vlaneseq
    %v4808 = vshrl.u32 %v4807, 7
    %v4809 = vsub.s32 %v4806, %v4808
    %v4810 = vrot.slane %v4782, %v4809
    %v4811 = vcombine.low %v4789, %v4796
    %v4812 = vcombine.low %v4803, %v4810
    %v4814 = vunpack.c.l.s4 1966171168
    %v4815 = vunpack.c.0.s8 %v4814
    %v4816 = vlaneseq
    %v4817 = vshrl.u32 %v4816, 7
    %v4818 = vsub.s32 %v4815, %v4817
    %v4819 = vrot.slane %v4811, %v4818
    %v4821 = vunpack.c.l.s4 1966171168
    %v4822 = vunpack.c.0.s8 %v4821
    %v4823 = vlaneseq
    %v4824 = vshrl.u32 %v4823, 7
    %v4825 = vsub.s32 %v4822, %v4824
    %v4826 = vrot.slane %v4812, %v4825
    %v4827 = vcombine.low %v4819, %v4826
    %v4828 = vcombine.low %v3962, %v3964
    %v4829 = vcombine.low %v4033, %v4035
    %v4830 = vcombine.low %v4104, %v4106
    %v4831 = vcombine.low %v4175, %v4177
    %v4833 = vunpack.c.l.s4 1966171168
    %v4834 = vunpack.c.0.s8 %v4833
    %v4835 = vlaneseq
    %v4836 = vshrl.u32 %v4835, 7
    %v4837 = vsub.s32 %v4834, %v4836
    %v4838 = vrot.slane %v4828, %v4837
    %v4840 = vunpack.c.l.s4 1966171168
    %v4841 = vunpack.c.0.s8 %v4840
    %v4842 = vlaneseq
    %v4843 = vshrl.u32 %v4842, 7
    %v4844 = vsub.s32 %v4841, %v4843
    %v4845 = vrot.slane %v4829, %v4844
    %v4847 = vunpack.c.l.s4 1966171168
    %v4848 = vunpack.c.0.s8 %v4847
    %v4849 = vlaneseq
    %v4850 = vshrl.u32 %v4849, 7
    %v4851 = vsub.s32 %v4848, %v4850
    %v4852 = vrot.slane %v4830, %v4851
    %v4854 = vunpack.c.l.s4 1966171168
    %v4855 = vunpack.c.0.s8 %v4854
    %v4856 = vlaneseq
    %v4857 = vshrl.u32 %v4856, 7
    %v4858 = vsub.s32 %v4855, %v4857
    %v4859 = vrot.slane %v4831, %v4858
    %v4860 = vcombine.low %v4838, %v4845
    %v4861 = vcombine.low %v4852, %v4859
    %v4863 = vunpack.c.l.s4 1966171168
    %v4864 = vunpack.c.0.s8 %v4863
    %v4865 = vlaneseq
    %v4866 = vshrl.u32 %v4865, 7
    %v4867 = vsub.s32 %v4864, %v4866
    %v4868 = vrot.slane %v4860, %v4867
    %v4870 = vunpack.c.l.s4 1966171168
    %v4871 = vunpack.c.0.s8 %v4870
    %v4872 = vlaneseq
    %v4873 = vshrl.u32 %v4872, 7
    %v4874 = vsub.s32 %v4871, %v4873
    %v4875 = vrot.slane %v4861, %v4874
    %v4876 = vcombine.low %v4868, %v4875
    %v4877 = vcombine.low %v4246, %v4248
    %v4878 = vcombine.low %v4317, %v4319
    %v4879 = vcombine.low %v4388, %v4390
    %v4880 = vcombine.low %v4459, %v4461
    %v4882 = vunpack.c.l.s4 1966171168
    %v4883 = vunpack.c.0.s8 %v4882
    %v4884 = vlaneseq
    %v4885 = vshrl.u32 %v4884, 7
    %v4886 = vsub.s32 %v4883, %v4885
    %v4887 = vrot.slane %v4877, %v4886
    %v4889 = vunpack.c.l.s4 1966171168
    %v4890 = vunpack.c.0.s8 %v4889
    %v4891 = vlaneseq
    %v4892 = vshrl.u32 %v4891, 7
    %v4893 = vsub.s32 %v4890, %v4892
    %v4894 = vrot.slane %v4878, %v4893
    %v4896 = vunpack.c.l.s4 1966171168
    %v4897 = vunpack.c.0.s8 %v4896
    %v4898 = vlaneseq
    %v4899 = vshrl.u32 %v4898, 7
    %v4900 = vsub.s32 %v4897, %v4899
    %v4901 = vrot.slane %v4879, %v4900
    %v4903 = vunpack.c.l.s4 1966171168
    %v4904 = vunpack.c.0.s8 %v4903
    %v4905 = vlaneseq
    %v4906 = vshrl.u32 %v4905, 7
    %v4907 = vsub.s32 %v4904, %v4906
    %v4908 = vrot.slane %v4880, %v4907
    %v4909 = vcombine.low %v4887, %v4894
    %v4910 = vcombine.low %v4901, %v4908
    %v4912 = vunpack.c.l.s4 1966171168
    %v4913 = vunpack.c.0.s8 %v4912
    %v4914 = vlaneseq
    %v4915 = vshrl.u32 %v4914, 7
    %v4916 = vsub.s32 %v4913, %v4915
    %v4917 = vrot.slane %v4909, %v4916
    %v4919 = vunpack.c.l.s4 1966171168
    %v4920 = vunpack.c.0.s8 %v4919
    %v4921 = vlaneseq
    %v4922 = vshrl.u32 %v4921, 7
    %v4923 = vsub.s32 %v4920, %v4922
    %v4924 = vrot.slane %v4910, %v4923
    %v4925 = vcombine.low %v4917, %v4924
    %v4926 = vcombine.low %v4530, %v4532
    %v4927 = vcombine.low %v4601, %v4603
    %v4928 = vcombine.low %v4672, %v4674
    %v4929 = vcombine.low %v4743, %v4745
    %v4931 = vunpack.c.l.s4 1966171168
    %v4932 = vunpack.c.0.s8 %v4931
    %v4933 = vlaneseq
    %v4934 = vshrl.u32 %v4933, 7
    %v4935 = vsub.s32 %v4932, %v4934
    %v4936 = vrot.slane %v4926, %v4935
    %v4938 = vunpack.c.l.s4 1966171168
    %v4939 = vunpack.c.0.s8 %v4938
    %v4940 = vlaneseq
    %v4941 = vshrl.u32 %v4940, 7
    %v4942 = vsub.s32 %v4939, %v4941
    %v4943 = vrot.slane %v4927, %v4942
    %v4945 = vunpack.c.l.s4 1966171168
    %v4946 = vunpack.c.0.s8 %v4945
    %v4947 = vlaneseq
    %v4948 = vshrl.u32 %v4947, 7
    %v4949 = vsub.s32 %v4946, %v4948
    %v4950 = vrot.slane %v4928, %v4949
    %v4952 = vunpack.c.l.s4 1966171168
    %v4953 = vunpack.c.0.s8 %v4952
    %v4954 = vlaneseq
    %v4955 = vshrl.u32 %v4954, 7
    %v4956 = vsub.s32 %v4953, %v4955
    %v4957 = vrot.slane %v4929, %v4956
    %v4958 = vcombine.low %v4936, %v4943
    %v4959 = vcombine.low %v4950, %v4957
    %v4961 = vunpack.c.l.s4 1966171168
    %v4962 = vunpack.c.0.s8 %v4961
    %v4963 = vlaneseq
    %v4964 = vshrl.u32 %v4963, 7
    %v4965 = vsub.s32 %v4962, %v4964
    %v4966 = vrot.slane %v4958, %v4965
    %v4968 = vunpack.c.l.s4 1966171168
    %v4969 = vunpack.c.0.s8 %v4968
    %v4970 = vlaneseq
    %v4971 = vshrl.u32 %v4970, 7
    %v4972 = vsub.s32 %v4969, %v4971
    %v4973 = vrot.slane %v4959, %v4972
    %v4974 = vcombine.low %v4966, %v4973
    %4979 = vst [vmem:[#allocation3] sm:$0xff] %v4827
    %4980 = vst [vmem:[#allocation3 + $0x8] sm:$0xff] %v4876
    %4981 = vst [vmem:[#allocation3 + $0x10] sm:$0xff] %v4925
    %4982 = vst [vmem:[#allocation3 + $0x18] sm:$0xff] %v4974
    // Predicated region
    $region22: #{tpu_custom_call.1} parent=1 // pred_check
      _
    $region23: #{tpu_custom_call.1} parent=1 // pred_check_branch
      %4984 = sbr.rel (0) target = $region25
    $region24: #{tpu_custom_call.1} parent=1 // pred_region
      %s4986 = ssub.s32 512, 512
      %4987 = vsyncadd [#allocation4], %s4986
      %s4989 = sshll.u32 [#allocation3], 4
      %s4990 = int_to_ptr.vmem [resolvable:$true] %s4989
      %4992 = dma.vmem_to_hbm [thread:$0]  %s4990, 512, %s5, [#allocation4]
    $region25: #{tpu_custom_call.1} parent=1 // pred_fallthru
      _
    // Predicated region
    $region26: #{tpu_custom_call.1} parent=1 // pred_check
      _
    $region27: #{tpu_custom_call.1} parent=1 // pred_check_branch
      %4994 = sbr.rel (0) target = $region29
    $region28: #{tpu_custom_call.1} parent=1 // pred_region
      %4995 = dma.done [#allocation4], 512
    $region29: #{tpu_custom_call.1} parent=1 // pred_fallthru
      _
    %4996 = vsyncpa [#allocation4], 1

</llo_original>
